<compile_context>
chip_gen: v7x
topology: tpu7x:2x2x1
jax: 0.10.0
libtpu: 0.0.40
codegen_flags: <defaults>
</compile_context>

<pallas_src>
import math
import functools

import jax
import jax.numpy as jnp
from jax import tree_util
from jax.experimental import pallas as pl
from jax.experimental.pallas import tpu as pltpu


def _round_up(x, m):
    return ((x + m - 1) // m) * m


def _split_rows(dim, desired):
    """Tile an M-like dim: tile multiple of 8, balanced so end padding is minimal."""
    dp = _round_up(dim, 8)
    if dp <= desired:
        return dp, dp
    nt = -(-dp // desired)
    tile = _round_up(-(-dp // nt), 8)
    return tile, nt * tile


def _split_k(dim, desired):
    """Tile the contraction dim: single full tile if it fits, else 128-aligned."""
    if dim <= desired:
        return dim, dim
    nt = -(-dim // desired)
    tile = _round_up(-(-dim // nt), 128)
    return tile, nt * tile


def _split_lanes(dim, desired):
    """Tile the output-N dim: padded to multiples of 128 (lane-dense stores)."""
    dp = _round_up(dim, 128)
    if dp <= desired:
        return dp, dp
    nt = -(-dp // desired)
    tile = _round_up(-(-dp // nt), 128)
    return tile, nt * tile


# ----------------------------- prepared (hoisted) linear params -----------------------------

@tree_util.register_pytree_node_class
class PreparedLinear:
    """Pre-padded bf16 weight (Kp, Np) + f32 bias (1, Np); static tiling metadata."""

    def __init__(self, w, b, n_out, tn, tk):
        self.w = w
        self.b = b
        self.n_out = n_out
        self.tn = tn
        self.tk = tk

    def tree_flatten(self):
        return (self.w, self.b), (self.n_out, self.tn, self.tk)

    @classmethod
    def tree_unflatten(cls, aux, leaves):
        return cls(leaves[0], leaves[1], *aux)


def prepare_linear(w, b, *, tn_desired=512, tk_desired=512):
    """One-time weight prep: pad N/K to kernel tiling, cast w->bf16, b->f32."""
    K, N = w.shape
    tk, Kp = _split_k(K, tk_desired)
    tn, Np = _split_lanes(N, tn_desired)
    wp = w if (Kp == K and Np == N) else jnp.pad(w, ((0, Kp - K), (0, Np - N)))
    bp = b if Np == N else jnp.pad(b, (0, Np - N))
    return PreparedLinear(wp.astype(jnp.bfloat16),
                          bp.reshape(1, Np).astype(jnp.float32),
                          N, tn, tk)


# ----------------------------- Pallas kernels -----------------------------

def _matmul_kernel(x_ref, w_ref, b_ref, o_ref, acc_ref, *, activation):
    """(tm,tk) x (tk,tn) tile matmul, f32 accumulate, fused bias/ReLU epilogue."""
    @pl.when(pl.program_id(2) == 0)
    def _():
        acc_ref[...] = jnp.zeros_like(acc_ref)

    acc_ref[...] += jnp.dot(x_ref[...], w_ref[...],
                            preferred_element_type=jnp.float32)

    @pl.when(pl.program_id(2) == pl.num_programs(2) - 1)
    def _():
        out = acc_ref[...] + b_ref[...]
        if activation == "relu":
            out = jnp.maximum(out, 0.0)
        o_ref[...] = out.astype(o_ref.dtype)


def _add_layernorm_kernel(x_ref, r_ref, g_ref, b_ref, o_ref):
    """Fused residual add + LayerNorm; bf16 I/O, f32 statistics (biased variance)."""
    x = x_ref[...].astype(jnp.float32) + r_ref[...].astype(jnp.float32)
    mu = jnp.mean(x, axis=-1, keepdims=True)
    var = jnp.mean(jnp.square(x - mu), axis=-1, keepdims=True)
    y = (x - mu) * jax.lax.rsqrt(var + 1e-5) * g_ref[...] + b_ref[...]
    o_ref[...] = y.astype(o_ref.dtype)


def _attention_kernel(q_ref, k_ref, v_ref, qv_ref, kv_ref, o_ref, *,
                      n_heads, scale, causal):
    """One batch element per grid step; heads handled in-kernel via static lane slices.

    TODO(synk): add flash-style Lq/Lk grid tiling with online softmax before
    running realistic sequence lengths (the (Lq, Lk) score block must stay
    well under VMEM, esp. on v7x's 64 MiB).
    """
    q = q_ref[0]          # (Lq, D) bf16
    k = k_ref[0]          # (Lk, D) bf16
    v = v_ref[0]          # (Lk, D) bf16
    qv = qv_ref[0]        # (Lq, 1) int32 query-token validity
    kv = kv_ref[0]        # (1, Lk) int32 key-token validity

    valid = (qv * kv) > 0                                   # (Lq, Lk) pad mask
    if causal:
        ri = jax.lax.broadcasted_iota(jnp.int32, valid.shape, 0)
        ci = jax.lax.broadcasted_iota(jnp.int32, valid.shape, 1)
        valid = jnp.logical_and(valid, ri >= ci)

    D = q.shape[-1]
    dk = D // n_heads
    outs = []
    for h in range(n_heads):                                 # static unroll over heads
        qh = q[:, h * dk:(h + 1) * dk]
        kh = k[:, h * dk:(h + 1) * dk]
        vh = v[:, h * dk:(h + 1) * dk]
        # q @ k^T without an explicit transpose (contract last dim of both)
        s = jax.lax.dot_general(qh, kh, (((1,), (1,)), ((), ())),
                                preferred_element_type=jnp.float32) * scale
        # NOTE: fully-masked (pad) query rows get a uniform softmax over -1e9 scores
        # (numerically safe) instead of NaN from an additive -inf mask; intentional.
        s = jnp.where(valid, s, jnp.float32(-1e9))
        s = s - jnp.max(s, axis=-1, keepdims=True)
        p = jnp.exp(s)
        inv = pl.reciprocal(jnp.sum(p, axis=-1, keepdims=True), approx=True)
        oh = jnp.dot(p.astype(vh.dtype), vh, preferred_element_type=jnp.float32)
        outs.append(oh * inv)
    o_ref[0] = jnp.concatenate(outs, axis=-1).astype(o_ref.dtype)   # lane-dense (Lq, D) store


# ----------------------------- kernel wrappers -----------------------------

def linear(x, lp: PreparedLinear, activation=None, out_dtype=jnp.bfloat16, tm=256):
    """Tiled y = act(x @ w + b). bf16 MXU inputs, f32 accumulation, bf16 (or f32) output.

    Weights arrive pre-padded / pre-cast (PreparedLinear) so the only per-call
    plumbing is an optional M/K pad of the activation.  Tile sizes fit easily
    under v7x's 64 MiB VMEM; raise tm/tn (and vmem_limit_bytes) on v5e/v6e for
    very large M/N if desired.
    """
    shp = x.shape
    x2 = x.reshape(-1, shp[-1]).astype(jnp.bfloat16)
    M, K = x2.shape
    wp, bp = lp.w, lp.b
    Kp, Np = wp.shape
    N, tn, tk = lp.n_out, lp.tn, lp.tk

    tm, Mp = _split_rows(M, tm)
    if Mp != M or Kp != K:
        x2 = jnp.pad(x2, ((0, Mp - M), (0, Kp - K)))

    kern = functools.partial(_matmul_kernel, activation=activation)
    out = pl.pallas_call(
        kern,
        grid=(Mp // tm, Np // tn, Kp // tk),
        in_specs=[
            pl.BlockSpec((tm, tk), lambda i, j, k: (i, k)),
            pl.BlockSpec((tk, tn), lambda i, j, k: (k, j)),
            pl.BlockSpec((1, tn), lambda i, j, k: (0, j)),
        ],
        out_specs=pl.BlockSpec((tm, tn), lambda i, j, k: (i, j)),
        out_shape=jax.ShapeDtypeStruct((Mp, Np), out_dtype),
        scratch_shapes=[pltpu.VMEM((tm, tn), jnp.float32)],
        compiler_params=pltpu.CompilerParams(
            dimension_semantics=("parallel", "parallel", "arbitrary")),
    )(x2, wp, bp)
    return out[:M, :N].reshape(shp[:-1] + (N,))


def add_layer_norm(x, res, gamma, beta, tm=512):
    """LayerNorm(x + res) fused in one kernel, row-tiled; bf16 in/out, f32 stats."""
    shp = x.shape
    D = shp[-1]
    x2 = x.reshape(-1, D).astype(jnp.bfloat16)
    r2 = res.reshape(-1, D).astype(jnp.bfloat16)
    M = x2.shape[0]

    tm, Mp = _split_rows(M, tm)
    if Mp != M:
        x2 = jnp.pad(x2, ((0, Mp - M), (0, 0)))
        r2 = jnp.pad(r2, ((0, Mp - M), (0, 0)))

    out = pl.pallas_call(
        _add_layernorm_kernel,
        grid=(Mp // tm,),
        in_specs=[
            pl.BlockSpec((tm, D), lambda i: (i, 0)),
            pl.BlockSpec((tm, D), lambda i: (i, 0)),
            pl.BlockSpec((1, D), lambda i: (0, 0)),
            pl.BlockSpec((1, D), lambda i: (0, 0)),
        ],
        out_specs=pl.BlockSpec((tm, D), lambda i: (i, 0)),
        out_shape=jax.ShapeDtypeStruct((Mp, D), jnp.bfloat16),
        compiler_params=pltpu.CompilerParams(dimension_semantics=("parallel",)),
    )(x2, r2, gamma, beta)
    return out[:M].reshape(shp)


def fused_attention(q, k, v, q_valid, k_valid, *, n_heads, causal):
    """q/k/v: (B, L, D) bf16; per-batch grid step, heads sliced in-kernel."""
    B, Lq, D = q.shape
    Lk = k.shape[1]
    dk = D // n_heads
    kern = functools.partial(_attention_kernel, n_heads=n_heads,
                             scale=1.0 / math.sqrt(dk), causal=causal)
    qv = q_valid.astype(jnp.int32).reshape(B, Lq, 1)
    kv = k_valid.astype(jnp.int32).reshape(B, 1, Lk)
    return pl.pallas_call(
        kern,
        grid=(B,),
        in_specs=[
            pl.BlockSpec((1, Lq, D), lambda b: (b, 0, 0)),
            pl.BlockSpec((1, Lk, D), lambda b: (b, 0, 0)),
            pl.BlockSpec((1, Lk, D), lambda b: (b, 0, 0)),
            pl.BlockSpec((1, Lq, 1), lambda b: (b, 0, 0)),
            pl.BlockSpec((1, 1, Lk), lambda b: (b, 0, 0)),
        ],
        out_specs=pl.BlockSpec((1, Lq, D), lambda b: (b, 0, 0)),
        out_shape=jax.ShapeDtypeStruct((B, Lq, D), jnp.bfloat16),
        compiler_params=pltpu.CompilerParams(dimension_semantics=("parallel",)),
    )(q.astype(jnp.bfloat16), k.astype(jnp.bfloat16), v.astype(jnp.bfloat16),
      qv, kv)


# ----------------------------- model pieces -----------------------------

def sinusoidal_pe(max_len, d_model):
    pos = jnp.arange(max_len, dtype=jnp.float32)[:, None]
    i = jnp.arange(0, d_model, 2, dtype=jnp.float32)
    div = jnp.exp(-math.log(10000.0) * i / d_model)
    pe = jnp.zeros((max_len, d_model), jnp.float32)
    pe = pe.at[:, 0::2].set(jnp.sin(pos * div))
    pe = pe.at[:, 1::2].set(jnp.cos(pos * div))
    return pe


def transformer_embedding(p, tokens):
    # TODO(synk): token-embedding gather kept in plain JAX (data-dependent gather);
    # dropout omitted (eval-mode identity).
    tok = jnp.take(p["emb"], tokens, axis=0)
    L = tokens.shape[1]
    return (tok + p["pe"][:L][None, :, :]).astype(jnp.bfloat16)


def encoder_layer(p, x, valid, n_heads):
    qkv = linear(x, p["qkv"])                     # fused Q/K/V projection (one matmul)
    q, k, v = jnp.split(qkv, 3, axis=-1)
    a = fused_attention(q, k, v, valid, valid, n_heads=n_heads, causal=False)
    a = linear(a, p["o"])
    x = add_layer_norm(a, x, p["ln1_g"], p["ln1_b"])
    h = linear(x, p["fc1"], activation="relu")    # fused bias+ReLU epilogue
    f = linear(h, p["fc2"])
    x = add_layer_norm(f, x, p["ln2_g"], p["ln2_b"])
    return x


def decoder_layer(p, x, enc, tgt_valid, src_valid, n_heads):
    qkv = linear(x, p["self_qkv"])
    q, k, v = jnp.split(qkv, 3, axis=-1)
    a = fused_attention(q, k, v, tgt_valid, tgt_valid, n_heads=n_heads, causal=True)
    a = linear(a, p["self_o"])
    x = add_layer_norm(a, x, p["ln1_g"], p["ln1_b"])

    q = linear(x, p["cross_q"])
    kv = linear(enc, p["cross_kv"])               # fused K/V projection (one matmul)
    k, v = jnp.split(kv, 2, axis=-1)
    c = fused_attention(q, k, v, tgt_valid, src_valid, n_heads=n_heads, causal=False)
    c = linear(c, p["cross_o"])
    x = add_layer_norm(c, x, p["ln2_g"], p["ln2_b"])

    h = linear(x, p["fc1"], activation="relu")
    f = linear(h, p["fc2"])
    x = add_layer_norm(f, x, p["ln3_g"], p["ln3_b"])
    return x


@functools.partial(jax.jit, static_argnames=("src_pad_idx", "dst_pad_idx", "n_heads"))
def transformer_forward(params, src, tgt, *, src_pad_idx, dst_pad_idx, n_heads):
    # Pad/causal masks are built *inside* the attention kernel from these small
    # per-token validity vectors (no (B*H, Lq, Lk) f32 mask materialization).
    src_valid = (src != src_pad_idx)
    tgt_valid = (tgt != dst_pad_idx)
    # NOTE: reference code accesses self.tgt_pad_idx (a typo); dst_pad_idx is used here.

    x = transformer_embedding(params["enc_emb"], src)
    for lp in params["enc_layers"]:
        x = encoder_layer(lp, x, src_valid, n_heads)

    y = transformer_embedding(params["dec_emb"], tgt)
    for lp in params["dec_layers"]:
        y = decoder_layer(lp, y, x, tgt_valid, src_valid, n_heads)

    # Vocab projection: same N-tiled, weight-streaming matmul kernel, f32 output.
    return linear(y, params["fc"], out_dtype=jnp.float32)


# ----------------------------- parameter init & one-time prep -----------------------------

def _init_linear(key, d_in, d_out):
    w = jax.random.normal(key, (d_in, d_out), jnp.float32) * 0.02
    b = jnp.zeros((d_out,), jnp.float32)
    return w, b


def _init_attn(keys, d_model):
    p = {}
    for n, k in zip(["q", "k", "v", "o"], keys):
        w, b = _init_linear(k, d_model, d_model)
        p["w" + n], p["b" + n] = w, b
    return p


def init_raw_params(key, *, enc_voc, dec_voc, max_len, d_model, d_ffn, n_layer):
    keys = iter(jax.random.split(key, 256))
    pe = sinusoidal_pe(max_len, d_model)

    def emb(voc):
        return {"emb": jax.random.normal(next(keys), (voc, d_model), jnp.float32) * 0.02,
                "pe": pe}

    def ffn_p():
        w1, b1 = _init_linear(next(keys), d_model, d_ffn)
        w2, b2 = _init_linear(next(keys), d_ffn, d_model)
        return {"w1": w1, "b1": b1, "w2": w2, "b2": b2}

    def ln():
        return jnp.ones((d_model,), jnp.float32), jnp.zeros((d_model,), jnp.float32)

    enc_layers, dec_layers = [], []
    for _ in range(n_layer):
        g1, b1 = ln(); g2, b2 = ln()
        enc_layers.append({"attn": _init_attn([next(keys) for _ in range(4)], d_model),
                           "ffn": ffn_p(),
                           "ln1_g": g1, "ln1_b": b1, "ln2_g": g2, "ln2_b": b2})
    for _ in range(n_layer):
        g1, b1 = ln(); g2, b2 = ln(); g3, b3 = ln()
        dec_layers.append({"self_attn": _init_attn([next(keys) for _ in range(4)], d_model),
                           "cross_attn": _init_attn([next(keys) for _ in range(4)], d_model),
                           "ffn": ffn_p(),
                           "ln1_g": g1, "ln1_b": b1, "ln2_g": g2, "ln2_b": b2,
                           "ln3_g": g3, "ln3_b": b3})

    fc_w, fc_b = _init_linear(next(keys), d_model, dec_voc)
    return {"enc_emb": emb(enc_voc), "dec_emb": emb(dec_voc),
            "enc_layers": enc_layers, "dec_layers": dec_layers,
            "fc_w": fc_w, "fc_b": fc_b}


def prepare_params(raw, d_model):
    """One-time weight prep hoisted out of the forward path:
    fuse Q/K/V and K/V projections, pad N/K to the kernel tiling, cast to bf16."""
    def ln2d(g):
        return g.reshape(1, d_model).astype(jnp.float32)

    def prep_qkv(a):
        w = jnp.concatenate([a["wq"], a["wk"], a["wv"]], axis=1)
        b = jnp.concatenate([a["bq"], a["bk"], a["bv"]])
        return prepare_linear(w, b)

    def prep_kv(a):
        w = jnp.concatenate([a["wk"], a["wv"]], axis=1)
        b = jnp.concatenate([a["bk"], a["bv"]])
        return prepare_linear(w, b)

    enc_layers = []
    for lp in raw["enc_layers"]:
        enc_layers.append({
            "qkv": prep_qkv(lp["attn"]),
            "o": prepare_linear(lp["attn"]["wo"], lp["attn"]["bo"]),
            "fc1": prepare_linear(lp["ffn"]["w1"], lp["ffn"]["b1"]),
            "fc2": prepare_linear(lp["ffn"]["w2"], lp["ffn"]["b2"]),
            "ln1_g": ln2d(lp["ln1_g"]), "ln1_b": ln2d(lp["ln1_b"]),
            "ln2_g": ln2d(lp["ln2_g"]), "ln2_b": ln2d(lp["ln2_b"]),
        })

    dec_layers = []
    for lp in raw["dec_layers"]:
        dec_layers.append({
            "self_qkv": prep_qkv(lp["self_attn"]),
            "self_o": prepare_linear(lp["self_attn"]["wo"], lp["self_attn"]["bo"]),
            "cross_q": prepare_linear(lp["cross_attn"]["wq"], lp["cross_attn"]["bq"]),
            "cross_kv": prep_kv(lp["cross_attn"]),
            "cross_o": prepare_linear(lp["cross_attn"]["wo"], lp["cross_attn"]["bo"]),
            "fc1": prepare_linear(lp["ffn"]["w1"], lp["ffn"]["b1"]),
            "fc2": prepare_linear(lp["ffn"]["w2"], lp["ffn"]["b2"]),
            "ln1_g": ln2d(lp["ln1_g"]), "ln1_b": ln2d(lp["ln1_b"]),
            "ln2_g": ln2d(lp["ln2_g"]), "ln2_b": ln2d(lp["ln2_b"]),
            "ln3_g": ln2d(lp["ln3_g"]), "ln3_b": ln2d(lp["ln3_b"]),
        })

    return {"enc_emb": raw["enc_emb"], "dec_emb": raw["dec_emb"],
            "enc_layers": enc_layers, "dec_layers": dec_layers,
            "fc": prepare_linear(raw["fc_w"], raw["fc_b"])}


# ----------------------------- main -----------------------------

if __name__ == "__main__":
    B = 2
    src_len = 8
    tgt_len = 8
    d_model = 32
    d_ffn = 64
    n_heads = 4
    n_layer = 2
    enc_voc = 48
    dec_voc = 48
    max_len = 16
    src_pad_idx = 0
    dst_pad_idx = 0

    key = jax.random.PRNGKey(0)
    kp, ks, kt = jax.random.split(key, 3)

    raw = init_raw_params(kp, enc_voc=enc_voc, dec_voc=dec_voc, max_len=max_len,
                          d_model=d_model, d_ffn=d_ffn, n_layer=n_layer)
    params = prepare_params(raw, d_model)   # weight fuse/pad/cast hoisted out of forward

    src = jax.random.randint(ks, (B, src_len), 1, enc_voc, dtype=jnp.int32)
    tgt = jax.random.randint(kt, (B, tgt_len), 1, dec_voc, dtype=jnp.int32)
    # introduce some padding so the pad masks actually matter
    src = src.at[:, -2:].set(src_pad_idx)
    tgt = tgt.at[:, -1:].set(dst_pad_idx)

    out = transformer_forward(params, src, tgt,
                              src_pad_idx=src_pad_idx,
                              dst_pad_idx=dst_pad_idx,
                              n_heads=n_heads)
    out = jax.block_until_ready(out)
    assert out.shape == (B, tgt_len, dec_voc), out.shape
    assert bool(jnp.all(jnp.isfinite(out)))
    print("KERNEL_OK")
</pallas_src>

<mosaic_0001>
module attributes {stable_mosaic.version = 11 : i64} {
  func.func @_matmul_kernel(%arg0: i32, %arg1: i32, %arg2: i32, %arg3: memref<16x32xbf16, #tpu.memory_space<vmem>>, %arg4: memref<32x128xbf16, #tpu.memory_space<vmem>>, %arg5: memref<1x128xf32, #tpu.memory_space<vmem>>, %arg6: memref<16x128xbf16, #tpu.memory_space<vmem>>, %arg7: memref<16x128xf32, #tpu.memory_space<vmem>>) attributes {dimension_semantics = [#tpu.dimension_semantics<parallel>, #tpu.dimension_semantics<parallel>, #tpu.dimension_semantics<arbitrary>], iteration_bounds = array<i64: 1, 1, 1>, scalar_prefetch = 0 : i64, scratch_operands = 1 : i64, tpu.core_type = #tpu.core_type<tc>, window_params = [{transform_indices = @transform_0, window_bounds = array<i64: 16, 32>}, {transform_indices = @transform_1, window_bounds = array<i64: 32, 128>}, {transform_indices = @transform_2, window_bounds = array<i64: 1, 128>}, {transform_indices = @transform_3, window_bounds = array<i64: 16, 128>}]} {
    %c0_i32 = arith.constant 0 : i32
    %0 = arith.cmpi eq, %arg2, %c0_i32 : i32
    %1 = arith.extui %0 : i1 to i32
    %c0_i32_0 = arith.constant 0 : i32
    %2 = arith.cmpi ne, %1, %c0_i32_0 : i32
    scf.if %2 {
      %cst_10 = arith.constant 0.000000e+00 : f32
      %12 = vector.broadcast %cst_10 : f32 to vector<16x128xf32>
      %c0_11 = arith.constant 0 : index
      %c0_12 = arith.constant 0 : index
      %13 = vector.load %arg7[%c0_11, %c0_12] : memref<16x128xf32, #tpu.memory_space<vmem>>, vector<16x128xf32>
      tpu.vector_store %arg7[%c0_11, %c0_12], %12 {strides = array<i32>} : memref<16x128xf32, #tpu.memory_space<vmem>>, vector<16x128xf32>,
    } else {
    }
    %c0 = arith.constant 0 : index
    %c0_1 = arith.constant 0 : index
    %3 = vector.load %arg7[%c0, %c0_1] : memref<16x128xf32, #tpu.memory_space<vmem>>, vector<16x128xf32>
    %c0_2 = arith.constant 0 : index
    %c0_3 = arith.constant 0 : index
    %4 = vector.load %arg3[%c0_2, %c0_3] : memref<16x32xbf16, #tpu.memory_space<vmem>>, vector<16x32xbf16>
    %c0_4 = arith.constant 0 : index
    %c0_5 = arith.constant 0 : index
    %5 = vector.load %arg4[%c0_4, %c0_5] : memref<32x128xbf16, #tpu.memory_space<vmem>>, vector<32x128xbf16>
    %cst = arith.constant dense<0.000000e+00> : vector<16x128xf32>
    %6 = tpu.matmul %4, %5, %cst {dimension_numbers = #tpu.dot_dimension_numbers<[1], [0], [0], [1], [0, 0, 1, 1], [], []>} : vector<16x32xbf16>, vector<32x128xbf16>, vector<16x128xf32> -> vector<16x128xf32>
    %7 = arith.addf %3, %6 : vector<16x128xf32>
    %c0_6 = arith.constant 0 : index
    %c0_7 = arith.constant 0 : index
    %8 = vector.load %arg7[%c0_6, %c0_7] : memref<16x128xf32, #tpu.memory_space<vmem>>, vector<16x128xf32>
    tpu.vector_store %arg7[%c0_6, %c0_7], %7 {strides = array<i32>} : memref<16x128xf32, #tpu.memory_space<vmem>>, vector<16x128xf32>,
    %c0_i32_8 = arith.constant 0 : i32
    %9 = arith.cmpi eq, %arg2, %c0_i32_8 : i32
    %10 = arith.extui %9 : i1 to i32
    %c0_i32_9 = arith.constant 0 : i32
    %11 = arith.cmpi ne, %10, %c0_i32_9 : i32
    scf.if %11 {
      %c0_10 = arith.constant 0 : index
      %c0_11 = arith.constant 0 : index
      %12 = vector.load %arg7[%c0_10, %c0_11] : memref<16x128xf32, #tpu.memory_space<vmem>>, vector<16x128xf32>
      %c0_12 = arith.constant 0 : index
      %c0_13 = arith.constant 0 : index
      %13 = vector.load %arg5[%c0_12, %c0_13] : memref<1x128xf32, #tpu.memory_space<vmem>>, vector<1x128xf32>
      %14 = vector.broadcast %13 : vector<1x128xf32> to vector<16x128xf32>
      %15 = arith.addf %12, %14 : vector<16x128xf32>
      %16 = arith.truncf %15 : vector<16x128xf32> to vector<16x128xbf16>
      %c0_14 = arith.constant 0 : index
      %c0_15 = arith.constant 0 : index
      %17 = vector.load %arg6[%c0_14, %c0_15] : memref<16x128xbf16, #tpu.memory_space<vmem>>, vector<16x128xbf16>
      tpu.vector_store %arg6[%c0_14, %c0_15], %16 {strides = array<i32>} : memref<16x128xbf16, #tpu.memory_space<vmem>>, vector<16x128xbf16>,
    } else {
    }
    return
  }
  func.func @transform_0(%arg0: i32, %arg1: i32, %arg2: i32) -> (i32, i32) {
    %c0_i32 = arith.constant 0 : i32
    return %arg0, %arg2 : i32, i32
  }
  func.func @transform_1(%arg0: i32, %arg1: i32, %arg2: i32) -> (i32, i32) {
    %c0_i32 = arith.constant 0 : i32
    return %arg2, %arg1 : i32, i32
  }
  func.func @transform_2(%arg0: i32, %arg1: i32, %arg2: i32) -> (i32, i32) {
    %c0_i32 = arith.constant 0 : i32
    %c0_i32_0 = arith.constant 0 : i32
    return %c0_i32, %arg1 : i32, i32
  }
  func.func @transform_3(%arg0: i32, %arg1: i32, %arg2: i32) -> (i32, i32) {
    %c0_i32 = arith.constant 0 : i32
    return %arg0, %arg1 : i32, i32
  }
}

module attributes {stable_mosaic.version = 11 : i64} {
  func.func @_attention_kernel(%arg0: i32, %arg1: memref<1x8x32xbf16, #tpu.memory_space<vmem>>, %arg2: memref<1x8x32xbf16, #tpu.memory_space<vmem>>, %arg3: memref<1x8x32xbf16, #tpu.memory_space<vmem>>, %arg4: memref<1x8x1xi32, #tpu.memory_space<vmem>>, %arg5: memref<1x1x8xi32, #tpu.memory_space<vmem>>, %arg6: memref<1x8x32xbf16, #tpu.memory_space<vmem>>) attributes {dimension_semantics = [#tpu.dimension_semantics<parallel>], iteration_bounds = array<i64: 2>, scalar_prefetch = 0 : i64, scratch_operands = 0 : i64, tpu.core_type = #tpu.core_type<tc>, window_params = [{transform_indices = @transform_0, window_bounds = array<i64: 1, 8, 32>}, {transform_indices = @transform_1, window_bounds = array<i64: 1, 8, 32>}, {transform_indices = @transform_2, window_bounds = array<i64: 1, 8, 32>}, {transform_indices = @transform_3, window_bounds = array<i64: 1, 8, 1>}, {transform_indices = @transform_4, window_bounds = array<i64: 1, 1, 8>}, {transform_indices = @transform_5, window_bounds = array<i64: 1, 8, 32>}]} {
    %c0 = arith.constant 0 : index
    %c0_0 = arith.constant 0 : index
    %c0_1 = arith.constant 0 : index
    %0 = vector.load %arg1[%c0, %c0_0, %c0_1] : memref<1x8x32xbf16, #tpu.memory_space<vmem>>, vector<1x8x32xbf16>
    %1 = vector.shape_cast %0 : vector<1x8x32xbf16> to vector<8x32xbf16>
    %c0_2 = arith.constant 0 : index
    %c0_3 = arith.constant 0 : index
    %c0_4 = arith.constant 0 : index
    %2 = vector.load %arg2[%c0_2, %c0_3, %c0_4] : memref<1x8x32xbf16, #tpu.memory_space<vmem>>, vector<1x8x32xbf16>
    %3 = vector.shape_cast %2 : vector<1x8x32xbf16> to vector<8x32xbf16>
    %c0_5 = arith.constant 0 : index
    %c0_6 = arith.constant 0 : index
    %c0_7 = arith.constant 0 : index
    %4 = vector.load %arg3[%c0_5, %c0_6, %c0_7] : memref<1x8x32xbf16, #tpu.memory_space<vmem>>, vector<1x8x32xbf16>
    %5 = vector.shape_cast %4 : vector<1x8x32xbf16> to vector<8x32xbf16>
    %c0_8 = arith.constant 0 : index
    %c0_9 = arith.constant 0 : index
    %c0_10 = arith.constant 0 : index
    %6 = vector.load %arg4[%c0_8, %c0_9, %c0_10] : memref<1x8x1xi32, #tpu.memory_space<vmem>>, vector<1x8x1xi32>
    %7 = vector.shape_cast %6 : vector<1x8x1xi32> to vector<8x1xi32>
    %c0_11 = arith.constant 0 : index
    %c0_12 = arith.constant 0 : index
    %c0_13 = arith.constant 0 : index
    %8 = vector.load %arg5[%c0_11, %c0_12, %c0_13] : memref<1x1x8xi32, #tpu.memory_space<vmem>>, vector<1x1x8xi32>
    %9 = vector.shape_cast %8 : vector<1x1x8xi32> to vector<1x8xi32>
    %10 = vector.broadcast %7 : vector<8x1xi32> to vector<8x8xi32>
    %11 = vector.broadcast %9 : vector<1x8xi32> to vector<8x8xi32>
    %12 = arith.muli %10, %11 : vector<8x8xi32>
    %c0_i32 = arith.constant 0 : i32
    %13 = vector.broadcast %c0_i32 : i32 to vector<8x8xi32>
    %14 = arith.cmpi sgt, %12, %13 : vector<8x8xi32>
    %15 = vector.extract_strided_slice %1 {offsets = [0, 0], sizes = [8, 8], strides = [1, 1]} : vector<8x32xbf16> to vector<8x8xbf16>
    %16 = vector.extract_strided_slice %3 {offsets = [0, 0], sizes = [8, 8], strides = [1, 1]} : vector<8x32xbf16> to vector<8x8xbf16>
    %17 = vector.extract_strided_slice %5 {offsets = [0, 0], sizes = [8, 8], strides = [1, 1]} : vector<8x32xbf16> to vector<8x8xbf16>
    %cst = arith.constant dense<0.000000e+00> : vector<8x8xf32>
    %18 = tpu.matmul %15, %16, %cst {dimension_numbers = #tpu.dot_dimension_numbers<[1], [1], [0], [0], [0, 0, 1, 0], [], []>} : vector<8x8xbf16>, vector<8x8xbf16>, vector<8x8xf32> -> vector<8x8xf32>
    %cst_14 = arith.constant 0.353553385 : f32
    %19 = vector.broadcast %cst_14 : f32 to vector<8x8xf32>
    %20 = arith.mulf %18, %19 : vector<8x8xf32>
    %cst_15 = arith.constant -1.000000e+09 : f32
    %21 = vector.broadcast %cst_15 : f32 to vector<8x8xf32>
    %22 = arith.select %14, %20, %21 : vector<8x8xi1>, vector<8x8xf32>
    %cst_16 = arith.constant dense<0xFF800000> : vector<8xf32>
    %23 = vector.multi_reduction <maximumf>, %22, %cst_16 [1] : vector<8x8xf32> to vector<8xf32>
    %24 = vector.shape_cast %23 : vector<8xf32> to vector<8x1xf32>
    %25 = vector.broadcast %24 : vector<8x1xf32> to vector<8x8xf32>
    %26 = arith.subf %22, %25 : vector<8x8xf32>
    %27 = math.exp %26 : vector<8x8xf32>
    %cst_17 = arith.constant dense<0.000000e+00> : vector<8xf32>
    %28 = vector.multi_reduction <add>, %27, %cst_17 [1] : vector<8x8xf32> to vector<8xf32>
    %29 = vector.shape_cast %28 : vector<8xf32> to vector<8x1xf32>
    %30 = tpu.reciprocal %29 {approx = true} : vector<8x1xf32> -> vector<8x1xf32>
    %31 = arith.truncf %27 : vector<8x8xf32> to vector<8x8xbf16>
    %cst_18 = arith.constant dense<0.000000e+00> : vector<8x8xf32>
    %32 = tpu.matmul %31, %17, %cst_18 {dimension_numbers = #tpu.dot_dimension_numbers<[1], [0], [0], [1], [0, 0, 1, 1], [], []>} : vector<8x8xbf16>, vector<8x8xbf16>, vector<8x8xf32> -> vector<8x8xf32>
    %33 = vector.broadcast %30 : vector<8x1xf32> to vector<8x8xf32>
    %34 = arith.mulf %32, %33 : vector<8x8xf32>
    %35 = vector.extract_strided_slice %1 {offsets = [0, 8], sizes = [8, 8], strides = [1, 1]} : vector<8x32xbf16> to vector<8x8xbf16>
    %36 = vector.extract_strided_slice %3 {offsets = [0, 8], sizes = [8, 8], strides = [1, 1]} : vector<8x32xbf16> to vector<8x8xbf16>
    %37 = vector.extract_strided_slice %5 {offsets = [0, 8], sizes = [8, 8], strides = [1, 1]} : vector<8x32xbf16> to vector<8x8xbf16>
    %cst_19 = arith.constant dense<0.000000e+00> : vector<8x8xf32>
    %38 = tpu.matmul %35, %36, %cst_19 {dimension_numbers = #tpu.dot_dimension_numbers<[1], [1], [0], [0], [0, 0, 1, 0], [], []>} : vector<8x8xbf16>, vector<8x8xbf16>, vector<8x8xf32> -> vector<8x8xf32>
    %cst_20 = arith.constant 0.353553385 : f32
    %39 = vector.broadcast %cst_20 : f32 to vector<8x8xf32>
    %40 = arith.mulf %38, %39 : vector<8x8xf32>
    %cst_21 = arith.constant -1.000000e+09 : f32
    %41 = vector.broadcast %cst_21 : f32 to vector<8x8xf32>
    %42 = arith.select %14, %40, %41 : vector<8x8xi1>, vector<8x8xf32>
    %cst_22 = arith.constant dense<0xFF800000> : vector<8xf32>
    %43 = vector.multi_reduction <maximumf>, %42, %cst_22 [1] : vector<8x8xf32> to vector<8xf32>
    %44 = vector.shape_cast %43 : vector<8xf32> to vector<8x1xf32>
    %45 = vector.broadcast %44 : vector<8x1xf32> to vector<8x8xf32>
    %46 = arith.subf %42, %45 : vector<8x8xf32>
    %47 = math.exp %46 : vector<8x8xf32>
    %cst_23 = arith.constant dense<0.000000e+00> : vector<8xf32>
    %48 = vector.multi_reduction <add>, %47, %cst_23 [1] : vector<8x8xf32> to vector<8xf32>
    %49 = vector.shape_cast %48 : vector<8xf32> to vector<8x1xf32>
    %50 = tpu.reciprocal %49 {approx = true} : vector<8x1xf32> -> vector<8x1xf32>
    %51 = arith.truncf %47 : vector<8x8xf32> to vector<8x8xbf16>
    %cst_24 = arith.constant dense<0.000000e+00> : vector<8x8xf32>
    %52 = tpu.matmul %51, %37, %cst_24 {dimension_numbers = #tpu.dot_dimension_numbers<[1], [0], [0], [1], [0, 0, 1, 1], [], []>} : vector<8x8xbf16>, vector<8x8xbf16>, vector<8x8xf32> -> vector<8x8xf32>
    %53 = vector.broadcast %50 : vector<8x1xf32> to vector<8x8xf32>
    %54 = arith.mulf %52, %53 : vector<8x8xf32>
    %55 = vector.extract_strided_slice %1 {offsets = [0, 16], sizes = [8, 8], strides = [1, 1]} : vector<8x32xbf16> to vector<8x8xbf16>
    %56 = vector.extract_strided_slice %3 {offsets = [0, 16], sizes = [8, 8], strides = [1, 1]} : vector<8x32xbf16> to vector<8x8xbf16>
    %57 = vector.extract_strided_slice %5 {offsets = [0, 16], sizes = [8, 8], strides = [1, 1]} : vector<8x32xbf16> to vector<8x8xbf16>
    %cst_25 = arith.constant dense<0.000000e+00> : vector<8x8xf32>
    %58 = tpu.matmul %55, %56, %cst_25 {dimension_numbers = #tpu.dot_dimension_numbers<[1], [1], [0], [0], [0, 0, 1, 0], [], []>} : vector<8x8xbf16>, vector<8x8xbf16>, vector<8x8xf32> -> vector<8x8xf32>
    %cst_26 = arith.constant 0.353553385 : f32
    %59 = vector.broadcast %cst_26 : f32 to vector<8x8xf32>
    %60 = arith.mulf %58, %59 : vector<8x8xf32>
    %cst_27 = arith.constant -1.000000e+09 : f32
    %61 = vector.broadcast %cst_27 : f32 to vector<8x8xf32>
    %62 = arith.select %14, %60, %61 : vector<8x8xi1>, vector<8x8xf32>
    %cst_28 = arith.constant dense<0xFF800000> : vector<8xf32>
    %63 = vector.multi_reduction <maximumf>, %62, %cst_28 [1] : vector<8x8xf32> to vector<8xf32>
    %64 = vector.shape_cast %63 : vector<8xf32> to vector<8x1xf32>
    %65 = vector.broadcast %64 : vector<8x1xf32> to vector<8x8xf32>
    %66 = arith.subf %62, %65 : vector<8x8xf32>
    %67 = math.exp %66 : vector<8x8xf32>
    %cst_29 = arith.constant dense<0.000000e+00> : vector<8xf32>
    %68 = vector.multi_reduction <add>, %67, %cst_29 [1] : vector<8x8xf32> to vector<8xf32>
    %69 = vector.shape_cast %68 : vector<8xf32> to vector<8x1xf32>
    %70 = tpu.reciprocal %69 {approx = true} : vector<8x1xf32> -> vector<8x1xf32>
    %71 = arith.truncf %67 : vector<8x8xf32> to vector<8x8xbf16>
    %cst_30 = arith.constant dense<0.000000e+00> : vector<8x8xf32>
    %72 = tpu.matmul %71, %57, %cst_30 {dimension_numbers = #tpu.dot_dimension_numbers<[1], [0], [0], [1], [0, 0, 1, 1], [], []>} : vector<8x8xbf16>, vector<8x8xbf16>, vector<8x8xf32> -> vector<8x8xf32>
    %73 = vector.broadcast %70 : vector<8x1xf32> to vector<8x8xf32>
    %74 = arith.mulf %72, %73 : vector<8x8xf32>
    %75 = vector.extract_strided_slice %1 {offsets = [0, 24], sizes = [8, 8], strides = [1, 1]} : vector<8x32xbf16> to vector<8x8xbf16>
    %76 = vector.extract_strided_slice %3 {offsets = [0, 24], sizes = [8, 8], strides = [1, 1]} : vector<8x32xbf16> to vector<8x8xbf16>
    %77 = vector.extract_strided_slice %5 {offsets = [0, 24], sizes = [8, 8], strides = [1, 1]} : vector<8x32xbf16> to vector<8x8xbf16>
    %cst_31 = arith.constant dense<0.000000e+00> : vector<8x8xf32>
    %78 = tpu.matmul %75, %76, %cst_31 {dimension_numbers = #tpu.dot_dimension_numbers<[1], [1], [0], [0], [0, 0, 1, 0], [], []>} : vector<8x8xbf16>, vector<8x8xbf16>, vector<8x8xf32> -> vector<8x8xf32>
    %cst_32 = arith.constant 0.353553385 : f32
    %79 = vector.broadcast %cst_32 : f32 to vector<8x8xf32>
    %80 = arith.mulf %78, %79 : vector<8x8xf32>
    %cst_33 = arith.constant -1.000000e+09 : f32
    %81 = vector.broadcast %cst_33 : f32 to vector<8x8xf32>
    %82 = arith.select %14, %80, %81 : vector<8x8xi1>, vector<8x8xf32>
    %cst_34 = arith.constant dense<0xFF800000> : vector<8xf32>
    %83 = vector.multi_reduction <maximumf>, %82, %cst_34 [1] : vector<8x8xf32> to vector<8xf32>
    %84 = vector.shape_cast %83 : vector<8xf32> to vector<8x1xf32>
    %85 = vector.broadcast %84 : vector<8x1xf32> to vector<8x8xf32>
    %86 = arith.subf %82, %85 : vector<8x8xf32>
    %87 = math.exp %86 : vector<8x8xf32>
    %cst_35 = arith.constant dense<0.000000e+00> : vector<8xf32>
    %88 = vector.multi_reduction <add>, %87, %cst_35 [1] : vector<8x8xf32> to vector<8xf32>
    %89 = vector.shape_cast %88 : vector<8xf32> to vector<8x1xf32>
    %90 = tpu.reciprocal %89 {approx = true} : vector<8x1xf32> -> vector<8x1xf32>
    %91 = arith.truncf %87 : vector<8x8xf32> to vector<8x8xbf16>
    %cst_36 = arith.constant dense<0.000000e+00> : vector<8x8xf32>
    %92 = tpu.matmul %91, %77, %cst_36 {dimension_numbers = #tpu.dot_dimension_numbers<[1], [0], [0], [1], [0, 0, 1, 1], [], []>} : vector<8x8xbf16>, vector<8x8xbf16>, vector<8x8xf32> -> vector<8x8xf32>
    %93 = vector.broadcast %90 : vector<8x1xf32> to vector<8x8xf32>
    %94 = arith.mulf %92, %93 : vector<8x8xf32>
    %95 = tpu.concatenate %34, %54, %74, %94 in 1 : vector<8x8xf32>, vector<8x8xf32>, vector<8x8xf32>, vector<8x8xf32> -> vector<8x32xf32>
    %96 = arith.truncf %95 : vector<8x32xf32> to vector<8x32xbf16>
    %c0_37 = arith.constant 0 : index
    %c0_38 = arith.constant 0 : index
    %c0_39 = arith.constant 0 : index
    %97 = vector.load %arg6[%c0_37, %c0_38, %c0_39] : memref<1x8x32xbf16, #tpu.memory_space<vmem>>, vector<1x8x32xbf16>
    %98 = vector.shape_cast %97 : vector<1x8x32xbf16> to vector<8x32xbf16>
    %99 = vector.shape_cast %96 : vector<8x32xbf16> to vector<1x8x32xbf16>
    tpu.vector_store %arg6[%c0_37, %c0_38, %c0_39], %99 {strides = array<i32>} : memref<1x8x32xbf16, #tpu.memory_space<vmem>>, vector<1x8x32xbf16>,
    return
  }
  func.func @transform_0(%arg0: i32) -> (i32, i32, i32) {
    %c0_i32 = arith.constant 0 : i32
    %c0_i32_0 = arith.constant 0 : i32
    %c0_i32_1 = arith.constant 0 : i32
    return %arg0, %c0_i32, %c0_i32_0 : i32, i32, i32
  }
  func.func @transform_1(%arg0: i32) -> (i32, i32, i32) {
    %c0_i32 = arith.constant 0 : i32
    %c0_i32_0 = arith.constant 0 : i32
    %c0_i32_1 = arith.constant 0 : i32
    return %arg0, %c0_i32, %c0_i32_0 : i32, i32, i32
  }
  func.func @transform_2(%arg0: i32) -> (i32, i32, i32) {
    %c0_i32 = arith.constant 0 : i32
    %c0_i32_0 = arith.constant 0 : i32
    %c0_i32_1 = arith.constant 0 : i32
    return %arg0, %c0_i32, %c0_i32_0 : i32, i32, i32
  }
  func.func @transform_3(%arg0: i32) -> (i32, i32, i32) {
    %c0_i32 = arith.constant 0 : i32
    %c0_i32_0 = arith.constant 0 : i32
    %c0_i32_1 = arith.constant 0 : i32
    return %arg0, %c0_i32, %c0_i32_0 : i32, i32, i32
  }
  func.func @transform_4(%arg0: i32) -> (i32, i32, i32) {
    %c0_i32 = arith.constant 0 : i32
    %c0_i32_0 = arith.constant 0 : i32
    %c0_i32_1 = arith.constant 0 : i32
    return %arg0, %c0_i32, %c0_i32_0 : i32, i32, i32
  }
  func.func @transform_5(%arg0: i32) -> (i32, i32, i32) {
    %c0_i32 = arith.constant 0 : i32
    %c0_i32_0 = arith.constant 0 : i32
    %c0_i32_1 = arith.constant 0 : i32
    return %arg0, %c0_i32, %c0_i32_0 : i32, i32, i32
  }
}

module attributes {stable_mosaic.version = 11 : i64} {
  func.func @_add_layernorm_kernel(%arg0: i32, %arg1: memref<16x32xbf16, #tpu.memory_space<vmem>>, %arg2: memref<16x32xbf16, #tpu.memory_space<vmem>>, %arg3: memref<1x32xf32, #tpu.memory_space<vmem>>, %arg4: memref<1x32xf32, #tpu.memory_space<vmem>>, %arg5: memref<16x32xbf16, #tpu.memory_space<vmem>>) attributes {dimension_semantics = [#tpu.dimension_semantics<parallel>], iteration_bounds = array<i64: 1>, scalar_prefetch = 0 : i64, scratch_operands = 0 : i64, tpu.core_type = #tpu.core_type<tc>, window_params = [{transform_indices = @transform_0, window_bounds = array<i64: 16, 32>}, {transform_indices = @transform_1, window_bounds = array<i64: 16, 32>}, {pipeline_mode = #tpu.pipeline_mode<synchronous>, transform_indices = @transform_2, window_bounds = array<i64: 1, 32>}, {pipeline_mode = #tpu.pipeline_mode<synchronous>, transform_indices = @transform_3, window_bounds = array<i64: 1, 32>}, {transform_indices = @transform_4, window_bounds = array<i64: 16, 32>}]} {
    %c0 = arith.constant 0 : index
    %c0_0 = arith.constant 0 : index
    %0 = vector.load %arg1[%c0, %c0_0] : memref<16x32xbf16, #tpu.memory_space<vmem>>, vector<16x32xbf16>
    %1 = arith.extf %0 : vector<16x32xbf16> to vector<16x32xf32>
    %c0_1 = arith.constant 0 : index
    %c0_2 = arith.constant 0 : index
    %2 = vector.load %arg2[%c0_1, %c0_2] : memref<16x32xbf16, #tpu.memory_space<vmem>>, vector<16x32xbf16>
    %3 = arith.extf %2 : vector<16x32xbf16> to vector<16x32xf32>
    %4 = arith.addf %1, %3 : vector<16x32xf32>
    %cst = arith.constant dense<0.000000e+00> : vector<16xf32>
    %5 = vector.multi_reduction <add>, %4, %cst [1] : vector<16x32xf32> to vector<16xf32>
    %6 = vector.shape_cast %5 : vector<16xf32> to vector<16x1xf32>
    %cst_3 = arith.constant 3.200000e+01 : f32
    %7 = vector.broadcast %cst_3 : f32 to vector<16x1xf32>
    %8 = arith.divf %6, %7 : vector<16x1xf32>
    %9 = vector.broadcast %8 : vector<16x1xf32> to vector<16x32xf32>
    %10 = arith.subf %4, %9 : vector<16x32xf32>
    %11 = arith.mulf %10, %10 : vector<16x32xf32>
    %cst_4 = arith.constant dense<0.000000e+00> : vector<16xf32>
    %12 = vector.multi_reduction <add>, %11, %cst_4 [1] : vector<16x32xf32> to vector<16xf32>
    %13 = vector.shape_cast %12 : vector<16xf32> to vector<16x1xf32>
    %cst_5 = arith.constant 3.200000e+01 : f32
    %14 = vector.broadcast %cst_5 : f32 to vector<16x1xf32>
    %15 = arith.divf %13, %14 : vector<16x1xf32>
    %16 = vector.broadcast %8 : vector<16x1xf32> to vector<16x32xf32>
    %17 = arith.subf %4, %16 : vector<16x32xf32>
    %cst_6 = arith.constant 9.99999974E-6 : f32
    %18 = vector.broadcast %cst_6 : f32 to vector<16x1xf32>
    %19 = arith.addf %15, %18 : vector<16x1xf32>
    %20 = math.rsqrt %19 : vector<16x1xf32>
    %21 = vector.broadcast %20 : vector<16x1xf32> to vector<16x32xf32>
    %22 = arith.mulf %17, %21 : vector<16x32xf32>
    %c0_7 = arith.constant 0 : index
    %c0_8 = arith.constant 0 : index
    %23 = vector.load %arg3[%c0_7, %c0_8] : memref<1x32xf32, #tpu.memory_space<vmem>>, vector<1x32xf32>
    %24 = vector.broadcast %23 : vector<1x32xf32> to vector<16x32xf32>
    %25 = arith.mulf %22, %24 : vector<16x32xf32>
    %c0_9 = arith.constant 0 : index
    %c0_10 = arith.constant 0 : index
    %26 = vector.load %arg4[%c0_9, %c0_10] : memref<1x32xf32, #tpu.memory_space<vmem>>, vector<1x32xf32>
    %27 = vector.broadcast %26 : vector<1x32xf32> to vector<16x32xf32>
    %28 = arith.addf %25, %27 : vector<16x32xf32>
    %29 = arith.truncf %28 : vector<16x32xf32> to vector<16x32xbf16>
    %c0_11 = arith.constant 0 : index
    %c0_12 = arith.constant 0 : index
    %30 = vector.load %arg5[%c0_11, %c0_12] : memref<16x32xbf16, #tpu.memory_space<vmem>>, vector<16x32xbf16>
    tpu.vector_store %arg5[%c0_11, %c0_12], %29 {strides = array<i32>} : memref<16x32xbf16, #tpu.memory_space<vmem>>, vector<16x32xbf16>,
    return
  }
  func.func @transform_0(%arg0: i32) -> (i32, i32) {
    %c0_i32 = arith.constant 0 : i32
    %c0_i32_0 = arith.constant 0 : i32
    return %arg0, %c0_i32 : i32, i32
  }
  func.func @transform_1(%arg0: i32) -> (i32, i32) {
    %c0_i32 = arith.constant 0 : i32
    %c0_i32_0 = arith.constant 0 : i32
    return %arg0, %c0_i32 : i32, i32
  }
  func.func @transform_2(%arg0: i32) -> (i32, i32) {
    %c0_i32 = arith.constant 0 : i32
    %c0_i32_0 = arith.constant 0 : i32
    %c0_i32_1 = arith.constant 0 : i32
    return %c0_i32, %c0_i32_0 : i32, i32
  }
  func.func @transform_3(%arg0: i32) -> (i32, i32) {
    %c0_i32 = arith.constant 0 : i32
    %c0_i32_0 = arith.constant 0 : i32
    %c0_i32_1 = arith.constant 0 : i32
    return %c0_i32, %c0_i32_0 : i32, i32
  }
  func.func @transform_4(%arg0: i32) -> (i32, i32) {
    %c0_i32 = arith.constant 0 : i32
    %c0_i32_0 = arith.constant 0 : i32
    return %arg0, %c0_i32 : i32, i32
  }
}

module attributes {stable_mosaic.version = 11 : i64} {
  func.func @_matmul_kernel(%arg0: i32, %arg1: i32, %arg2: i32, %arg3: memref<16x32xbf16, #tpu.memory_space<vmem>>, %arg4: memref<32x128xbf16, #tpu.memory_space<vmem>>, %arg5: memref<1x128xf32, #tpu.memory_space<vmem>>, %arg6: memref<16x128xbf16, #tpu.memory_space<vmem>>, %arg7: memref<16x128xf32, #tpu.memory_space<vmem>>) attributes {dimension_semantics = [#tpu.dimension_semantics<parallel>, #tpu.dimension_semantics<parallel>, #tpu.dimension_semantics<arbitrary>], iteration_bounds = array<i64: 1, 1, 1>, scalar_prefetch = 0 : i64, scratch_operands = 1 : i64, tpu.core_type = #tpu.core_type<tc>, window_params = [{transform_indices = @transform_0, window_bounds = array<i64: 16, 32>}, {transform_indices = @transform_1, window_bounds = array<i64: 32, 128>}, {transform_indices = @transform_2, window_bounds = array<i64: 1, 128>}, {transform_indices = @transform_3, window_bounds = array<i64: 16, 128>}]} {
    %c0_i32 = arith.constant 0 : i32
    %0 = arith.cmpi eq, %arg2, %c0_i32 : i32
    %1 = arith.extui %0 : i1 to i32
    %c0_i32_0 = arith.constant 0 : i32
    %2 = arith.cmpi ne, %1, %c0_i32_0 : i32
    scf.if %2 {
      %cst_10 = arith.constant 0.000000e+00 : f32
      %12 = vector.broadcast %cst_10 : f32 to vector<16x128xf32>
      %c0_11 = arith.constant 0 : index
      %c0_12 = arith.constant 0 : index
      %13 = vector.load %arg7[%c0_11, %c0_12] : memref<16x128xf32, #tpu.memory_space<vmem>>, vector<16x128xf32>
      tpu.vector_store %arg7[%c0_11, %c0_12], %12 {strides = array<i32>} : memref<16x128xf32, #tpu.memory_space<vmem>>, vector<16x128xf32>,
    } else {
    }
    %c0 = arith.constant 0 : index
    %c0_1 = arith.constant 0 : index
    %3 = vector.load %arg7[%c0, %c0_1] : memref<16x128xf32, #tpu.memory_space<vmem>>, vector<16x128xf32>
    %c0_2 = arith.constant 0 : index
    %c0_3 = arith.constant 0 : index
    %4 = vector.load %arg3[%c0_2, %c0_3] : memref<16x32xbf16, #tpu.memory_space<vmem>>, vector<16x32xbf16>
    %c0_4 = arith.constant 0 : index
    %c0_5 = arith.constant 0 : index
    %5 = vector.load %arg4[%c0_4, %c0_5] : memref<32x128xbf16, #tpu.memory_space<vmem>>, vector<32x128xbf16>
    %cst = arith.constant dense<0.000000e+00> : vector<16x128xf32>
    %6 = tpu.matmul %4, %5, %cst {dimension_numbers = #tpu.dot_dimension_numbers<[1], [0], [0], [1], [0, 0, 1, 1], [], []>} : vector<16x32xbf16>, vector<32x128xbf16>, vector<16x128xf32> -> vector<16x128xf32>
    %7 = arith.addf %3, %6 : vector<16x128xf32>
    %c0_6 = arith.constant 0 : index
    %c0_7 = arith.constant 0 : index
    %8 = vector.load %arg7[%c0_6, %c0_7] : memref<16x128xf32, #tpu.memory_space<vmem>>, vector<16x128xf32>
    tpu.vector_store %arg7[%c0_6, %c0_7], %7 {strides = array<i32>} : memref<16x128xf32, #tpu.memory_space<vmem>>, vector<16x128xf32>,
    %c0_i32_8 = arith.constant 0 : i32
    %9 = arith.cmpi eq, %arg2, %c0_i32_8 : i32
    %10 = arith.extui %9 : i1 to i32
    %c0_i32_9 = arith.constant 0 : i32
    %11 = arith.cmpi ne, %10, %c0_i32_9 : i32
    scf.if %11 {
      %c0_10 = arith.constant 0 : index
      %c0_11 = arith.constant 0 : index
      %12 = vector.load %arg7[%c0_10, %c0_11] : memref<16x128xf32, #tpu.memory_space<vmem>>, vector<16x128xf32>
      %c0_12 = arith.constant 0 : index
      %c0_13 = arith.constant 0 : index
      %13 = vector.load %arg5[%c0_12, %c0_13] : memref<1x128xf32, #tpu.memory_space<vmem>>, vector<1x128xf32>
      %14 = vector.broadcast %13 : vector<1x128xf32> to vector<16x128xf32>
      %15 = arith.addf %12, %14 : vector<16x128xf32>
      %cst_14 = arith.constant 0.000000e+00 : f32
      %16 = vector.broadcast %cst_14 : f32 to vector<16x128xf32>
      %17 = arith.maximumf %15, %16 : vector<16x128xf32>
      %18 = arith.truncf %17 : vector<16x128xf32> to vector<16x128xbf16>
      %c0_15 = arith.constant 0 : index
      %c0_16 = arith.constant 0 : index
      %19 = vector.load %arg6[%c0_15, %c0_16] : memref<16x128xbf16, #tpu.memory_space<vmem>>, vector<16x128xbf16>
      tpu.vector_store %arg6[%c0_15, %c0_16], %18 {strides = array<i32>} : memref<16x128xbf16, #tpu.memory_space<vmem>>, vector<16x128xbf16>,
    } else {
    }
    return
  }
  func.func @transform_0(%arg0: i32, %arg1: i32, %arg2: i32) -> (i32, i32) {
    %c0_i32 = arith.constant 0 : i32
    return %arg0, %arg2 : i32, i32
  }
  func.func @transform_1(%arg0: i32, %arg1: i32, %arg2: i32) -> (i32, i32) {
    %c0_i32 = arith.constant 0 : i32
    return %arg2, %arg1 : i32, i32
  }
  func.func @transform_2(%arg0: i32, %arg1: i32, %arg2: i32) -> (i32, i32) {
    %c0_i32 = arith.constant 0 : i32
    %c0_i32_0 = arith.constant 0 : i32
    return %c0_i32, %arg1 : i32, i32
  }
  func.func @transform_3(%arg0: i32, %arg1: i32, %arg2: i32) -> (i32, i32) {
    %c0_i32 = arith.constant 0 : i32
    return %arg0, %arg1 : i32, i32
  }
}

module attributes {stable_mosaic.version = 11 : i64} {
  func.func @_matmul_kernel(%arg0: i32, %arg1: i32, %arg2: i32, %arg3: memref<16x64xbf16, #tpu.memory_space<vmem>>, %arg4: memref<64x128xbf16, #tpu.memory_space<vmem>>, %arg5: memref<1x128xf32, #tpu.memory_space<vmem>>, %arg6: memref<16x128xbf16, #tpu.memory_space<vmem>>, %arg7: memref<16x128xf32, #tpu.memory_space<vmem>>) attributes {dimension_semantics = [#tpu.dimension_semantics<parallel>, #tpu.dimension_semantics<parallel>, #tpu.dimension_semantics<arbitrary>], iteration_bounds = array<i64: 1, 1, 1>, scalar_prefetch = 0 : i64, scratch_operands = 1 : i64, tpu.core_type = #tpu.core_type<tc>, window_params = [{transform_indices = @transform_0, window_bounds = array<i64: 16, 64>}, {transform_indices = @transform_1, window_bounds = array<i64: 64, 128>}, {transform_indices = @transform_2, window_bounds = array<i64: 1, 128>}, {transform_indices = @transform_3, window_bounds = array<i64: 16, 128>}]} {
    %c0_i32 = arith.constant 0 : i32
    %0 = arith.cmpi eq, %arg2, %c0_i32 : i32
    %1 = arith.extui %0 : i1 to i32
    %c0_i32_0 = arith.constant 0 : i32
    %2 = arith.cmpi ne, %1, %c0_i32_0 : i32
    scf.if %2 {
      %cst_10 = arith.constant 0.000000e+00 : f32
      %12 = vector.broadcast %cst_10 : f32 to vector<16x128xf32>
      %c0_11 = arith.constant 0 : index
      %c0_12 = arith.constant 0 : index
      %13 = vector.load %arg7[%c0_11, %c0_12] : memref<16x128xf32, #tpu.memory_space<vmem>>, vector<16x128xf32>
      tpu.vector_store %arg7[%c0_11, %c0_12], %12 {strides = array<i32>} : memref<16x128xf32, #tpu.memory_space<vmem>>, vector<16x128xf32>,
    } else {
    }
    %c0 = arith.constant 0 : index
    %c0_1 = arith.constant 0 : index
    %3 = vector.load %arg7[%c0, %c0_1] : memref<16x128xf32, #tpu.memory_space<vmem>>, vector<16x128xf32>
    %c0_2 = arith.constant 0 : index
    %c0_3 = arith.constant 0 : index
    %4 = vector.load %arg3[%c0_2, %c0_3] : memref<16x64xbf16, #tpu.memory_space<vmem>>, vector<16x64xbf16>
    %c0_4 = arith.constant 0 : index
    %c0_5 = arith.constant 0 : index
    %5 = vector.load %arg4[%c0_4, %c0_5] : memref<64x128xbf16, #tpu.memory_space<vmem>>, vector<64x128xbf16>
    %cst = arith.constant dense<0.000000e+00> : vector<16x128xf32>
    %6 = tpu.matmul %4, %5, %cst {dimension_numbers = #tpu.dot_dimension_numbers<[1], [0], [0], [1], [0, 0, 1, 1], [], []>} : vector<16x64xbf16>, vector<64x128xbf16>, vector<16x128xf32> -> vector<16x128xf32>
    %7 = arith.addf %3, %6 : vector<16x128xf32>
    %c0_6 = arith.constant 0 : index
    %c0_7 = arith.constant 0 : index
    %8 = vector.load %arg7[%c0_6, %c0_7] : memref<16x128xf32, #tpu.memory_space<vmem>>, vector<16x128xf32>
    tpu.vector_store %arg7[%c0_6, %c0_7], %7 {strides = array<i32>} : memref<16x128xf32, #tpu.memory_space<vmem>>, vector<16x128xf32>,
    %c0_i32_8 = arith.constant 0 : i32
    %9 = arith.cmpi eq, %arg2, %c0_i32_8 : i32
    %10 = arith.extui %9 : i1 to i32
    %c0_i32_9 = arith.constant 0 : i32
    %11 = arith.cmpi ne, %10, %c0_i32_9 : i32
    scf.if %11 {
      %c0_10 = arith.constant 0 : index
      %c0_11 = arith.constant 0 : index
      %12 = vector.load %arg7[%c0_10, %c0_11] : memref<16x128xf32, #tpu.memory_space<vmem>>, vector<16x128xf32>
      %c0_12 = arith.constant 0 : index
      %c0_13 = arith.constant 0 : index
      %13 = vector.load %arg5[%c0_12, %c0_13] : memref<1x128xf32, #tpu.memory_space<vmem>>, vector<1x128xf32>
      %14 = vector.broadcast %13 : vector<1x128xf32> to vector<16x128xf32>
      %15 = arith.addf %12, %14 : vector<16x128xf32>
      %16 = arith.truncf %15 : vector<16x128xf32> to vector<16x128xbf16>
      %c0_14 = arith.constant 0 : index
      %c0_15 = arith.constant 0 : index
      %17 = vector.load %arg6[%c0_14, %c0_15] : memref<16x128xbf16, #tpu.memory_space<vmem>>, vector<16x128xbf16>
      tpu.vector_store %arg6[%c0_14, %c0_15], %16 {strides = array<i32>} : memref<16x128xbf16, #tpu.memory_space<vmem>>, vector<16x128xbf16>,
    } else {
    }
    return
  }
  func.func @transform_0(%arg0: i32, %arg1: i32, %arg2: i32) -> (i32, i32) {
    %c0_i32 = arith.constant 0 : i32
    return %arg0, %arg2 : i32, i32
  }
  func.func @transform_1(%arg0: i32, %arg1: i32, %arg2: i32) -> (i32, i32) {
    %c0_i32 = arith.constant 0 : i32
    return %arg2, %arg1 : i32, i32
  }
  func.func @transform_2(%arg0: i32, %arg1: i32, %arg2: i32) -> (i32, i32) {
    %c0_i32 = arith.constant 0 : i32
    %c0_i32_0 = arith.constant 0 : i32
    return %c0_i32, %arg1 : i32, i32
  }
  func.func @transform_3(%arg0: i32, %arg1: i32, %arg2: i32) -> (i32, i32) {
    %c0_i32 = arith.constant 0 : i32
    return %arg0, %arg1 : i32, i32
  }
}

module attributes {stable_mosaic.version = 11 : i64} {
  func.func @_attention_kernel(%arg0: i32, %arg1: memref<1x8x32xbf16, #tpu.memory_space<vmem>>, %arg2: memref<1x8x32xbf16, #tpu.memory_space<vmem>>, %arg3: memref<1x8x32xbf16, #tpu.memory_space<vmem>>, %arg4: memref<1x8x1xi32, #tpu.memory_space<vmem>>, %arg5: memref<1x1x8xi32, #tpu.memory_space<vmem>>, %arg6: memref<1x8x32xbf16, #tpu.memory_space<vmem>>) attributes {dimension_semantics = [#tpu.dimension_semantics<parallel>], iteration_bounds = array<i64: 2>, scalar_prefetch = 0 : i64, scratch_operands = 0 : i64, tpu.core_type = #tpu.core_type<tc>, window_params = [{transform_indices = @transform_0, window_bounds = array<i64: 1, 8, 32>}, {transform_indices = @transform_1, window_bounds = array<i64: 1, 8, 32>}, {transform_indices = @transform_2, window_bounds = array<i64: 1, 8, 32>}, {transform_indices = @transform_3, window_bounds = array<i64: 1, 8, 1>}, {transform_indices = @transform_4, window_bounds = array<i64: 1, 1, 8>}, {transform_indices = @transform_5, window_bounds = array<i64: 1, 8, 32>}]} {
    %c0 = arith.constant 0 : index
    %c0_0 = arith.constant 0 : index
    %c0_1 = arith.constant 0 : index
    %0 = vector.load %arg1[%c0, %c0_0, %c0_1] : memref<1x8x32xbf16, #tpu.memory_space<vmem>>, vector<1x8x32xbf16>
    %1 = vector.shape_cast %0 : vector<1x8x32xbf16> to vector<8x32xbf16>
    %c0_2 = arith.constant 0 : index
    %c0_3 = arith.constant 0 : index
    %c0_4 = arith.constant 0 : index
    %2 = vector.load %arg2[%c0_2, %c0_3, %c0_4] : memref<1x8x32xbf16, #tpu.memory_space<vmem>>, vector<1x8x32xbf16>
    %3 = vector.shape_cast %2 : vector<1x8x32xbf16> to vector<8x32xbf16>
    %c0_5 = arith.constant 0 : index
    %c0_6 = arith.constant 0 : index
    %c0_7 = arith.constant 0 : index
    %4 = vector.load %arg3[%c0_5, %c0_6, %c0_7] : memref<1x8x32xbf16, #tpu.memory_space<vmem>>, vector<1x8x32xbf16>
    %5 = vector.shape_cast %4 : vector<1x8x32xbf16> to vector<8x32xbf16>
    %c0_8 = arith.constant 0 : index
    %c0_9 = arith.constant 0 : index
    %c0_10 = arith.constant 0 : index
    %6 = vector.load %arg4[%c0_8, %c0_9, %c0_10] : memref<1x8x1xi32, #tpu.memory_space<vmem>>, vector<1x8x1xi32>
    %7 = vector.shape_cast %6 : vector<1x8x1xi32> to vector<8x1xi32>
    %c0_11 = arith.constant 0 : index
    %c0_12 = arith.constant 0 : index
    %c0_13 = arith.constant 0 : index
    %8 = vector.load %arg5[%c0_11, %c0_12, %c0_13] : memref<1x1x8xi32, #tpu.memory_space<vmem>>, vector<1x1x8xi32>
    %9 = vector.shape_cast %8 : vector<1x1x8xi32> to vector<1x8xi32>
    %10 = vector.broadcast %7 : vector<8x1xi32> to vector<8x8xi32>
    %11 = vector.broadcast %9 : vector<1x8xi32> to vector<8x8xi32>
    %12 = arith.muli %10, %11 : vector<8x8xi32>
    %c0_i32 = arith.constant 0 : i32
    %13 = vector.broadcast %c0_i32 : i32 to vector<8x8xi32>
    %14 = arith.cmpi sgt, %12, %13 : vector<8x8xi32>
    %15 = tpu.iota {dimensions = array<i32: 0>} : vector<8x8xi32>
    %16 = tpu.iota {dimensions = array<i32: 1>} : vector<8x8xi32>
    %17 = arith.cmpi sge, %15, %16 : vector<8x8xi32>
    %18 = arith.andi %14, %17 : vector<8x8xi1>
    %19 = vector.extract_strided_slice %1 {offsets = [0, 0], sizes = [8, 8], strides = [1, 1]} : vector<8x32xbf16> to vector<8x8xbf16>
    %20 = vector.extract_strided_slice %3 {offsets = [0, 0], sizes = [8, 8], strides = [1, 1]} : vector<8x32xbf16> to vector<8x8xbf16>
    %21 = vector.extract_strided_slice %5 {offsets = [0, 0], sizes = [8, 8], strides = [1, 1]} : vector<8x32xbf16> to vector<8x8xbf16>
    %cst = arith.constant dense<0.000000e+00> : vector<8x8xf32>
    %22 = tpu.matmul %19, %20, %cst {dimension_numbers = #tpu.dot_dimension_numbers<[1], [1], [0], [0], [0, 0, 1, 0], [], []>} : vector<8x8xbf16>, vector<8x8xbf16>, vector<8x8xf32> -> vector<8x8xf32>
    %cst_14 = arith.constant 0.353553385 : f32
    %23 = vector.broadcast %cst_14 : f32 to vector<8x8xf32>
    %24 = arith.mulf %22, %23 : vector<8x8xf32>
    %cst_15 = arith.constant -1.000000e+09 : f32
    %25 = vector.broadcast %cst_15 : f32 to vector<8x8xf32>
    %26 = arith.select %18, %24, %25 : vector<8x8xi1>, vector<8x8xf32>
    %cst_16 = arith.constant dense<0xFF800000> : vector<8xf32>
    %27 = vector.multi_reduction <maximumf>, %26, %cst_16 [1] : vector<8x8xf32> to vector<8xf32>
    %28 = vector.shape_cast %27 : vector<8xf32> to vector<8x1xf32>
    %29 = vector.broadcast %28 : vector<8x1xf32> to vector<8x8xf32>
    %30 = arith.subf %26, %29 : vector<8x8xf32>
    %31 = math.exp %30 : vector<8x8xf32>
    %cst_17 = arith.constant dense<0.000000e+00> : vector<8xf32>
    %32 = vector.multi_reduction <add>, %31, %cst_17 [1] : vector<8x8xf32> to vector<8xf32>
    %33 = vector.shape_cast %32 : vector<8xf32> to vector<8x1xf32>
    %34 = tpu.reciprocal %33 {approx = true} : vector<8x1xf32> -> vector<8x1xf32>
    %35 = arith.truncf %31 : vector<8x8xf32> to vector<8x8xbf16>
    %cst_18 = arith.constant dense<0.000000e+00> : vector<8x8xf32>
    %36 = tpu.matmul %35, %21, %cst_18 {dimension_numbers = #tpu.dot_dimension_numbers<[1], [0], [0], [1], [0, 0, 1, 1], [], []>} : vector<8x8xbf16>, vector<8x8xbf16>, vector<8x8xf32> -> vector<8x8xf32>
    %37 = vector.broadcast %34 : vector<8x1xf32> to vector<8x8xf32>
    %38 = arith.mulf %36, %37 : vector<8x8xf32>
    %39 = vector.extract_strided_slice %1 {offsets = [0, 8], sizes = [8, 8], strides = [1, 1]} : vector<8x32xbf16> to vector<8x8xbf16>
    %40 = vector.extract_strided_slice %3 {offsets = [0, 8], sizes = [8, 8], strides = [1, 1]} : vector<8x32xbf16> to vector<8x8xbf16>
    %41 = vector.extract_strided_slice %5 {offsets = [0, 8], sizes = [8, 8], strides = [1, 1]} : vector<8x32xbf16> to vector<8x8xbf16>
    %cst_19 = arith.constant dense<0.000000e+00> : vector<8x8xf32>
    %42 = tpu.matmul %39, %40, %cst_19 {dimension_numbers = #tpu.dot_dimension_numbers<[1], [1], [0], [0], [0, 0, 1, 0], [], []>} : vector<8x8xbf16>, vector<8x8xbf16>, vector<8x8xf32> -> vector<8x8xf32>
    %cst_20 = arith.constant 0.353553385 : f32
    %43 = vector.broadcast %cst_20 : f32 to vector<8x8xf32>
    %44 = arith.mulf %42, %43 : vector<8x8xf32>
    %cst_21 = arith.constant -1.000000e+09 : f32
    %45 = vector.broadcast %cst_21 : f32 to vector<8x8xf32>
    %46 = arith.select %18, %44, %45 : vector<8x8xi1>, vector<8x8xf32>
    %cst_22 = arith.constant dense<0xFF800000> : vector<8xf32>
    %47 = vector.multi_reduction <maximumf>, %46, %cst_22 [1] : vector<8x8xf32> to vector<8xf32>
    %48 = vector.shape_cast %47 : vector<8xf32> to vector<8x1xf32>
    %49 = vector.broadcast %48 : vector<8x1xf32> to vector<8x8xf32>
    %50 = arith.subf %46, %49 : vector<8x8xf32>
    %51 = math.exp %50 : vector<8x8xf32>
    %cst_23 = arith.constant dense<0.000000e+00> : vector<8xf32>
    %52 = vector.multi_reduction <add>, %51, %cst_23 [1] : vector<8x8xf32> to vector<8xf32>
    %53 = vector.shape_cast %52 : vector<8xf32> to vector<8x1xf32>
    %54 = tpu.reciprocal %53 {approx = true} : vector<8x1xf32> -> vector<8x1xf32>
    %55 = arith.truncf %51 : vector<8x8xf32> to vector<8x8xbf16>
    %cst_24 = arith.constant dense<0.000000e+00> : vector<8x8xf32>
    %56 = tpu.matmul %55, %41, %cst_24 {dimension_numbers = #tpu.dot_dimension_numbers<[1], [0], [0], [1], [0, 0, 1, 1], [], []>} : vector<8x8xbf16>, vector<8x8xbf16>, vector<8x8xf32> -> vector<8x8xf32>
    %57 = vector.broadcast %54 : vector<8x1xf32> to vector<8x8xf32>
    %58 = arith.mulf %56, %57 : vector<8x8xf32>
    %59 = vector.extract_strided_slice %1 {offsets = [0, 16], sizes = [8, 8], strides = [1, 1]} : vector<8x32xbf16> to vector<8x8xbf16>
    %60 = vector.extract_strided_slice %3 {offsets = [0, 16], sizes = [8, 8], strides = [1, 1]} : vector<8x32xbf16> to vector<8x8xbf16>
    %61 = vector.extract_strided_slice %5 {offsets = [0, 16], sizes = [8, 8], strides = [1, 1]} : vector<8x32xbf16> to vector<8x8xbf16>
    %cst_25 = arith.constant dense<0.000000e+00> : vector<8x8xf32>
    %62 = tpu.matmul %59, %60, %cst_25 {dimension_numbers = #tpu.dot_dimension_numbers<[1], [1], [0], [0], [0, 0, 1, 0], [], []>} : vector<8x8xbf16>, vector<8x8xbf16>, vector<8x8xf32> -> vector<8x8xf32>
    %cst_26 = arith.constant 0.353553385 : f32
    %63 = vector.broadcast %cst_26 : f32 to vector<8x8xf32>
    %64 = arith.mulf %62, %63 : vector<8x8xf32>
    %cst_27 = arith.constant -1.000000e+09 : f32
    %65 = vector.broadcast %cst_27 : f32 to vector<8x8xf32>
    %66 = arith.select %18, %64, %65 : vector<8x8xi1>, vector<8x8xf32>
    %cst_28 = arith.constant dense<0xFF800000> : vector<8xf32>
    %67 = vector.multi_reduction <maximumf>, %66, %cst_28 [1] : vector<8x8xf32> to vector<8xf32>
    %68 = vector.shape_cast %67 : vector<8xf32> to vector<8x1xf32>
    %69 = vector.broadcast %68 : vector<8x1xf32> to vector<8x8xf32>
    %70 = arith.subf %66, %69 : vector<8x8xf32>
    %71 = math.exp %70 : vector<8x8xf32>
    %cst_29 = arith.constant dense<0.000000e+00> : vector<8xf32>
    %72 = vector.multi_reduction <add>, %71, %cst_29 [1] : vector<8x8xf32> to vector<8xf32>
    %73 = vector.shape_cast %72 : vector<8xf32> to vector<8x1xf32>
    %74 = tpu.reciprocal %73 {approx = true} : vector<8x1xf32> -> vector<8x1xf32>
    %75 = arith.truncf %71 : vector<8x8xf32> to vector<8x8xbf16>
    %cst_30 = arith.constant dense<0.000000e+00> : vector<8x8xf32>
    %76 = tpu.matmul %75, %61, %cst_30 {dimension_numbers = #tpu.dot_dimension_numbers<[1], [0], [0], [1], [0, 0, 1, 1], [], []>} : vector<8x8xbf16>, vector<8x8xbf16>, vector<8x8xf32> -> vector<8x8xf32>
    %77 = vector.broadcast %74 : vector<8x1xf32> to vector<8x8xf32>
    %78 = arith.mulf %76, %77 : vector<8x8xf32>
    %79 = vector.extract_strided_slice %1 {offsets = [0, 24], sizes = [8, 8], strides = [1, 1]} : vector<8x32xbf16> to vector<8x8xbf16>
    %80 = vector.extract_strided_slice %3 {offsets = [0, 24], sizes = [8, 8], strides = [1, 1]} : vector<8x32xbf16> to vector<8x8xbf16>
    %81 = vector.extract_strided_slice %5 {offsets = [0, 24], sizes = [8, 8], strides = [1, 1]} : vector<8x32xbf16> to vector<8x8xbf16>
    %cst_31 = arith.constant dense<0.000000e+00> : vector<8x8xf32>
    %82 = tpu.matmul %79, %80, %cst_31 {dimension_numbers = #tpu.dot_dimension_numbers<[1], [1], [0], [0], [0, 0, 1, 0], [], []>} : vector<8x8xbf16>, vector<8x8xbf16>, vector<8x8xf32> -> vector<8x8xf32>
    %cst_32 = arith.constant 0.353553385 : f32
    %83 = vector.broadcast %cst_32 : f32 to vector<8x8xf32>
    %84 = arith.mulf %82, %83 : vector<8x8xf32>
    %cst_33 = arith.constant -1.000000e+09 : f32
    %85 = vector.broadcast %cst_33 : f32 to vector<8x8xf32>
    %86 = arith.select %18, %84, %85 : vector<8x8xi1>, vector<8x8xf32>
    %cst_34 = arith.constant dense<0xFF800000> : vector<8xf32>
    %87 = vector.multi_reduction <maximumf>, %86, %cst_34 [1] : vector<8x8xf32> to vector<8xf32>
    %88 = vector.shape_cast %87 : vector<8xf32> to vector<8x1xf32>
    %89 = vector.broadcast %88 : vector<8x1xf32> to vector<8x8xf32>
    %90 = arith.subf %86, %89 : vector<8x8xf32>
    %91 = math.exp %90 : vector<8x8xf32>
    %cst_35 = arith.constant dense<0.000000e+00> : vector<8xf32>
    %92 = vector.multi_reduction <add>, %91, %cst_35 [1] : vector<8x8xf32> to vector<8xf32>
    %93 = vector.shape_cast %92 : vector<8xf32> to vector<8x1xf32>
    %94 = tpu.reciprocal %93 {approx = true} : vector<8x1xf32> -> vector<8x1xf32>
    %95 = arith.truncf %91 : vector<8x8xf32> to vector<8x8xbf16>
    %cst_36 = arith.constant dense<0.000000e+00> : vector<8x8xf32>
    %96 = tpu.matmul %95, %81, %cst_36 {dimension_numbers = #tpu.dot_dimension_numbers<[1], [0], [0], [1], [0, 0, 1, 1], [], []>} : vector<8x8xbf16>, vector<8x8xbf16>, vector<8x8xf32> -> vector<8x8xf32>
    %97 = vector.broadcast %94 : vector<8x1xf32> to vector<8x8xf32>
    %98 = arith.mulf %96, %97 : vector<8x8xf32>
    %99 = tpu.concatenate %38, %58, %78, %98 in 1 : vector<8x8xf32>, vector<8x8xf32>, vector<8x8xf32>, vector<8x8xf32> -> vector<8x32xf32>
    %100 = arith.truncf %99 : vector<8x32xf32> to vector<8x32xbf16>
    %c0_37 = arith.constant 0 : index
    %c0_38 = arith.constant 0 : index
    %c0_39 = arith.constant 0 : index
    %101 = vector.load %arg6[%c0_37, %c0_38, %c0_39] : memref<1x8x32xbf16, #tpu.memory_space<vmem>>, vector<1x8x32xbf16>
    %102 = vector.shape_cast %101 : vector<1x8x32xbf16> to vector<8x32xbf16>
    %103 = vector.shape_cast %100 : vector<8x32xbf16> to vector<1x8x32xbf16>
    tpu.vector_store %arg6[%c0_37, %c0_38, %c0_39], %103 {strides = array<i32>} : memref<1x8x32xbf16, #tpu.memory_space<vmem>>, vector<1x8x32xbf16>,
    return
  }
  func.func @transform_0(%arg0: i32) -> (i32, i32, i32) {
    %c0_i32 = arith.constant 0 : i32
    %c0_i32_0 = arith.constant 0 : i32
    %c0_i32_1 = arith.constant 0 : i32
    return %arg0, %c0_i32, %c0_i32_0 : i32, i32, i32
  }
  func.func @transform_1(%arg0: i32) -> (i32, i32, i32) {
    %c0_i32 = arith.constant 0 : i32
    %c0_i32_0 = arith.constant 0 : i32
    %c0_i32_1 = arith.constant 0 : i32
    return %arg0, %c0_i32, %c0_i32_0 : i32, i32, i32
  }
  func.func @transform_2(%arg0: i32) -> (i32, i32, i32) {
    %c0_i32 = arith.constant 0 : i32
    %c0_i32_0 = arith.constant 0 : i32
    %c0_i32_1 = arith.constant 0 : i32
    return %arg0, %c0_i32, %c0_i32_0 : i32, i32, i32
  }
  func.func @transform_3(%arg0: i32) -> (i32, i32, i32) {
    %c0_i32 = arith.constant 0 : i32
    %c0_i32_0 = arith.constant 0 : i32
    %c0_i32_1 = arith.constant 0 : i32
    return %arg0, %c0_i32, %c0_i32_0 : i32, i32, i32
  }
  func.func @transform_4(%arg0: i32) -> (i32, i32, i32) {
    %c0_i32 = arith.constant 0 : i32
    %c0_i32_0 = arith.constant 0 : i32
    %c0_i32_1 = arith.constant 0 : i32
    return %arg0, %c0_i32, %c0_i32_0 : i32, i32, i32
  }
  func.func @transform_5(%arg0: i32) -> (i32, i32, i32) {
    %c0_i32 = arith.constant 0 : i32
    %c0_i32_0 = arith.constant 0 : i32
    %c0_i32_1 = arith.constant 0 : i32
    return %arg0, %c0_i32, %c0_i32_0 : i32, i32, i32
  }
}

module attributes {stable_mosaic.version = 11 : i64} {
  func.func @_matmul_kernel(%arg0: i32, %arg1: i32, %arg2: i32, %arg3: memref<16x32xbf16, #tpu.memory_space<vmem>>, %arg4: memref<32x128xbf16, #tpu.memory_space<vmem>>, %arg5: memref<1x128xf32, #tpu.memory_space<vmem>>, %arg6: memref<16x128xf32, #tpu.memory_space<vmem>>, %arg7: memref<16x128xf32, #tpu.memory_space<vmem>>) attributes {dimension_semantics = [#tpu.dimension_semantics<parallel>, #tpu.dimension_semantics<parallel>, #tpu.dimension_semantics<arbitrary>], iteration_bounds = array<i64: 1, 1, 1>, scalar_prefetch = 0 : i64, scratch_operands = 1 : i64, tpu.core_type = #tpu.core_type<tc>, window_params = [{transform_indices = @transform_0, window_bounds = array<i64: 16, 32>}, {transform_indices = @transform_1, window_bounds = array<i64: 32, 128>}, {transform_indices = @transform_2, window_bounds = array<i64: 1, 128>}, {transform_indices = @transform_3, window_bounds = array<i64: 16, 128>}]} {
    %c0_i32 = arith.constant 0 : i32
    %0 = arith.cmpi eq, %arg2, %c0_i32 : i32
    %1 = arith.extui %0 : i1 to i32
    %c0_i32_0 = arith.constant 0 : i32
    %2 = arith.cmpi ne, %1, %c0_i32_0 : i32
    scf.if %2 {
      %cst_10 = arith.constant 0.000000e+00 : f32
      %12 = vector.broadcast %cst_10 : f32 to vector<16x128xf32>
      %c0_11 = arith.constant 0 : index
      %c0_12 = arith.constant 0 : index
      %13 = vector.load %arg7[%c0_11, %c0_12] : memref<16x128xf32, #tpu.memory_space<vmem>>, vector<16x128xf32>
      tpu.vector_store %arg7[%c0_11, %c0_12], %12 {strides = array<i32>} : memref<16x128xf32, #tpu.memory_space<vmem>>, vector<16x128xf32>,
    } else {
    }
    %c0 = arith.constant 0 : index
    %c0_1 = arith.constant 0 : index
    %3 = vector.load %arg7[%c0, %c0_1] : memref<16x128xf32, #tpu.memory_space<vmem>>, vector<16x128xf32>
    %c0_2 = arith.constant 0 : index
    %c0_3 = arith.constant 0 : index
    %4 = vector.load %arg3[%c0_2, %c0_3] : memref<16x32xbf16, #tpu.memory_space<vmem>>, vector<16x32xbf16>
    %c0_4 = arith.constant 0 : index
    %c0_5 = arith.constant 0 : index
    %5 = vector.load %arg4[%c0_4, %c0_5] : memref<32x128xbf16, #tpu.memory_space<vmem>>, vector<32x128xbf16>
    %cst = arith.constant dense<0.000000e+00> : vector<16x128xf32>
    %6 = tpu.matmul %4, %5, %cst {dimension_numbers = #tpu.dot_dimension_numbers<[1], [0], [0], [1], [0, 0, 1, 1], [], []>} : vector<16x32xbf16>, vector<32x128xbf16>, vector<16x128xf32> -> vector<16x128xf32>
    %7 = arith.addf %3, %6 : vector<16x128xf32>
    %c0_6 = arith.constant 0 : index
    %c0_7 = arith.constant 0 : index
    %8 = vector.load %arg7[%c0_6, %c0_7] : memref<16x128xf32, #tpu.memory_space<vmem>>, vector<16x128xf32>
    tpu.vector_store %arg7[%c0_6, %c0_7], %7 {strides = array<i32>} : memref<16x128xf32, #tpu.memory_space<vmem>>, vector<16x128xf32>,
    %c0_i32_8 = arith.constant 0 : i32
    %9 = arith.cmpi eq, %arg2, %c0_i32_8 : i32
    %10 = arith.extui %9 : i1 to i32
    %c0_i32_9 = arith.constant 0 : i32
    %11 = arith.cmpi ne, %10, %c0_i32_9 : i32
    scf.if %11 {
      %c0_10 = arith.constant 0 : index
      %c0_11 = arith.constant 0 : index
      %12 = vector.load %arg7[%c0_10, %c0_11] : memref<16x128xf32, #tpu.memory_space<vmem>>, vector<16x128xf32>
      %c0_12 = arith.constant 0 : index
      %c0_13 = arith.constant 0 : index
      %13 = vector.load %arg5[%c0_12, %c0_13] : memref<1x128xf32, #tpu.memory_space<vmem>>, vector<1x128xf32>
      %14 = vector.broadcast %13 : vector<1x128xf32> to vector<16x128xf32>
      %15 = arith.addf %12, %14 : vector<16x128xf32>
      %c0_14 = arith.constant 0 : index
      %c0_15 = arith.constant 0 : index
      %16 = vector.load %arg6[%c0_14, %c0_15] : memref<16x128xf32, #tpu.memory_space<vmem>>, vector<16x128xf32>
      tpu.vector_store %arg6[%c0_14, %c0_15], %15 {strides = array<i32>} : memref<16x128xf32, #tpu.memory_space<vmem>>, vector<16x128xf32>,
    } else {
    }
    return
  }
  func.func @transform_0(%arg0: i32, %arg1: i32, %arg2: i32) -> (i32, i32) {
    %c0_i32 = arith.constant 0 : i32
    return %arg0, %arg2 : i32, i32
  }
  func.func @transform_1(%arg0: i32, %arg1: i32, %arg2: i32) -> (i32, i32) {
    %c0_i32 = arith.constant 0 : i32
    return %arg2, %arg1 : i32, i32
  }
  func.func @transform_2(%arg0: i32, %arg1: i32, %arg2: i32) -> (i32, i32) {
    %c0_i32 = arith.constant 0 : i32
    %c0_i32_0 = arith.constant 0 : i32
    return %c0_i32, %arg1 : i32, i32
  }
  func.func @transform_3(%arg0: i32, %arg1: i32, %arg2: i32) -> (i32, i32) {
    %c0_i32 = arith.constant 0 : i32
    return %arg0, %arg1 : i32, i32
  }
}

</mosaic_0001>

<llo_original>
// kernel: transformer_forward.39
$region0: #{transformer_forward.39}
  #allocation0 [shape = 'u32[]', space=smem, size = 0x4, offset = 0x4, fixed_abs, tag = 'smem constant byte address 0x4 - core index']
  #allocation1 [shape = 'u32[144,128]{1,0:T(1,128)}', space=vmem, size = 0x12000, scoped, tag = 'internal scratch']
  #allocation2 [shape = 'f32[16,128]{1,0:T(8,128)}', space=vmem, size = 0x2000, scoped, tag = 'scratch operand']
  %s0 = inlined_call_operand.vmem [shape: bf16[16,32], index: 0, kind: input, shape index: {}]
  %s1 = inlined_call_operand.vmem [shape: bf16[32,128], index: 1, kind: input, shape index: {}]
  %s2 = inlined_call_operand.vmem [shape: f32[1,128], index: 2, kind: input, shape index: {}]
  %s3 = inlined_call_operand.vmem [shape: bf16[16,128], index: 3, kind: output, shape index: {}]
  %s4 = sld [smem:[#allocation0]]
  $region30: #{transformer_forward.39} parent=0
    _
  %s6 = ssub.s32 1, %s4
  %s7 = scalar_select 0, %s6, %s4
  // Predicated region
  $region2: #{transformer_forward.39} parent=0 // pred_check
    _
  $region3: #{transformer_forward.39} parent=0 // pred_check_branch
    %9 = sbr.rel (0) target = $region5
  $region4: #{transformer_forward.39} parent=0 // pred_region
    _
  $region5: #{transformer_forward.39} parent=0 // pred_fallthru
    _
  // Predicated region
  $region6: #{transformer_forward.39} parent=0 // pred_check
    _
  $region7: #{transformer_forward.39} parent=0 // pred_check_branch
    %11 = sbr.rel (0) target = $region9
  $region8: #{transformer_forward.39} parent=0 // pred_region
    _
  $region9: #{transformer_forward.39} parent=0 // pred_fallthru
    _
  // Predicated region
  $region10: #{transformer_forward.39} parent=0 // pred_check
    _
  $region11: #{transformer_forward.39} parent=0 // pred_check_branch
    %13 = sbr.rel (0) target = $region13
  $region12: #{transformer_forward.39} parent=0 // pred_region
    _
  $region13: #{transformer_forward.39} parent=0 // pred_fallthru
    _
  %p15 = scmp.eq.s32.totalorder 0, 0
  // Predicated region
  $region14: #{transformer_forward.39} parent=0 // pred_check
    %p16 = pneg %p15
  $region15: #{transformer_forward.39} parent=0 // pred_check_branch
    %18 = sbr.rel (%p16) target = $region17
  $region16: #{transformer_forward.39} parent=0 // pred_region
    %19 = vst [vmem:[#allocation2] sm:$0xff] 0.0
    %20 = vst [vmem:[#allocation2 + $0x8] sm:$0xff] 0.0
  $region17: #{transformer_forward.39} parent=0 // pred_fallthru
    _
  %v21 = vld [vmem:[#allocation2] sm:$0xff]
  %v22 = vld [vmem:[#allocation2 + $0x8] sm:$0xff]
  %v23 = vld [vmem:[%s0] sm:$0xf]
  %v24 = vld [vmem:[%s0 + $0x4] sm:$0xf]
  %v25 = vld [vmem:[%s1] sm:$0xf]
  %v26 = vld [vmem:[%s1 + $0x4] sm:$0xf]
  %v27 = vld [vmem:[%s1 + $0x8] sm:$0xf]
  %v28 = vld [vmem:[%s1 + $0xc] sm:$0xf]
  %v31 = vunpack.c.l.b16 %v23
  %v32 = vunpack.c.l.b16 %v24
  %v33 = vpack.c.b16 %v32, %v31
  %v38 = vunpack.c.l.b16 %v25
  %v39 = vunpack.c.l.b16 %v26
  %v40 = vunpack.c.l.b16 %v27
  %v41 = vunpack.c.l.b16 %v28
  %v42 = vpack.c.b16 %v39, %v38
  %v43 = vpack.c.b16 %v41, %v40
  %vm46 = vcmask 261120
  %v48 = vsel %vm46, %v33, 0
  %50 = vmatprep.subr.bf16.mxu0 0
  %51 = vmatpush1.bf16.msra.mxu0 %v42
  %52 = vmatprep.subr.bf16.mxu0 0
  %53 = vmatpush1.bf16.msra.mxu0 %v43
  %54 = vmatprep.subr.bf16.mxu0 0
  %55 = vmatpush1.bf16.msra.mxu0 0
  %56 = vmatprep.subr.bf16.mxu0 0
  %57 = vmatpush1.bf16.msra.mxu0 0
  %58 = vmatprep.subr.bf16.mxu0 0
  %59 = vmatpush1.bf16.msra.mxu0 0
  %60 = vmatprep.subr.bf16.mxu0 0
  %61 = vmatpush1.bf16.msra.mxu0 0
  %62 = vmatprep.subr.bf16.mxu0 0
  %63 = vmatpush1.bf16.msra.mxu0 0
  %64 = vmatprep.subr.bf16.mxu0 0
  %65 = vmatpush1.bf16.msra.mxu0 0
  %66 = vmatprep.subr.bf16.mxu0 0
  %67 = vmatpush1.bf16.msra.mxu0 0
  %68 = vmatprep.subr.bf16.mxu0 0
  %69 = vmatpush1.bf16.msra.mxu0 0
  %70 = vmatprep.subr.bf16.mxu0 0
  %71 = vmatpush1.bf16.msra.mxu0 0
  %72 = vmatprep.subr.bf16.mxu0 0
  %73 = vmatpush1.bf16.msra.mxu0 0
  %74 = vmatprep.subr.bf16.mxu0 0
  %75 = vmatpush1.bf16.msra.mxu0 0
  %76 = vmatprep.subr.bf16.mxu0 0
  %77 = vmatpush1.bf16.msra.mxu0 0
  %78 = vmatprep.subr.bf16.mxu0 0
  %79 = vmatpush1.bf16.msra.mxu0 0
  %80 = vmatprep.subr.bf16.mxu0 0
  %81 = vmatpush1.bf16.msra.mxu0 0
  %82 = vmatprep.mubr.bf16.mxu0 0
  %83 = vmatmul.mubr.bf16.gmra.mrb[0].mxu0 %v48
  %v84 = vpop.f32.mrb[0].mxu0
  %v85 = vadd.f32 0.0, %v84
  %v86 = vpop.f32.mrb[0].mxu0
  %v87 = vpop.f32.mrb[0].mxu0
  %v88 = vadd.f32 0.0, %v87
  %v89 = vpop.f32.mrb[0].mxu0
  %90 = vdwg.mxu0
  %v91 = vadd.f32 %v21, %v85
  %v92 = vadd.f32 %v22, %v88
  %93 = vst [vmem:[#allocation2] sm:$0xff] %v91
  %94 = vst [vmem:[#allocation2 + $0x8] sm:$0xff] %v92
  // Predicated region
  $region18: #{transformer_forward.39} parent=0 // pred_check
    %p95 = pneg %p15
  $region19: #{transformer_forward.39} parent=0 // pred_check_branch
    %97 = sbr.rel (%p95) target = $region21
  $region20: #{transformer_forward.39} parent=0 // pred_region
    %v98 = vld [vmem:[#allocation2] sm:$0xff]
    %v99 = vld [vmem:[#allocation2 + $0x8] sm:$0xff]
    %v100 = vld [vmem:[%s2] sm:$0x1]
    %v102 = vlaneseq
    %v103 = vshrl.u32 %v102, 7
    %v104 = vsub.s32 0, %v103
    %v105 = vrot.slane %v100, %v104
    %v107 = vadd.f32 %v98, %v105
    %v108 = vadd.f32 %v99, %v105
    %v109 = vpack.c.bf16 %v108, %v107
    %v111 = vunpack.c.l.b16 %v109
    %v112 = vunpack.c.h.b16 %v109
    %v113 = vpack.c.b16 %v111, %v111
    %v114 = vpack.c.b16 %v112, %v112
    %117 = vst [vmem:[%s3] sm:$0xf] %v113
    %118 = vst [vmem:[%s3 + $0x4] sm:$0xf] %v114
  $region21: #{transformer_forward.39} parent=0 // pred_fallthru
    _
  // Predicated region
  $region22: #{transformer_forward.39} parent=0 // pred_check
    _
  $region23: #{transformer_forward.39} parent=0 // pred_check_branch
    %120 = sbr.rel (0) target = $region25
  $region24: #{transformer_forward.39} parent=0 // pred_region
    _
  $region25: #{transformer_forward.39} parent=0 // pred_fallthru
    _
  // Predicated region
  $region26: #{transformer_forward.39} parent=0 // pred_check
    _
  $region27: #{transformer_forward.39} parent=0 // pred_check_branch
    %122 = sbr.rel (0) target = $region29
  $region28: #{transformer_forward.39} parent=0 // pred_region
    _
  $region29: #{transformer_forward.39} parent=0 // pred_fallthru
    _

// kernel: transformer_forward.40
$region0: #{transformer_forward.40}
  #allocation0 [shape = 'u32[]', space=smem, size = 0x4, offset = 0x4, fixed_abs, tag = 'smem constant byte address 0x4 - core index']
  #allocation1 [shape = 'u32[144,128]{1,0:T(1,128)}', space=vmem, size = 0x12000, scoped, tag = 'internal scratch']
  %s0 = inlined_call_operand.vmem [shape: bf16[2,8,32], index: 0, kind: input, shape index: {}]
  %s1 = inlined_call_operand.vmem [shape: bf16[2,8,32], index: 1, kind: input, shape index: {}]
  %s2 = inlined_call_operand.vmem [shape: bf16[2,8,32], index: 2, kind: input, shape index: {}]
  %s3 = inlined_call_operand.vmem [shape: s32[2,8,1], index: 3, kind: input, shape index: {}]
  %s4 = inlined_call_operand.vmem [shape: s32[2,1,8], index: 4, kind: input, shape index: {}]
  %s5 = inlined_call_operand.vmem [shape: bf16[2,8,32], index: 5, kind: output, shape index: {}]
  %s6 = sld [smem:[#allocation0]]
  $region53: #{transformer_forward.40} parent=0
    _
  %s8 = ssub.s32 1, %s6
  %s9 = scalar_select 0, %s8, %s6
  loop: start=0, step=1, limit=4
  $region2: #{transformer_forward.40} parent=0 // loop_pre_header
    _
  $region3: #{transformer_forward.40} parent=0 // loop_header
    %s11 = sphi 0, %s15
    %p12 = scmp.ge.s32.totalorder %s11, 4
    %s21 = sphi 0, %s23
    %s24 = sphi 0, %s21
    %s25 = sphi 0, %s24
    %s41 = sphi 0, %s25
    %s47 = sphi 0, %s49
    %s50 = sphi 0, %s47
    %s51 = sphi 0, %s50
    %s67 = sphi 0, %s51
    %s73 = sphi 0, %s75
    %s76 = sphi 0, %s73
    %s77 = sphi 0, %s76
    %s93 = sphi 0, %s77
    %s99 = sphi 0, %s101
    %s102 = sphi 0, %s99
    %s103 = sphi 0, %s102
    %s119 = sphi 0, %s103
    %s125 = sphi 0, %s127
    %s128 = sphi 0, %s125
    %s129 = sphi 0, %s128
    %s145 = sphi 0, %s129
    %s151 = sphi 0, %s153
    %s154 = sphi 0, %s151
    %s155 = sphi 0, %s154
    %s171 = sphi 0, %s155
  $region4: #{transformer_forward.40} parent=0 // loop_header_branch
    %14 = sbr.rel (%p12) target = $region8
  $region5: #{transformer_forward.40} parent=0 // loop_body
    %s16 = ssub.s32 %s11, 1
    %s17 = ssub.s32 %s11, 2
    %s18 = sadd.s32 %s11, 1
    %s19 = ssub.s32 %s11, %s18
    %p20 = scmp.eq.s32.totalorder %s19, 0
    %s22 = sadd.s32 %s21, 1
    %s23 = scalar_select %p20, %s21, %s22
    %p26 = pneg %p20
    %p27 = scmp.eq.s32.totalorder %s11, 1
    %p28 = por %p26, %p27
    %p29 = scmp.ne.s32.totalorder %s21, %s24
    %p30 = scmp.eq.s32.totalorder %s11, 0
    %p31 = por %p29, %p30
    %p32 = scmp.ne.s32.totalorder %s21, %s24
    %p33 = scmp.eq.s32.totalorder %s16, 1
    %p34 = por %p32, %p33
    %p35 = scmp.ne.s32.totalorder %s24, %s25
    %p36 = scmp.eq.s32.totalorder %s16, 0
    %p37 = por %p35, %p36
    %p38 = scmp.ne.s32.totalorder %s24, %s25
    %p39 = scmp.eq.s32.totalorder %s17, 1
    %p40 = por %p38, %p39
    %p42 = scmp.ne.s32.totalorder %s25, %s41
    %p43 = scmp.eq.s32.totalorder %s17, 0
    %p44 = por %p42, %p43
    %s45 = ssub.s32 %s11, %s18
    %p46 = scmp.eq.s32.totalorder %s45, 0
    %s48 = sadd.s32 %s47, 1
    %s49 = scalar_select %p46, %s47, %s48
    %p52 = pneg %p46
    %p53 = scmp.eq.s32.totalorder %s11, 1
    %p54 = por %p52, %p53
    %p55 = scmp.ne.s32.totalorder %s47, %s50
    %p56 = scmp.eq.s32.totalorder %s11, 0
    %p57 = por %p55, %p56
    %p58 = scmp.ne.s32.totalorder %s47, %s50
    %p59 = scmp.eq.s32.totalorder %s16, 1
    %p60 = por %p58, %p59
    %p61 = scmp.ne.s32.totalorder %s50, %s51
    %p62 = scmp.eq.s32.totalorder %s16, 0
    %p63 = por %p61, %p62
    %p64 = scmp.ne.s32.totalorder %s50, %s51
    %p65 = scmp.eq.s32.totalorder %s17, 1
    %p66 = por %p64, %p65
    %p68 = scmp.ne.s32.totalorder %s51, %s67
    %p69 = scmp.eq.s32.totalorder %s17, 0
    %p70 = por %p68, %p69
    %s71 = ssub.s32 %s11, %s18
    %p72 = scmp.eq.s32.totalorder %s71, 0
    %s74 = sadd.s32 %s73, 1
    %s75 = scalar_select %p72, %s73, %s74
    %p78 = pneg %p72
    %p79 = scmp.eq.s32.totalorder %s11, 1
    %p80 = por %p78, %p79
    %p81 = scmp.ne.s32.totalorder %s73, %s76
    %p82 = scmp.eq.s32.totalorder %s11, 0
    %p83 = por %p81, %p82
    %p84 = scmp.ne.s32.totalorder %s73, %s76
    %p85 = scmp.eq.s32.totalorder %s16, 1
    %p86 = por %p84, %p85
    %p87 = scmp.ne.s32.totalorder %s76, %s77
    %p88 = scmp.eq.s32.totalorder %s16, 0
    %p89 = por %p87, %p88
    %p90 = scmp.ne.s32.totalorder %s76, %s77
    %p91 = scmp.eq.s32.totalorder %s17, 1
    %p92 = por %p90, %p91
    %p94 = scmp.ne.s32.totalorder %s77, %s93
    %p95 = scmp.eq.s32.totalorder %s17, 0
    %p96 = por %p94, %p95
    %s97 = ssub.s32 %s11, %s18
    %p98 = scmp.eq.s32.totalorder %s97, 0
    %s100 = sadd.s32 %s99, 1
    %s101 = scalar_select %p98, %s99, %s100
    %p104 = pneg %p98
    %p105 = scmp.eq.s32.totalorder %s11, 1
    %p106 = por %p104, %p105
    %p107 = scmp.ne.s32.totalorder %s99, %s102
    %p108 = scmp.eq.s32.totalorder %s11, 0
    %p109 = por %p107, %p108
    %p110 = scmp.ne.s32.totalorder %s99, %s102
    %p111 = scmp.eq.s32.totalorder %s16, 1
    %p112 = por %p110, %p111
    %p113 = scmp.ne.s32.totalorder %s102, %s103
    %p114 = scmp.eq.s32.totalorder %s16, 0
    %p115 = por %p113, %p114
    %p116 = scmp.ne.s32.totalorder %s102, %s103
    %p117 = scmp.eq.s32.totalorder %s17, 1
    %p118 = por %p116, %p117
    %p120 = scmp.ne.s32.totalorder %s103, %s119
    %p121 = scmp.eq.s32.totalorder %s17, 0
    %p122 = por %p120, %p121
    %s123 = ssub.s32 %s11, %s18
    %p124 = scmp.eq.s32.totalorder %s123, 0
    %s126 = sadd.s32 %s125, 1
    %s127 = scalar_select %p124, %s125, %s126
    %p130 = pneg %p124
    %p131 = scmp.eq.s32.totalorder %s11, 1
    %p132 = por %p130, %p131
    %p133 = scmp.ne.s32.totalorder %s125, %s128
    %p134 = scmp.eq.s32.totalorder %s11, 0
    %p135 = por %p133, %p134
    %p136 = scmp.ne.s32.totalorder %s125, %s128
    %p137 = scmp.eq.s32.totalorder %s16, 1
    %p138 = por %p136, %p137
    %p139 = scmp.ne.s32.totalorder %s128, %s129
    %p140 = scmp.eq.s32.totalorder %s16, 0
    %p141 = por %p139, %p140
    %p142 = scmp.ne.s32.totalorder %s128, %s129
    %p143 = scmp.eq.s32.totalorder %s17, 1
    %p144 = por %p142, %p143
    %p146 = scmp.ne.s32.totalorder %s129, %s145
    %p147 = scmp.eq.s32.totalorder %s17, 0
    %p148 = por %p146, %p147
    %s149 = ssub.s32 %s11, %s18
    %p150 = scmp.eq.s32.totalorder %s149, 0
    %s152 = sadd.s32 %s151, 1
    %s153 = scalar_select %p150, %s151, %s152
    %p156 = pneg %p150
    %p157 = scmp.eq.s32.totalorder %s11, 1
    %p158 = por %p156, %p157
    %p159 = scmp.ne.s32.totalorder %s151, %s154
    %p160 = scmp.eq.s32.totalorder %s11, 0
    %p161 = por %p159, %p160
    %p162 = scmp.ne.s32.totalorder %s151, %s154
    %p163 = scmp.eq.s32.totalorder %s16, 1
    %p164 = por %p162, %p163
    %p165 = scmp.ne.s32.totalorder %s154, %s155
    %p166 = scmp.eq.s32.totalorder %s16, 0
    %p167 = por %p165, %p166
    %p168 = scmp.ne.s32.totalorder %s154, %s155
    %p169 = scmp.eq.s32.totalorder %s17, 1
    %p170 = por %p168, %p169
    %p172 = scmp.ne.s32.totalorder %s155, %s171
    %p173 = scmp.eq.s32.totalorder %s17, 0
    %p174 = por %p172, %p173
    %p175 = scmp.le.s32.totalorder 1, %s11
    %p176 = scmp.lt.s32.totalorder %s11, 3
    %p177 = pnand %p175, %p176
    %p178 = pneg %p177
    // Predicated region
    $region9: #{transformer_forward.40} parent=5 // pred_check
      _
    $region10: #{transformer_forward.40} parent=5 // pred_check_branch
      %180 = sbr.rel (%p177) target = $region12
    $region11: #{transformer_forward.40} parent=5 // pred_region
      %s181 = ssub.s32 %s11, 1
    $region12: #{transformer_forward.40} parent=5 // pred_fallthru
      _
    %p182 = scmp.lt.s32.totalorder %s11, 2
    // Predicated region
    $region13: #{transformer_forward.40} parent=5 // pred_check
      %p183 = pneg %p182
    $region14: #{transformer_forward.40} parent=5 // pred_check_branch
      %185 = sbr.rel (%p183) target = $region16
    $region15: #{transformer_forward.40} parent=5 // pred_region
      // Predicated region
      $region17: #{transformer_forward.40} parent=15 // pred_check
        %p186 = pneg %p31
      $region18: #{transformer_forward.40} parent=15 // pred_check_branch
        %188 = sbr.rel (%p186) target = $region20
      $region19: #{transformer_forward.40} parent=15 // pred_region
        %p189 = scmp.lt.s32.totalorder %s11, 1
        %s190 = scalar_select %p189, %s11, 1
        %s191 = smul.addr %s190, 4
        %s192 = scalar_lea.vmem %s0, %s191
      $region20: #{transformer_forward.40} parent=15 // pred_fallthru
        _
      // Predicated region
      $region21: #{transformer_forward.40} parent=15 // pred_check
        %p193 = pneg %p57
      $region22: #{transformer_forward.40} parent=15 // pred_check_branch
        %195 = sbr.rel (%p193) target = $region24
      $region23: #{transformer_forward.40} parent=15 // pred_region
        %p196 = scmp.lt.s32.totalorder %s11, 1
        %s197 = scalar_select %p196, %s11, 1
        %s198 = smul.addr %s197, 4
        %s199 = scalar_lea.vmem %s1, %s198
      $region24: #{transformer_forward.40} parent=15 // pred_fallthru
        _
      // Predicated region
      $region25: #{transformer_forward.40} parent=15 // pred_check
        %p200 = pneg %p83
      $region26: #{transformer_forward.40} parent=15 // pred_check_branch
        %202 = sbr.rel (%p200) target = $region28
      $region27: #{transformer_forward.40} parent=15 // pred_region
        %p203 = scmp.lt.s32.totalorder %s11, 1
        %s204 = scalar_select %p203, %s11, 1
        %s205 = smul.addr %s204, 4
        %s206 = scalar_lea.vmem %s2, %s205
      $region28: #{transformer_forward.40} parent=15 // pred_fallthru
        _
      // Predicated region
      $region29: #{transformer_forward.40} parent=15 // pred_check
        %p207 = pneg %p109
      $region30: #{transformer_forward.40} parent=15 // pred_check_branch
        %209 = sbr.rel (%p207) target = $region32
      $region31: #{transformer_forward.40} parent=15 // pred_region
        %p210 = scmp.lt.s32.totalorder %s11, 1
        %s211 = scalar_select %p210, %s11, 1
        %s212 = smul.addr %s211, 8
        %s213 = scalar_lea.vmem %s3, %s212
      $region32: #{transformer_forward.40} parent=15 // pred_fallthru
        _
      // Predicated region
      $region33: #{transformer_forward.40} parent=15 // pred_check
        %p214 = pneg %p135
      $region34: #{transformer_forward.40} parent=15 // pred_check_branch
        %216 = sbr.rel (%p214) target = $region36
      $region35: #{transformer_forward.40} parent=15 // pred_region
        %p217 = scmp.lt.s32.totalorder %s11, 1
        %s218 = scalar_select %p217, %s11, 1
        %s219 = scalar_lea.vmem %s4, %s218
      $region36: #{transformer_forward.40} parent=15 // pred_fallthru
        _
    $region16: #{transformer_forward.40} parent=5 // pred_fallthru
      _
    %p220 = scmp.le.s32.totalorder 1, %s11
    %p221 = scmp.lt.s32.totalorder %s11, 3
    %p222 = pnand %p220, %p221
    %p223 = pneg %p222
    // Predicated region
    $region37: #{transformer_forward.40} parent=5 // pred_check
      _
    $region38: #{transformer_forward.40} parent=5 // pred_check_branch
      %225 = sbr.rel (%p222) target = $region40
    $region39: #{transformer_forward.40} parent=5 // pred_region
      %s226 = ssub.s32 %s11, 1
      %p227 = scmp.lt.s32.totalorder %s16, 1
      %s228 = scalar_select %p227, %s16, 1
      %s229 = smul.addr %s228, 4
      %s230 = scalar_lea.vmem %s0, %s229
      %p231 = pneg %p37
      %p232 = pneg %p34
      %p233 = scmp.lt.s32.totalorder %s16, 1
      %s234 = scalar_select %p233, %s16, 1
      %s235 = smul.addr %s234, 4
      %s236 = scalar_lea.vmem %s1, %s235
      %p237 = pneg %p63
      %p238 = pneg %p60
      %p239 = scmp.lt.s32.totalorder %s16, 1
      %s240 = scalar_select %p239, %s16, 1
      %s241 = smul.addr %s240, 4
      %s242 = scalar_lea.vmem %s2, %s241
      %p243 = pneg %p89
      %p244 = pneg %p86
      %p245 = scmp.lt.s32.totalorder %s16, 1
      %s246 = scalar_select %p245, %s16, 1
      %s247 = smul.addr %s246, 8
      %s248 = scalar_lea.vmem %s3, %s247
      %p249 = pneg %p115
      %p250 = pneg %p112
      %p251 = scmp.lt.s32.totalorder %s16, 1
      %s252 = scalar_select %p251, %s16, 1
      %s253 = scalar_lea.vmem %s4, %s252
      %p254 = pneg %p141
      %p255 = pneg %p138
      %p256 = pneg %p167
      %p257 = pneg %p164
      %p258 = scmp.lt.s32.totalorder %s16, 1
      %s259 = scalar_select %p258, %s16, 1
      %s260 = smul.addr %s259, 4
      %s261 = scalar_lea.vmem %s5, %s260
      %p262 = scmp.lt.s32.totalorder %s16, 1
      %s263 = scalar_select %p262, %s16, 1
      %s264 = smul.addr %s263, 4
      %s265 = scalar_lea.vmem %s0, %s264
      %p266 = scmp.lt.s32.totalorder %s16, 1
      %s267 = scalar_select %p266, %s16, 1
      %s268 = smul.addr %s267, 4
      %s269 = scalar_lea.vmem %s1, %s268
      %p270 = scmp.lt.s32.totalorder %s16, 1
      %s271 = scalar_select %p270, %s16, 1
      %s272 = smul.addr %s271, 4
      %s273 = scalar_lea.vmem %s2, %s272
      %p274 = scmp.lt.s32.totalorder %s16, 1
      %s275 = scalar_select %p274, %s16, 1
      %s276 = smul.addr %s275, 8
      %s277 = scalar_lea.vmem %s3, %s276
      %p278 = scmp.lt.s32.totalorder %s16, 1
      %s279 = scalar_select %p278, %s16, 1
      %s280 = scalar_lea.vmem %s4, %s279
      %p281 = scmp.lt.s32.totalorder %s16, 1
      %s282 = scalar_select %p281, %s16, 1
      %s283 = smul.addr %s282, 4
      %s284 = scalar_lea.vmem %s5, %s283
      %v286 = vld [vmem:[%s265] sm:$0xf]
      %v287 = vld [vmem:[%s269] sm:$0xf]
      %v288 = vld [vmem:[%s273] sm:$0xf]
      %v289 = vld [vmem:[%s277] sm:$0xff]
      %v290 = vld [vmem:[%s280] sm:$0x1]
      %291 = vset.pattern.permute.xlu0 0
      %292 = vperm.xlu0 %291, %v289
      %v293 = vpop.permute.xlu0 %292
      %v294 = vlaneseq
      %v295 = vshrl.u32 %v294, 7
      %v296 = vsub.s32 0, %v295
      %v297 = vrot.slane %v290, %v296
      %v298 = vmul.u32 %v293, %v297
      %vm299 = vcmp.gt.s32.totalorder %v298, 0
      %vm300 = vcmask 64512
      %v302 = vsel %vm300, %v286, 0
      %v305 = vsel %vm300, %v287, 0
      %307 = vmatprep.subr.bf16.mxu0 0
      %308 = vmatpush1.bf16.xpose.msra.mxu0 %v305
      %309 = vmatprep.subr.bf16.mxu0 0
      %310 = vmatpush1.bf16.xpose.msra.mxu0 0
      %311 = vmatprep.subr.bf16.mxu0 0
      %312 = vmatpush1.bf16.xpose.msra.mxu0 0
      %313 = vmatprep.subr.bf16.mxu0 0
      %314 = vmatpush1.bf16.xpose.msra.mxu0 0
      %315 = vmatprep.subr.bf16.mxu0 0
      %316 = vmatpush1.bf16.xpose.msra.mxu0 0
      %317 = vmatprep.subr.bf16.mxu0 0
      %318 = vmatpush1.bf16.xpose.msra.mxu0 0
      %319 = vmatprep.subr.bf16.mxu0 0
      %320 = vmatpush1.bf16.xpose.msra.mxu0 0
      %321 = vmatprep.subr.bf16.mxu0 0
      %322 = vmatpush1.bf16.xpose.msra.mxu0 0
      %323 = vmatprep.subr.bf16.mxu0 0
      %324 = vmatpush1.bf16.xpose.msra.mxu0 0
      %325 = vmatprep.subr.bf16.mxu0 0
      %326 = vmatpush1.bf16.xpose.msra.mxu0 0
      %327 = vmatprep.subr.bf16.mxu0 0
      %328 = vmatpush1.bf16.xpose.msra.mxu0 0
      %329 = vmatprep.subr.bf16.mxu0 0
      %330 = vmatpush1.bf16.xpose.msra.mxu0 0
      %331 = vmatprep.subr.bf16.mxu0 0
      %332 = vmatpush1.bf16.xpose.msra.mxu0 0
      %333 = vmatprep.subr.bf16.mxu0 0
      %334 = vmatpush1.bf16.xpose.msra.mxu0 0
      %335 = vmatprep.subr.bf16.mxu0 0
      %336 = vmatpush1.bf16.xpose.msra.mxu0 0
      %337 = vmatprep.subr.bf16.mxu0 0
      %338 = vmatpush1.bf16.xpose.msra.mxu0 0
      %339 = vmatprep.mubr.bf16.mxu0 0
      %340 = vmatmul.mubr.bf16.gmra.mrb[0].mxu0 %v302
      %v341 = vpop.f32.mrb[0].mxu0
      %v342 = vadd.f32 0.0, %v341
      %v343 = vpop.f32.mrb[0].mxu0
      %v344 = vpop.f32.mrb[0].mxu0
      %v345 = vpop.f32.mrb[0].mxu0
      %346 = vdwg.mxu0
      %v347 = vmul.f32 %v342, 0.35355338
      %v348 = vsel %vm299, %v347, -1e+09
      %v349 = vsel %vm300, %v348, -inf
      %350 = vmax.xlane.f32.xlu0 %v349
      %v351 = vpop.xlane.xlu0 %350
      %v352 = vsub.f32 %v348, %v351
      %v353 = vmul.f32 %v352, 1.442695
      %v354 = vpow.pop %v353
      %v355 = vsel %vm300, %v354, 0.0
      %356 = vadd.xlane.f32.xlu0 %v355
      %v357 = vpop.xlane.xlu0 %356
      %v358 = vrcp.pop %v357
      %v359 = vpack.c.bf16 %v354, %v354
      %v361 = vsel %vm300, %v359, 0
      %vm363 = vcmask 1043456
      %v365 = vsel %vm363, %v288, 0
      %367 = vmatprep.subr.bf16.mxu0 0
      %368 = vmatpush1.bf16.msra.mxu0 %v365
      %369 = vmatprep.subr.bf16.mxu0 0
      %370 = vmatpush1.bf16.msra.mxu0 0
      %371 = vmatprep.subr.bf16.mxu0 0
      %372 = vmatpush1.bf16.msra.mxu0 0
      %373 = vmatprep.subr.bf16.mxu0 0
      %374 = vmatpush1.bf16.msra.mxu0 0
      %375 = vmatprep.subr.bf16.mxu0 0
      %376 = vmatpush1.bf16.msra.mxu0 0
      %377 = vmatprep.subr.bf16.mxu0 0
      %378 = vmatpush1.bf16.msra.mxu0 0
      %379 = vmatprep.subr.bf16.mxu0 0
      %380 = vmatpush1.bf16.msra.mxu0 0
      %381 = vmatprep.subr.bf16.mxu0 0
      %382 = vmatpush1.bf16.msra.mxu0 0
      %383 = vmatprep.subr.bf16.mxu0 0
      %384 = vmatpush1.bf16.msra.mxu0 0
      %385 = vmatprep.subr.bf16.mxu0 0
      %386 = vmatpush1.bf16.msra.mxu0 0
      %387 = vmatprep.subr.bf16.mxu0 0
      %388 = vmatpush1.bf16.msra.mxu0 0
      %389 = vmatprep.subr.bf16.mxu0 0
      %390 = vmatpush1.bf16.msra.mxu0 0
      %391 = vmatprep.subr.bf16.mxu0 0
      %392 = vmatpush1.bf16.msra.mxu0 0
      %393 = vmatprep.subr.bf16.mxu0 0
      %394 = vmatpush1.bf16.msra.mxu0 0
      %395 = vmatprep.subr.bf16.mxu0 0
      %396 = vmatpush1.bf16.msra.mxu0 0
      %397 = vmatprep.subr.bf16.mxu0 0
      %398 = vmatpush1.bf16.msra.mxu0 0
      %399 = vmatprep.mubr.bf16.mxu0 0
      %400 = vmatmul.mubr.bf16.gmra.mrb[0].mxu0 %v361
      %v401 = vpop.f32.mrb[0].mxu0
      %v402 = vadd.f32 0.0, %v401
      %v403 = vpop.f32.mrb[0].mxu0
      %v404 = vpop.f32.mrb[0].mxu0
      %v405 = vpop.f32.mrb[0].mxu0
      %406 = vdwg.mxu0
      %v407 = vmul.f32 %v402, %v358
      %v409 = vunpack.c.l.b16 %v286
      %v410 = vpack.c.b16 %v409, %v409
      %411 = vrot.lane.b32.xlu0 %v410, 120
      %v412 = vpop.permute.xlu0 %411
      %v414 = vunpack.c.l.b16 %v287
      %v415 = vpack.c.b16 %v414, %v414
      %416 = vrot.lane.b32.xlu0 %v415, 120
      %v417 = vpop.permute.xlu0 %416
      %v419 = vsel %vm300, %v412, 0
      %v422 = vsel %vm300, %v417, 0
      %424 = vmatprep.subr.bf16.mxu0 0
      %425 = vmatpush1.bf16.xpose.msra.mxu0 %v422
      %426 = vmatprep.subr.bf16.mxu0 0
      %427 = vmatpush1.bf16.xpose.msra.mxu0 0
      %428 = vmatprep.subr.bf16.mxu0 0
      %429 = vmatpush1.bf16.xpose.msra.mxu0 0
      %430 = vmatprep.subr.bf16.mxu0 0
      %431 = vmatpush1.bf16.xpose.msra.mxu0 0
      %432 = vmatprep.subr.bf16.mxu0 0
      %433 = vmatpush1.bf16.xpose.msra.mxu0 0
      %434 = vmatprep.subr.bf16.mxu0 0
      %435 = vmatpush1.bf16.xpose.msra.mxu0 0
      %436 = vmatprep.subr.bf16.mxu0 0
      %437 = vmatpush1.bf16.xpose.msra.mxu0 0
      %438 = vmatprep.subr.bf16.mxu0 0
      %439 = vmatpush1.bf16.xpose.msra.mxu0 0
      %440 = vmatprep.subr.bf16.mxu0 0
      %441 = vmatpush1.bf16.xpose.msra.mxu0 0
      %442 = vmatprep.subr.bf16.mxu0 0
      %443 = vmatpush1.bf16.xpose.msra.mxu0 0
      %444 = vmatprep.subr.bf16.mxu0 0
      %445 = vmatpush1.bf16.xpose.msra.mxu0 0
      %446 = vmatprep.subr.bf16.mxu0 0
      %447 = vmatpush1.bf16.xpose.msra.mxu0 0
      %448 = vmatprep.subr.bf16.mxu0 0
      %449 = vmatpush1.bf16.xpose.msra.mxu0 0
      %450 = vmatprep.subr.bf16.mxu0 0
      %451 = vmatpush1.bf16.xpose.msra.mxu0 0
      %452 = vmatprep.subr.bf16.mxu0 0
      %453 = vmatpush1.bf16.xpose.msra.mxu0 0
      %454 = vmatprep.subr.bf16.mxu0 0
      %455 = vmatpush1.bf16.xpose.msra.mxu0 0
      %456 = vmatprep.mubr.bf16.mxu0 0
      %457 = vmatmul.mubr.bf16.gmra.mrb[0].mxu0 %v419
      %v458 = vpop.f32.mrb[0].mxu0
      %v459 = vadd.f32 0.0, %v458
      %v460 = vpop.f32.mrb[0].mxu0
      %v461 = vpop.f32.mrb[0].mxu0
      %v462 = vpop.f32.mrb[0].mxu0
      %463 = vdwg.mxu0
      %v464 = vmul.f32 %v459, 0.35355338
      %v465 = vsel %vm299, %v464, -1e+09
      %v466 = vsel %vm300, %v465, -inf
      %467 = vmax.xlane.f32.xlu0 %v466
      %v468 = vpop.xlane.xlu0 %467
      %v469 = vsub.f32 %v465, %v468
      %v470 = vmul.f32 %v469, 1.442695
      %v471 = vpow.pop %v470
      %v472 = vsel %vm300, %v471, 0.0
      %473 = vadd.xlane.f32.xlu0 %v472
      %v474 = vpop.xlane.xlu0 %473
      %v475 = vrcp.pop %v474
      %v476 = vpack.c.bf16 %v471, %v471
      %v478 = vunpack.c.l.b16 %v288
      %v479 = vpack.c.b16 %v478, %v478
      %480 = vrot.lane.b32.xlu0 %v479, 120
      %v481 = vpop.permute.xlu0 %480
      %v483 = vsel %vm300, %v476, 0
      %v486 = vsel %vm363, %v481, 0
      %488 = vmatprep.subr.bf16.mxu0 0
      %489 = vmatpush1.bf16.msra.mxu0 %v486
      %490 = vmatprep.subr.bf16.mxu0 0
      %491 = vmatpush1.bf16.msra.mxu0 0
      %492 = vmatprep.subr.bf16.mxu0 0
      %493 = vmatpush1.bf16.msra.mxu0 0
      %494 = vmatprep.subr.bf16.mxu0 0
      %495 = vmatpush1.bf16.msra.mxu0 0
      %496 = vmatprep.subr.bf16.mxu0 0
      %497 = vmatpush1.bf16.msra.mxu0 0
      %498 = vmatprep.subr.bf16.mxu0 0
      %499 = vmatpush1.bf16.msra.mxu0 0
      %500 = vmatprep.subr.bf16.mxu0 0
      %501 = vmatpush1.bf16.msra.mxu0 0
      %502 = vmatprep.subr.bf16.mxu0 0
      %503 = vmatpush1.bf16.msra.mxu0 0
      %504 = vmatprep.subr.bf16.mxu0 0
      %505 = vmatpush1.bf16.msra.mxu0 0
      %506 = vmatprep.subr.bf16.mxu0 0
      %507 = vmatpush1.bf16.msra.mxu0 0
      %508 = vmatprep.subr.bf16.mxu0 0
      %509 = vmatpush1.bf16.msra.mxu0 0
      %510 = vmatprep.subr.bf16.mxu0 0
      %511 = vmatpush1.bf16.msra.mxu0 0
      %512 = vmatprep.subr.bf16.mxu0 0
      %513 = vmatpush1.bf16.msra.mxu0 0
      %514 = vmatprep.subr.bf16.mxu0 0
      %515 = vmatpush1.bf16.msra.mxu0 0
      %516 = vmatprep.subr.bf16.mxu0 0
      %517 = vmatpush1.bf16.msra.mxu0 0
      %518 = vmatprep.subr.bf16.mxu0 0
      %519 = vmatpush1.bf16.msra.mxu0 0
      %520 = vmatprep.mubr.bf16.mxu0 0
      %521 = vmatmul.mubr.bf16.gmra.mrb[0].mxu0 %v483
      %v522 = vpop.f32.mrb[0].mxu0
      %v523 = vadd.f32 0.0, %v522
      %v524 = vpop.f32.mrb[0].mxu0
      %v525 = vpop.f32.mrb[0].mxu0
      %v526 = vpop.f32.mrb[0].mxu0
      %527 = vdwg.mxu0
      %v528 = vmul.f32 %v523, %v475
      %529 = vrot.lane.b32.xlu0 %v410, 112
      %v530 = vpop.permute.xlu0 %529
      %531 = vrot.lane.b32.xlu0 %v415, 112
      %v532 = vpop.permute.xlu0 %531
      %v534 = vsel %vm300, %v530, 0
      %v537 = vsel %vm300, %v532, 0
      %539 = vmatprep.subr.bf16.mxu0 0
      %540 = vmatpush1.bf16.xpose.msra.mxu0 %v537
      %541 = vmatprep.subr.bf16.mxu0 0
      %542 = vmatpush1.bf16.xpose.msra.mxu0 0
      %543 = vmatprep.subr.bf16.mxu0 0
      %544 = vmatpush1.bf16.xpose.msra.mxu0 0
      %545 = vmatprep.subr.bf16.mxu0 0
      %546 = vmatpush1.bf16.xpose.msra.mxu0 0
      %547 = vmatprep.subr.bf16.mxu0 0
      %548 = vmatpush1.bf16.xpose.msra.mxu0 0
      %549 = vmatprep.subr.bf16.mxu0 0
      %550 = vmatpush1.bf16.xpose.msra.mxu0 0
      %551 = vmatprep.subr.bf16.mxu0 0
      %552 = vmatpush1.bf16.xpose.msra.mxu0 0
      %553 = vmatprep.subr.bf16.mxu0 0
      %554 = vmatpush1.bf16.xpose.msra.mxu0 0
      %555 = vmatprep.subr.bf16.mxu0 0
      %556 = vmatpush1.bf16.xpose.msra.mxu0 0
      %557 = vmatprep.subr.bf16.mxu0 0
      %558 = vmatpush1.bf16.xpose.msra.mxu0 0
      %559 = vmatprep.subr.bf16.mxu0 0
      %560 = vmatpush1.bf16.xpose.msra.mxu0 0
      %561 = vmatprep.subr.bf16.mxu0 0
      %562 = vmatpush1.bf16.xpose.msra.mxu0 0
      %563 = vmatprep.subr.bf16.mxu0 0
      %564 = vmatpush1.bf16.xpose.msra.mxu0 0
      %565 = vmatprep.subr.bf16.mxu0 0
      %566 = vmatpush1.bf16.xpose.msra.mxu0 0
      %567 = vmatprep.subr.bf16.mxu0 0
      %568 = vmatpush1.bf16.xpose.msra.mxu0 0
      %569 = vmatprep.subr.bf16.mxu0 0
      %570 = vmatpush1.bf16.xpose.msra.mxu0 0
      %571 = vmatprep.mubr.bf16.mxu0 0
      %572 = vmatmul.mubr.bf16.gmra.mrb[0].mxu0 %v534
      %v573 = vpop.f32.mrb[0].mxu0
      %v574 = vadd.f32 0.0, %v573
      %v575 = vpop.f32.mrb[0].mxu0
      %v576 = vpop.f32.mrb[0].mxu0
      %v577 = vpop.f32.mrb[0].mxu0
      %578 = vdwg.mxu0
      %v579 = vmul.f32 %v574, 0.35355338
      %v580 = vsel %vm299, %v579, -1e+09
      %v581 = vsel %vm300, %v580, -inf
      %582 = vmax.xlane.f32.xlu0 %v581
      %v583 = vpop.xlane.xlu0 %582
      %v584 = vsub.f32 %v580, %v583
      %v585 = vmul.f32 %v584, 1.442695
      %v586 = vpow.pop %v585
      %v587 = vsel %vm300, %v586, 0.0
      %588 = vadd.xlane.f32.xlu0 %v587
      %v589 = vpop.xlane.xlu0 %588
      %v590 = vrcp.pop %v589
      %v591 = vpack.c.bf16 %v586, %v586
      %592 = vrot.lane.b32.xlu0 %v479, 112
      %v593 = vpop.permute.xlu0 %592
      %v595 = vsel %vm300, %v591, 0
      %v598 = vsel %vm363, %v593, 0
      %600 = vmatprep.subr.bf16.mxu0 0
      %601 = vmatpush1.bf16.msra.mxu0 %v598
      %602 = vmatprep.subr.bf16.mxu0 0
      %603 = vmatpush1.bf16.msra.mxu0 0
      %604 = vmatprep.subr.bf16.mxu0 0
      %605 = vmatpush1.bf16.msra.mxu0 0
      %606 = vmatprep.subr.bf16.mxu0 0
      %607 = vmatpush1.bf16.msra.mxu0 0
      %608 = vmatprep.subr.bf16.mxu0 0
      %609 = vmatpush1.bf16.msra.mxu0 0
      %610 = vmatprep.subr.bf16.mxu0 0
      %611 = vmatpush1.bf16.msra.mxu0 0
      %612 = vmatprep.subr.bf16.mxu0 0
      %613 = vmatpush1.bf16.msra.mxu0 0
      %614 = vmatprep.subr.bf16.mxu0 0
      %615 = vmatpush1.bf16.msra.mxu0 0
      %616 = vmatprep.subr.bf16.mxu0 0
      %617 = vmatpush1.bf16.msra.mxu0 0
      %618 = vmatprep.subr.bf16.mxu0 0
      %619 = vmatpush1.bf16.msra.mxu0 0
      %620 = vmatprep.subr.bf16.mxu0 0
      %621 = vmatpush1.bf16.msra.mxu0 0
      %622 = vmatprep.subr.bf16.mxu0 0
      %623 = vmatpush1.bf16.msra.mxu0 0
      %624 = vmatprep.subr.bf16.mxu0 0
      %625 = vmatpush1.bf16.msra.mxu0 0
      %626 = vmatprep.subr.bf16.mxu0 0
      %627 = vmatpush1.bf16.msra.mxu0 0
      %628 = vmatprep.subr.bf16.mxu0 0
      %629 = vmatpush1.bf16.msra.mxu0 0
      %630 = vmatprep.subr.bf16.mxu0 0
      %631 = vmatpush1.bf16.msra.mxu0 0
      %632 = vmatprep.mubr.bf16.mxu0 0
      %633 = vmatmul.mubr.bf16.gmra.mrb[0].mxu0 %v595
      %v634 = vpop.f32.mrb[0].mxu0
      %v635 = vadd.f32 0.0, %v634
      %v636 = vpop.f32.mrb[0].mxu0
      %v637 = vpop.f32.mrb[0].mxu0
      %v638 = vpop.f32.mrb[0].mxu0
      %639 = vdwg.mxu0
      %v640 = vmul.f32 %v635, %v590
      %641 = vrot.lane.b32.xlu0 %v410, 104
      %v642 = vpop.permute.xlu0 %641
      %643 = vrot.lane.b32.xlu0 %v415, 104
      %v644 = vpop.permute.xlu0 %643
      %v646 = vsel %vm300, %v642, 0
      %v649 = vsel %vm300, %v644, 0
      %651 = vmatprep.subr.bf16.mxu0 0
      %652 = vmatpush1.bf16.xpose.msra.mxu0 %v649
      %653 = vmatprep.subr.bf16.mxu0 0
      %654 = vmatpush1.bf16.xpose.msra.mxu0 0
      %655 = vmatprep.subr.bf16.mxu0 0
      %656 = vmatpush1.bf16.xpose.msra.mxu0 0
      %657 = vmatprep.subr.bf16.mxu0 0
      %658 = vmatpush1.bf16.xpose.msra.mxu0 0
      %659 = vmatprep.subr.bf16.mxu0 0
      %660 = vmatpush1.bf16.xpose.msra.mxu0 0
      %661 = vmatprep.subr.bf16.mxu0 0
      %662 = vmatpush1.bf16.xpose.msra.mxu0 0
      %663 = vmatprep.subr.bf16.mxu0 0
      %664 = vmatpush1.bf16.xpose.msra.mxu0 0
      %665 = vmatprep.subr.bf16.mxu0 0
      %666 = vmatpush1.bf16.xpose.msra.mxu0 0
      %667 = vmatprep.subr.bf16.mxu0 0
      %668 = vmatpush1.bf16.xpose.msra.mxu0 0
      %669 = vmatprep.subr.bf16.mxu0 0
      %670 = vmatpush1.bf16.xpose.msra.mxu0 0
      %671 = vmatprep.subr.bf16.mxu0 0
      %672 = vmatpush1.bf16.xpose.msra.mxu0 0
      %673 = vmatprep.subr.bf16.mxu0 0
      %674 = vmatpush1.bf16.xpose.msra.mxu0 0
      %675 = vmatprep.subr.bf16.mxu0 0
      %676 = vmatpush1.bf16.xpose.msra.mxu0 0
      %677 = vmatprep.subr.bf16.mxu0 0
      %678 = vmatpush1.bf16.xpose.msra.mxu0 0
      %679 = vmatprep.subr.bf16.mxu0 0
      %680 = vmatpush1.bf16.xpose.msra.mxu0 0
      %681 = vmatprep.subr.bf16.mxu0 0
      %682 = vmatpush1.bf16.xpose.msra.mxu0 0
      %683 = vmatprep.mubr.bf16.mxu0 0
      %684 = vmatmul.mubr.bf16.gmra.mrb[0].mxu0 %v646
      %v685 = vpop.f32.mrb[0].mxu0
      %v686 = vadd.f32 0.0, %v685
      %v687 = vpop.f32.mrb[0].mxu0
      %v688 = vpop.f32.mrb[0].mxu0
      %v689 = vpop.f32.mrb[0].mxu0
      %690 = vdwg.mxu0
      %v691 = vmul.f32 %v686, 0.35355338
      %v692 = vsel %vm299, %v691, -1e+09
      %v693 = vsel %vm300, %v692, -inf
      %694 = vmax.xlane.f32.xlu0 %v693
      %v695 = vpop.xlane.xlu0 %694
      %v696 = vsub.f32 %v692, %v695
      %v697 = vmul.f32 %v696, 1.442695
      %v698 = vpow.pop %v697
      %v699 = vsel %vm300, %v698, 0.0
      %700 = vadd.xlane.f32.xlu0 %v699
      %v701 = vpop.xlane.xlu0 %700
      %v702 = vrcp.pop %v701
      %v703 = vpack.c.bf16 %v698, %v698
      %704 = vrot.lane.b32.xlu0 %v479, 104
      %v705 = vpop.permute.xlu0 %704
      %v707 = vsel %vm300, %v703, 0
      %v710 = vsel %vm363, %v705, 0
      %712 = vmatprep.subr.bf16.mxu0 0
      %713 = vmatpush1.bf16.msra.mxu0 %v710
      %714 = vmatprep.subr.bf16.mxu0 0
      %715 = vmatpush1.bf16.msra.mxu0 0
      %716 = vmatprep.subr.bf16.mxu0 0
      %717 = vmatpush1.bf16.msra.mxu0 0
      %718 = vmatprep.subr.bf16.mxu0 0
      %719 = vmatpush1.bf16.msra.mxu0 0
      %720 = vmatprep.subr.bf16.mxu0 0
      %721 = vmatpush1.bf16.msra.mxu0 0
      %722 = vmatprep.subr.bf16.mxu0 0
      %723 = vmatpush1.bf16.msra.mxu0 0
      %724 = vmatprep.subr.bf16.mxu0 0
      %725 = vmatpush1.bf16.msra.mxu0 0
      %726 = vmatprep.subr.bf16.mxu0 0
      %727 = vmatpush1.bf16.msra.mxu0 0
      %728 = vmatprep.subr.bf16.mxu0 0
      %729 = vmatpush1.bf16.msra.mxu0 0
      %730 = vmatprep.subr.bf16.mxu0 0
      %731 = vmatpush1.bf16.msra.mxu0 0
      %732 = vmatprep.subr.bf16.mxu0 0
      %733 = vmatpush1.bf16.msra.mxu0 0
      %734 = vmatprep.subr.bf16.mxu0 0
      %735 = vmatpush1.bf16.msra.mxu0 0
      %736 = vmatprep.subr.bf16.mxu0 0
      %737 = vmatpush1.bf16.msra.mxu0 0
      %738 = vmatprep.subr.bf16.mxu0 0
      %739 = vmatpush1.bf16.msra.mxu0 0
      %740 = vmatprep.subr.bf16.mxu0 0
      %741 = vmatpush1.bf16.msra.mxu0 0
      %742 = vmatprep.subr.bf16.mxu0 0
      %743 = vmatpush1.bf16.msra.mxu0 0
      %744 = vmatprep.mubr.bf16.mxu0 0
      %745 = vmatmul.mubr.bf16.gmra.mrb[0].mxu0 %v707
      %v746 = vpop.f32.mrb[0].mxu0
      %v747 = vadd.f32 0.0, %v746
      %v748 = vpop.f32.mrb[0].mxu0
      %v749 = vpop.f32.mrb[0].mxu0
      %v750 = vpop.f32.mrb[0].mxu0
      %751 = vdwg.mxu0
      %v752 = vmul.f32 %v747, %v702
      %754 = vrot.lane.b32.xlu0 %v528, 8
      %v755 = vpop.permute.xlu0 %754
      %758 = vrot.lane.b32.xlu0 %v640, 16
      %v759 = vpop.permute.xlu0 %758
      %762 = vrot.lane.b32.xlu0 %v752, 24
      %v763 = vpop.permute.xlu0 %762
      %v765 = vsel %vm300, %v407, %v755
      %vm766 = vcmask 130048
      %v767 = vsel %vm766, %v765, %v759
      %vm768 = vcmask 195584
      %v769 = vsel %vm768, %v767, %v763
      %v770 = vpack.c.bf16 %v769, %v769
      %vm771 = vcmask 257024
      %772 = vst.msk [vmem:[%s284] sm:$0xf] %vm771, %v770
      %p773 = scmp.lt.s32.totalorder %s16, 1
      %s774 = scalar_select %p773, %s16, 1
      %s775 = smul.addr %s774, 4
      %s776 = scalar_lea.vmem %s5, %s775
      // Predicated region
      $region41: #{transformer_forward.40} parent=39 // pred_check
        %p777 = pneg %p164
      $region42: #{transformer_forward.40} parent=39 // pred_check_branch
        %779 = sbr.rel (%p777) target = $region44
      $region43: #{transformer_forward.40} parent=39 // pred_region
        _
      $region44: #{transformer_forward.40} parent=39 // pred_fallthru
        _
    $region40: #{transformer_forward.40} parent=5 // pred_fallthru
      _
    %p780 = scmp.le.s32.totalorder 2, %s11
    // Predicated region
    $region45: #{transformer_forward.40} parent=5 // pred_check
      %p781 = pneg %p780
    $region46: #{transformer_forward.40} parent=5 // pred_check_branch
      %783 = sbr.rel (%p781) target = $region48
    $region47: #{transformer_forward.40} parent=5 // pred_region
      %s784 = ssub.s32 %s11, 2
      // Predicated region
      $region49: #{transformer_forward.40} parent=47 // pred_check
        %p785 = pneg %p170
      $region50: #{transformer_forward.40} parent=47 // pred_check_branch
        %787 = sbr.rel (%p785) target = $region52
      $region51: #{transformer_forward.40} parent=47 // pred_region
        %p788 = scmp.lt.s32.totalorder %s17, 1
        %s789 = scalar_select %p788, %s17, 1
        %s790 = smul.addr %s789, 4
        %s791 = scalar_lea.vmem %s5, %s790
      $region52: #{transformer_forward.40} parent=47 // pred_fallthru
        _
    $region48: #{transformer_forward.40} parent=5 // pred_fallthru
      _
  $region6: #{transformer_forward.40} parent=0 // loop_footer
    %s15 = sadd.s32 1, %s11
  $region7: #{transformer_forward.40} parent=0 // loop_footer_branch
    %10 = sbr.rel target = $region3
  $region8: #{transformer_forward.40} parent=0 // loop_exit
    _

// kernel: transformer_forward.42
$region0: #{transformer_forward.42}
  #allocation0 [shape = 'u32[]', space=smem, size = 0x4, offset = 0x4, fixed_abs, tag = 'smem constant byte address 0x4 - core index']
  #allocation1 [shape = 'u32[144,128]{1,0:T(1,128)}', space=vmem, size = 0x12000, scoped, tag = 'internal scratch']
  %s0 = inlined_call_operand.vmem [shape: bf16[16,32], index: 0, kind: input, shape index: {}]
  %s1 = inlined_call_operand.vmem [shape: bf16[16,32], index: 1, kind: input, shape index: {}]
  %s2 = inlined_call_operand.vmem [shape: f32[1,32], index: 2, kind: input, shape index: {}]
  %s3 = inlined_call_operand.vmem [shape: f32[1,32], index: 3, kind: input, shape index: {}]
  %s4 = inlined_call_operand.vmem [shape: bf16[16,32], index: 4, kind: output, shape index: {}]
  %s5 = sld [smem:[#allocation0]]
  $region26: #{transformer_forward.42} parent=0
    _
  %s7 = ssub.s32 1, %s5
  %s8 = scalar_select 0, %s7, %s5
  // Predicated region
  $region2: #{transformer_forward.42} parent=0 // pred_check
    _
  $region3: #{transformer_forward.42} parent=0 // pred_check_branch
    %10 = sbr.rel (0) target = $region5
  $region4: #{transformer_forward.42} parent=0 // pred_region
    _
  $region5: #{transformer_forward.42} parent=0 // pred_fallthru
    _
  // Predicated region
  $region6: #{transformer_forward.42} parent=0 // pred_check
    _
  $region7: #{transformer_forward.42} parent=0 // pred_check_branch
    %12 = sbr.rel (0) target = $region9
  $region8: #{transformer_forward.42} parent=0 // pred_region
    _
  $region9: #{transformer_forward.42} parent=0 // pred_fallthru
    _
  // Predicated region
  $region10: #{transformer_forward.42} parent=0 // pred_check
    _
  $region11: #{transformer_forward.42} parent=0 // pred_check_branch
    %14 = sbr.rel (0) target = $region13
  $region12: #{transformer_forward.42} parent=0 // pred_region
    _
  $region13: #{transformer_forward.42} parent=0 // pred_fallthru
    _
  // Predicated region
  $region14: #{transformer_forward.42} parent=0 // pred_check
    _
  $region15: #{transformer_forward.42} parent=0 // pred_check_branch
    %16 = sbr.rel (0) target = $region17
  $region16: #{transformer_forward.42} parent=0 // pred_region
    _
  $region17: #{transformer_forward.42} parent=0 // pred_fallthru
    _
  %v17 = vld [vmem:[%s0] sm:$0xf]
  %v18 = vld [vmem:[%s0 + $0x4] sm:$0xf]
  %v19 = vunpack.c.l.bf16 %v17
  %v20 = vunpack.c.l.bf16 %v18
  %v21 = vld [vmem:[%s1] sm:$0xf]
  %v22 = vld [vmem:[%s1 + $0x4] sm:$0xf]
  %v23 = vunpack.c.l.bf16 %v21
  %v24 = vunpack.c.l.bf16 %v22
  %v25 = vadd.f32 %v19, %v23
  %v26 = vadd.f32 %v20, %v24
  %vm27 = vcmask 261120
  %v28 = vsel %vm27, %v25, 0.0
  %29 = vadd.xlane.f32.xlu0 %v28
  %v30 = vpop.xlane.xlu0 %29
  %v31 = vsel %vm27, %v26, 0.0
  %32 = vadd.xlane.f32.xlu0 %v31
  %v33 = vpop.xlane.xlu0 %32
  %v34 = vrcp.pop 32.0
  %v35 = vmul.f32 %v30, %v34
  %v36 = vmul.f32 %v33, %v34
  %v37 = vsub.f32 %v25, %v35
  %v38 = vsub.f32 %v26, %v36
  %v39 = vmul.f32 %v37, %v37
  %v40 = vmul.f32 %v38, %v38
  %v41 = vsel %vm27, %v39, 0.0
  %42 = vadd.xlane.f32.xlu0 %v41
  %v43 = vpop.xlane.xlu0 %42
  %v44 = vsel %vm27, %v40, 0.0
  %45 = vadd.xlane.f32.xlu0 %v44
  %v46 = vpop.xlane.xlu0 %45
  %v47 = vmul.f32 %v43, %v34
  %v48 = vmul.f32 %v46, %v34
  %v49 = vadd.f32 %v47, 1e-05
  %v50 = vadd.f32 %v48, 1e-05
  %v51 = vrsqrt.pop %v49
  %v52 = vrsqrt.pop %v50
  %v53 = vmul.f32 %v37, %v51
  %v54 = vmul.f32 %v38, %v52
  %v55 = vld [vmem:[%s2] sm:$0x1]
  %v57 = vlaneseq
  %v58 = vshrl.u32 %v57, 7
  %v59 = vsub.s32 0, %v58
  %v60 = vrot.slane %v55, %v59
  %v62 = vmul.f32 %v53, %v60
  %v63 = vmul.f32 %v54, %v60
  %v64 = vld [vmem:[%s3] sm:$0x1]
  %v66 = vlaneseq
  %v67 = vshrl.u32 %v66, 7
  %v68 = vsub.s32 0, %v67
  %v69 = vrot.slane %v64, %v68
  %v71 = vadd.f32 %v62, %v69
  %v72 = vadd.f32 %v63, %v69
  %v73 = vpack.c.bf16 %v72, %v71
  %v75 = vunpack.c.l.b16 %v73
  %v76 = vunpack.c.h.b16 %v73
  %v77 = vpack.c.b16 %v75, %v75
  %v78 = vpack.c.b16 %v76, %v76
  %vm81 = vcmask 257024
  %82 = vst.msk [vmem:[%s4] sm:$0xf] %vm81, %v77
  %83 = vst.msk [vmem:[%s4 + $0x4] sm:$0xf] %vm81, %v78
  // Predicated region
  $region18: #{transformer_forward.42} parent=0 // pred_check
    _
  $region19: #{transformer_forward.42} parent=0 // pred_check_branch
    %85 = sbr.rel (0) target = $region21
  $region20: #{transformer_forward.42} parent=0 // pred_region
    _
  $region21: #{transformer_forward.42} parent=0 // pred_fallthru
    _
  // Predicated region
  $region22: #{transformer_forward.42} parent=0 // pred_check
    _
  $region23: #{transformer_forward.42} parent=0 // pred_check_branch
    %87 = sbr.rel (0) target = $region25
  $region24: #{transformer_forward.42} parent=0 // pred_region
    _
  $region25: #{transformer_forward.42} parent=0 // pred_fallthru
    _

// kernel: transformer_forward.43
$region0: #{transformer_forward.43}
  #allocation0 [shape = 'u32[]', space=smem, size = 0x4, offset = 0x4, fixed_abs, tag = 'smem constant byte address 0x4 - core index']
  #allocation1 [shape = 'u32[144,128]{1,0:T(1,128)}', space=vmem, size = 0x12000, scoped, tag = 'internal scratch']
  #allocation2 [shape = 'f32[16,128]{1,0:T(8,128)}', space=vmem, size = 0x2000, scoped, tag = 'scratch operand']
  %s0 = inlined_call_operand.vmem [shape: bf16[16,32], index: 0, kind: input, shape index: {}]
  %s1 = inlined_call_operand.vmem [shape: bf16[32,128], index: 1, kind: input, shape index: {}]
  %s2 = inlined_call_operand.vmem [shape: f32[1,128], index: 2, kind: input, shape index: {}]
  %s3 = inlined_call_operand.vmem [shape: bf16[16,128], index: 3, kind: output, shape index: {}]
  %s4 = sld [smem:[#allocation0]]
  $region30: #{transformer_forward.43} parent=0
    _
  %s6 = ssub.s32 1, %s4
  %s7 = scalar_select 0, %s6, %s4
  // Predicated region
  $region2: #{transformer_forward.43} parent=0 // pred_check
    _
  $region3: #{transformer_forward.43} parent=0 // pred_check_branch
    %9 = sbr.rel (0) target = $region5
  $region4: #{transformer_forward.43} parent=0 // pred_region
    _
  $region5: #{transformer_forward.43} parent=0 // pred_fallthru
    _
  // Predicated region
  $region6: #{transformer_forward.43} parent=0 // pred_check
    _
  $region7: #{transformer_forward.43} parent=0 // pred_check_branch
    %11 = sbr.rel (0) target = $region9
  $region8: #{transformer_forward.43} parent=0 // pred_region
    _
  $region9: #{transformer_forward.43} parent=0 // pred_fallthru
    _
  // Predicated region
  $region10: #{transformer_forward.43} parent=0 // pred_check
    _
  $region11: #{transformer_forward.43} parent=0 // pred_check_branch
    %13 = sbr.rel (0) target = $region13
  $region12: #{transformer_forward.43} parent=0 // pred_region
    _
  $region13: #{transformer_forward.43} parent=0 // pred_fallthru
    _
  %p15 = scmp.eq.s32.totalorder 0, 0
  // Predicated region
  $region14: #{transformer_forward.43} parent=0 // pred_check
    %p16 = pneg %p15
  $region15: #{transformer_forward.43} parent=0 // pred_check_branch
    %18 = sbr.rel (%p16) target = $region17
  $region16: #{transformer_forward.43} parent=0 // pred_region
    %19 = vst [vmem:[#allocation2] sm:$0xff] 0.0
    %20 = vst [vmem:[#allocation2 + $0x8] sm:$0xff] 0.0
  $region17: #{transformer_forward.43} parent=0 // pred_fallthru
    _
  %v21 = vld [vmem:[#allocation2] sm:$0xff]
  %v22 = vld [vmem:[#allocation2 + $0x8] sm:$0xff]
  %v23 = vld [vmem:[%s0] sm:$0xf]
  %v24 = vld [vmem:[%s0 + $0x4] sm:$0xf]
  %v25 = vld [vmem:[%s1] sm:$0xf]
  %v26 = vld [vmem:[%s1 + $0x4] sm:$0xf]
  %v27 = vld [vmem:[%s1 + $0x8] sm:$0xf]
  %v28 = vld [vmem:[%s1 + $0xc] sm:$0xf]
  %v31 = vunpack.c.l.b16 %v23
  %v32 = vunpack.c.l.b16 %v24
  %v33 = vpack.c.b16 %v32, %v31
  %v38 = vunpack.c.l.b16 %v25
  %v39 = vunpack.c.l.b16 %v26
  %v40 = vunpack.c.l.b16 %v27
  %v41 = vunpack.c.l.b16 %v28
  %v42 = vpack.c.b16 %v39, %v38
  %v43 = vpack.c.b16 %v41, %v40
  %vm46 = vcmask 261120
  %v48 = vsel %vm46, %v33, 0
  %50 = vmatprep.subr.bf16.mxu0 0
  %51 = vmatpush1.bf16.msra.mxu0 %v42
  %52 = vmatprep.subr.bf16.mxu0 0
  %53 = vmatpush1.bf16.msra.mxu0 %v43
  %54 = vmatprep.subr.bf16.mxu0 0
  %55 = vmatpush1.bf16.msra.mxu0 0
  %56 = vmatprep.subr.bf16.mxu0 0
  %57 = vmatpush1.bf16.msra.mxu0 0
  %58 = vmatprep.subr.bf16.mxu0 0
  %59 = vmatpush1.bf16.msra.mxu0 0
  %60 = vmatprep.subr.bf16.mxu0 0
  %61 = vmatpush1.bf16.msra.mxu0 0
  %62 = vmatprep.subr.bf16.mxu0 0
  %63 = vmatpush1.bf16.msra.mxu0 0
  %64 = vmatprep.subr.bf16.mxu0 0
  %65 = vmatpush1.bf16.msra.mxu0 0
  %66 = vmatprep.subr.bf16.mxu0 0
  %67 = vmatpush1.bf16.msra.mxu0 0
  %68 = vmatprep.subr.bf16.mxu0 0
  %69 = vmatpush1.bf16.msra.mxu0 0
  %70 = vmatprep.subr.bf16.mxu0 0
  %71 = vmatpush1.bf16.msra.mxu0 0
  %72 = vmatprep.subr.bf16.mxu0 0
  %73 = vmatpush1.bf16.msra.mxu0 0
  %74 = vmatprep.subr.bf16.mxu0 0
  %75 = vmatpush1.bf16.msra.mxu0 0
  %76 = vmatprep.subr.bf16.mxu0 0
  %77 = vmatpush1.bf16.msra.mxu0 0
  %78 = vmatprep.subr.bf16.mxu0 0
  %79 = vmatpush1.bf16.msra.mxu0 0
  %80 = vmatprep.subr.bf16.mxu0 0
  %81 = vmatpush1.bf16.msra.mxu0 0
  %82 = vmatprep.mubr.bf16.mxu0 0
  %83 = vmatmul.mubr.bf16.gmra.mrb[0].mxu0 %v48
  %v84 = vpop.f32.mrb[0].mxu0
  %v85 = vadd.f32 0.0, %v84
  %v86 = vpop.f32.mrb[0].mxu0
  %v87 = vpop.f32.mrb[0].mxu0
  %v88 = vadd.f32 0.0, %v87
  %v89 = vpop.f32.mrb[0].mxu0
  %90 = vdwg.mxu0
  %v91 = vadd.f32 %v21, %v85
  %v92 = vadd.f32 %v22, %v88
  %93 = vst [vmem:[#allocation2] sm:$0xff] %v91
  %94 = vst [vmem:[#allocation2 + $0x8] sm:$0xff] %v92
  // Predicated region
  $region18: #{transformer_forward.43} parent=0 // pred_check
    %p95 = pneg %p15
  $region19: #{transformer_forward.43} parent=0 // pred_check_branch
    %97 = sbr.rel (%p95) target = $region21
  $region20: #{transformer_forward.43} parent=0 // pred_region
    %v98 = vld [vmem:[#allocation2] sm:$0xff]
    %v99 = vld [vmem:[#allocation2 + $0x8] sm:$0xff]
    %v100 = vld [vmem:[%s2] sm:$0x1]
    %v102 = vlaneseq
    %v103 = vshrl.u32 %v102, 7
    %v104 = vsub.s32 0, %v103
    %v105 = vrot.slane %v100, %v104
    %v107 = vadd.f32 %v98, %v105
    %v108 = vadd.f32 %v99, %v105
    %v109 = vmax.f32 %v107, 0.0
    %v110 = vmax.f32 %v108, 0.0
    %v111 = vpack.c.bf16 %v110, %v109
    %v113 = vunpack.c.l.b16 %v111
    %v114 = vunpack.c.h.b16 %v111
    %v115 = vpack.c.b16 %v113, %v113
    %v116 = vpack.c.b16 %v114, %v114
    %119 = vst [vmem:[%s3] sm:$0xf] %v115
    %120 = vst [vmem:[%s3 + $0x4] sm:$0xf] %v116
  $region21: #{transformer_forward.43} parent=0 // pred_fallthru
    _
  // Predicated region
  $region22: #{transformer_forward.43} parent=0 // pred_check
    _
  $region23: #{transformer_forward.43} parent=0 // pred_check_branch
    %122 = sbr.rel (0) target = $region25
  $region24: #{transformer_forward.43} parent=0 // pred_region
    _
  $region25: #{transformer_forward.43} parent=0 // pred_fallthru
    _
  // Predicated region
  $region26: #{transformer_forward.43} parent=0 // pred_check
    _
  $region27: #{transformer_forward.43} parent=0 // pred_check_branch
    %124 = sbr.rel (0) target = $region29
  $region28: #{transformer_forward.43} parent=0 // pred_region
    _
  $region29: #{transformer_forward.43} parent=0 // pred_fallthru
    _

// kernel: transformer_forward.44
$region0: #{transformer_forward.44}
  #allocation0 [shape = 'u32[]', space=smem, size = 0x4, offset = 0x4, fixed_abs, tag = 'smem constant byte address 0x4 - core index']
  #allocation1 [shape = 'u32[144,128]{1,0:T(1,128)}', space=vmem, size = 0x12000, scoped, tag = 'internal scratch']
  #allocation2 [shape = 'f32[16,128]{1,0:T(8,128)}', space=vmem, size = 0x2000, scoped, tag = 'scratch operand']
  %s0 = inlined_call_operand.vmem [shape: bf16[16,64], index: 0, kind: input, shape index: {}]
  %s1 = inlined_call_operand.vmem [shape: bf16[64,128], index: 1, kind: input, shape index: {}]
  %s2 = inlined_call_operand.vmem [shape: f32[1,128], index: 2, kind: input, shape index: {}]
  %s3 = inlined_call_operand.vmem [shape: bf16[16,128], index: 3, kind: output, shape index: {}]
  %s4 = sld [smem:[#allocation0]]
  $region30: #{transformer_forward.44} parent=0
    _
  %s6 = ssub.s32 1, %s4
  %s7 = scalar_select 0, %s6, %s4
  // Predicated region
  $region2: #{transformer_forward.44} parent=0 // pred_check
    _
  $region3: #{transformer_forward.44} parent=0 // pred_check_branch
    %9 = sbr.rel (0) target = $region5
  $region4: #{transformer_forward.44} parent=0 // pred_region
    _
  $region5: #{transformer_forward.44} parent=0 // pred_fallthru
    _
  // Predicated region
  $region6: #{transformer_forward.44} parent=0 // pred_check
    _
  $region7: #{transformer_forward.44} parent=0 // pred_check_branch
    %11 = sbr.rel (0) target = $region9
  $region8: #{transformer_forward.44} parent=0 // pred_region
    _
  $region9: #{transformer_forward.44} parent=0 // pred_fallthru
    _
  // Predicated region
  $region10: #{transformer_forward.44} parent=0 // pred_check
    _
  $region11: #{transformer_forward.44} parent=0 // pred_check_branch
    %13 = sbr.rel (0) target = $region13
  $region12: #{transformer_forward.44} parent=0 // pred_region
    _
  $region13: #{transformer_forward.44} parent=0 // pred_fallthru
    _
  %p15 = scmp.eq.s32.totalorder 0, 0
  // Predicated region
  $region14: #{transformer_forward.44} parent=0 // pred_check
    %p16 = pneg %p15
  $region15: #{transformer_forward.44} parent=0 // pred_check_branch
    %18 = sbr.rel (%p16) target = $region17
  $region16: #{transformer_forward.44} parent=0 // pred_region
    %19 = vst [vmem:[#allocation2] sm:$0xff] 0.0
    %20 = vst [vmem:[#allocation2 + $0x8] sm:$0xff] 0.0
  $region17: #{transformer_forward.44} parent=0 // pred_fallthru
    _
  %v21 = vld [vmem:[#allocation2] sm:$0xff]
  %v22 = vld [vmem:[#allocation2 + $0x8] sm:$0xff]
  %v23 = vld [vmem:[%s0] sm:$0xf]
  %v24 = vld [vmem:[%s0 + $0x4] sm:$0xf]
  %v25 = vld [vmem:[%s1] sm:$0xf]
  %v26 = vld [vmem:[%s1 + $0x4] sm:$0xf]
  %v27 = vld [vmem:[%s1 + $0x8] sm:$0xf]
  %v28 = vld [vmem:[%s1 + $0xc] sm:$0xf]
  %v29 = vld [vmem:[%s1 + $0x10] sm:$0xf]
  %v30 = vld [vmem:[%s1 + $0x14] sm:$0xf]
  %v31 = vld [vmem:[%s1 + $0x18] sm:$0xf]
  %v32 = vld [vmem:[%s1 + $0x1c] sm:$0xf]
  %v35 = vunpack.c.l.b16 %v23
  %v36 = vunpack.c.l.b16 %v24
  %v37 = vpack.c.b16 %v36, %v35
  %v46 = vunpack.c.l.b16 %v25
  %v47 = vunpack.c.l.b16 %v26
  %v48 = vunpack.c.l.b16 %v27
  %v49 = vunpack.c.l.b16 %v28
  %v50 = vunpack.c.l.b16 %v29
  %v51 = vunpack.c.l.b16 %v30
  %v52 = vunpack.c.l.b16 %v31
  %v53 = vunpack.c.l.b16 %v32
  %v54 = vpack.c.b16 %v47, %v46
  %v55 = vpack.c.b16 %v49, %v48
  %v56 = vpack.c.b16 %v51, %v50
  %v57 = vpack.c.b16 %v53, %v52
  %vm62 = vcmask 523264
  %v64 = vsel %vm62, %v37, 0
  %66 = vmatprep.subr.bf16.mxu0 0
  %67 = vmatpush1.bf16.msra.mxu0 %v54
  %68 = vmatprep.subr.bf16.mxu0 0
  %69 = vmatpush1.bf16.msra.mxu0 %v55
  %70 = vmatprep.subr.bf16.mxu0 0
  %71 = vmatpush1.bf16.msra.mxu0 %v56
  %72 = vmatprep.subr.bf16.mxu0 0
  %73 = vmatpush1.bf16.msra.mxu0 %v57
  %74 = vmatprep.subr.bf16.mxu0 0
  %75 = vmatpush1.bf16.msra.mxu0 0
  %76 = vmatprep.subr.bf16.mxu0 0
  %77 = vmatpush1.bf16.msra.mxu0 0
  %78 = vmatprep.subr.bf16.mxu0 0
  %79 = vmatpush1.bf16.msra.mxu0 0
  %80 = vmatprep.subr.bf16.mxu0 0
  %81 = vmatpush1.bf16.msra.mxu0 0
  %82 = vmatprep.subr.bf16.mxu0 0
  %83 = vmatpush1.bf16.msra.mxu0 0
  %84 = vmatprep.subr.bf16.mxu0 0
  %85 = vmatpush1.bf16.msra.mxu0 0
  %86 = vmatprep.subr.bf16.mxu0 0
  %87 = vmatpush1.bf16.msra.mxu0 0
  %88 = vmatprep.subr.bf16.mxu0 0
  %89 = vmatpush1.bf16.msra.mxu0 0
  %90 = vmatprep.subr.bf16.mxu0 0
  %91 = vmatpush1.bf16.msra.mxu0 0
  %92 = vmatprep.subr.bf16.mxu0 0
  %93 = vmatpush1.bf16.msra.mxu0 0
  %94 = vmatprep.subr.bf16.mxu0 0
  %95 = vmatpush1.bf16.msra.mxu0 0
  %96 = vmatprep.subr.bf16.mxu0 0
  %97 = vmatpush1.bf16.msra.mxu0 0
  %98 = vmatprep.mubr.bf16.mxu0 0
  %99 = vmatmul.mubr.bf16.gmra.mrb[0].mxu0 %v64
  %v100 = vpop.f32.mrb[0].mxu0
  %v101 = vadd.f32 0.0, %v100
  %v102 = vpop.f32.mrb[0].mxu0
  %v103 = vpop.f32.mrb[0].mxu0
  %v104 = vadd.f32 0.0, %v103
  %v105 = vpop.f32.mrb[0].mxu0
  %106 = vdwg.mxu0
  %v107 = vadd.f32 %v21, %v101
  %v108 = vadd.f32 %v22, %v104
  %109 = vst [vmem:[#allocation2] sm:$0xff] %v107
  %110 = vst [vmem:[#allocation2 + $0x8] sm:$0xff] %v108
  // Predicated region
  $region18: #{transformer_forward.44} parent=0 // pred_check
    %p111 = pneg %p15
  $region19: #{transformer_forward.44} parent=0 // pred_check_branch
    %113 = sbr.rel (%p111) target = $region21
  $region20: #{transformer_forward.44} parent=0 // pred_region
    %v114 = vld [vmem:[#allocation2] sm:$0xff]
    %v115 = vld [vmem:[#allocation2 + $0x8] sm:$0xff]
    %v116 = vld [vmem:[%s2] sm:$0x1]
    %v118 = vlaneseq
    %v119 = vshrl.u32 %v118, 7
    %v120 = vsub.s32 0, %v119
    %v121 = vrot.slane %v116, %v120
    %v123 = vadd.f32 %v114, %v121
    %v124 = vadd.f32 %v115, %v121
    %v125 = vpack.c.bf16 %v124, %v123
    %v127 = vunpack.c.l.b16 %v125
    %v128 = vunpack.c.h.b16 %v125
    %v129 = vpack.c.b16 %v127, %v127
    %v130 = vpack.c.b16 %v128, %v128
    %133 = vst [vmem:[%s3] sm:$0xf] %v129
    %134 = vst [vmem:[%s3 + $0x4] sm:$0xf] %v130
  $region21: #{transformer_forward.44} parent=0 // pred_fallthru
    _
  // Predicated region
  $region22: #{transformer_forward.44} parent=0 // pred_check
    _
  $region23: #{transformer_forward.44} parent=0 // pred_check_branch
    %136 = sbr.rel (0) target = $region25
  $region24: #{transformer_forward.44} parent=0 // pred_region
    _
  $region25: #{transformer_forward.44} parent=0 // pred_fallthru
    _
  // Predicated region
  $region26: #{transformer_forward.44} parent=0 // pred_check
    _
  $region27: #{transformer_forward.44} parent=0 // pred_check_branch
    %138 = sbr.rel (0) target = $region29
  $region28: #{transformer_forward.44} parent=0 // pred_region
    _
  $region29: #{transformer_forward.44} parent=0 // pred_fallthru
    _

// kernel: transformer_forward.77
$region0: #{transformer_forward.77}
  #allocation0 [shape = 'u32[]', space=smem, size = 0x4, offset = 0x4, fixed_abs, tag = 'smem constant byte address 0x4 - core index']
  #allocation1 [shape = 'u32[144,128]{1,0:T(1,128)}', space=vmem, size = 0x12000, scoped, tag = 'internal scratch']
  #allocation2 [shape = 'f32[16,128]{1,0:T(8,128)}', space=vmem, size = 0x2000, scoped, tag = 'scratch operand']
  %s0 = inlined_call_operand.vmem [shape: bf16[16,32], index: 0, kind: input, shape index: {}]
  %s1 = inlined_call_operand.vmem [shape: bf16[32,128], index: 1, kind: input, shape index: {}]
  %s2 = inlined_call_operand.vmem [shape: f32[1,128], index: 2, kind: input, shape index: {}]
  %s3 = inlined_call_operand.vmem [shape: f32[16,128], index: 3, kind: output, shape index: {}]
  %s4 = sld [smem:[#allocation0]]
  $region30: #{transformer_forward.77} parent=0
    _
  %s6 = ssub.s32 1, %s4
  %s7 = scalar_select 0, %s6, %s4
  // Predicated region
  $region2: #{transformer_forward.77} parent=0 // pred_check
    _
  $region3: #{transformer_forward.77} parent=0 // pred_check_branch
    %9 = sbr.rel (0) target = $region5
  $region4: #{transformer_forward.77} parent=0 // pred_region
    _
  $region5: #{transformer_forward.77} parent=0 // pred_fallthru
    _
  // Predicated region
  $region6: #{transformer_forward.77} parent=0 // pred_check
    _
  $region7: #{transformer_forward.77} parent=0 // pred_check_branch
    %11 = sbr.rel (0) target = $region9
  $region8: #{transformer_forward.77} parent=0 // pred_region
    _
  $region9: #{transformer_forward.77} parent=0 // pred_fallthru
    _
  // Predicated region
  $region10: #{transformer_forward.77} parent=0 // pred_check
    _
  $region11: #{transformer_forward.77} parent=0 // pred_check_branch
    %13 = sbr.rel (0) target = $region13
  $region12: #{transformer_forward.77} parent=0 // pred_region
    _
  $region13: #{transformer_forward.77} parent=0 // pred_fallthru
    _
  %p15 = scmp.eq.s32.totalorder 0, 0
  // Predicated region
  $region14: #{transformer_forward.77} parent=0 // pred_check
    %p16 = pneg %p15
  $region15: #{transformer_forward.77} parent=0 // pred_check_branch
    %18 = sbr.rel (%p16) target = $region17
  $region16: #{transformer_forward.77} parent=0 // pred_region
    %19 = vst [vmem:[#allocation2] sm:$0xff] 0.0
    %20 = vst [vmem:[#allocation2 + $0x8] sm:$0xff] 0.0
  $region17: #{transformer_forward.77} parent=0 // pred_fallthru
    _
  %v21 = vld [vmem:[#allocation2] sm:$0xff]
  %v22 = vld [vmem:[#allocation2 + $0x8] sm:$0xff]
  %v23 = vld [vmem:[%s0] sm:$0xf]
  %v24 = vld [vmem:[%s0 + $0x4] sm:$0xf]
  %v25 = vld [vmem:[%s1] sm:$0xf]
  %v26 = vld [vmem:[%s1 + $0x4] sm:$0xf]
  %v27 = vld [vmem:[%s1 + $0x8] sm:$0xf]
  %v28 = vld [vmem:[%s1 + $0xc] sm:$0xf]
  %v31 = vunpack.c.l.b16 %v23
  %v32 = vunpack.c.l.b16 %v24
  %v33 = vpack.c.b16 %v32, %v31
  %v38 = vunpack.c.l.b16 %v25
  %v39 = vunpack.c.l.b16 %v26
  %v40 = vunpack.c.l.b16 %v27
  %v41 = vunpack.c.l.b16 %v28
  %v42 = vpack.c.b16 %v39, %v38
  %v43 = vpack.c.b16 %v41, %v40
  %vm46 = vcmask 261120
  %v48 = vsel %vm46, %v33, 0
  %50 = vmatprep.subr.bf16.mxu0 0
  %51 = vmatpush1.bf16.msra.mxu0 %v42
  %52 = vmatprep.subr.bf16.mxu0 0
  %53 = vmatpush1.bf16.msra.mxu0 %v43
  %54 = vmatprep.subr.bf16.mxu0 0
  %55 = vmatpush1.bf16.msra.mxu0 0
  %56 = vmatprep.subr.bf16.mxu0 0
  %57 = vmatpush1.bf16.msra.mxu0 0
  %58 = vmatprep.subr.bf16.mxu0 0
  %59 = vmatpush1.bf16.msra.mxu0 0
  %60 = vmatprep.subr.bf16.mxu0 0
  %61 = vmatpush1.bf16.msra.mxu0 0
  %62 = vmatprep.subr.bf16.mxu0 0
  %63 = vmatpush1.bf16.msra.mxu0 0
  %64 = vmatprep.subr.bf16.mxu0 0
  %65 = vmatpush1.bf16.msra.mxu0 0
  %66 = vmatprep.subr.bf16.mxu0 0
  %67 = vmatpush1.bf16.msra.mxu0 0
  %68 = vmatprep.subr.bf16.mxu0 0
  %69 = vmatpush1.bf16.msra.mxu0 0
  %70 = vmatprep.subr.bf16.mxu0 0
  %71 = vmatpush1.bf16.msra.mxu0 0
  %72 = vmatprep.subr.bf16.mxu0 0
  %73 = vmatpush1.bf16.msra.mxu0 0
  %74 = vmatprep.subr.bf16.mxu0 0
  %75 = vmatpush1.bf16.msra.mxu0 0
  %76 = vmatprep.subr.bf16.mxu0 0
  %77 = vmatpush1.bf16.msra.mxu0 0
  %78 = vmatprep.subr.bf16.mxu0 0
  %79 = vmatpush1.bf16.msra.mxu0 0
  %80 = vmatprep.subr.bf16.mxu0 0
  %81 = vmatpush1.bf16.msra.mxu0 0
  %82 = vmatprep.mubr.bf16.mxu0 0
  %83 = vmatmul.mubr.bf16.gmra.mrb[0].mxu0 %v48
  %v84 = vpop.f32.mrb[0].mxu0
  %v85 = vadd.f32 0.0, %v84
  %v86 = vpop.f32.mrb[0].mxu0
  %v87 = vpop.f32.mrb[0].mxu0
  %v88 = vadd.f32 0.0, %v87
  %v89 = vpop.f32.mrb[0].mxu0
  %90 = vdwg.mxu0
  %v91 = vadd.f32 %v21, %v85
  %v92 = vadd.f32 %v22, %v88
  %93 = vst [vmem:[#allocation2] sm:$0xff] %v91
  %94 = vst [vmem:[#allocation2 + $0x8] sm:$0xff] %v92
  // Predicated region
  $region18: #{transformer_forward.77} parent=0 // pred_check
    %p95 = pneg %p15
  $region19: #{transformer_forward.77} parent=0 // pred_check_branch
    %97 = sbr.rel (%p95) target = $region21
  $region20: #{transformer_forward.77} parent=0 // pred_region
    %v98 = vld [vmem:[#allocation2] sm:$0xff]
    %v99 = vld [vmem:[#allocation2 + $0x8] sm:$0xff]
    %v100 = vld [vmem:[%s2] sm:$0x1]
    %v102 = vlaneseq
    %v103 = vshrl.u32 %v102, 7
    %v104 = vsub.s32 0, %v103
    %v105 = vrot.slane %v100, %v104
    %v107 = vadd.f32 %v98, %v105
    %v108 = vadd.f32 %v99, %v105
    %109 = vst [vmem:[%s3] sm:$0xff] %v107
    %110 = vst [vmem:[%s3 + $0x8] sm:$0xff] %v108
  $region21: #{transformer_forward.77} parent=0 // pred_fallthru
    _
  // Predicated region
  $region22: #{transformer_forward.77} parent=0 // pred_check
    _
  $region23: #{transformer_forward.77} parent=0 // pred_check_branch
    %112 = sbr.rel (0) target = $region25
  $region24: #{transformer_forward.77} parent=0 // pred_region
    _
  $region25: #{transformer_forward.77} parent=0 // pred_fallthru
    _
  // Predicated region
  $region26: #{transformer_forward.77} parent=0 // pred_check
    _
  $region27: #{transformer_forward.77} parent=0 // pred_check_branch
    %114 = sbr.rel (0) target = $region29
  $region28: #{transformer_forward.77} parent=0 // pred_region
    _
  $region29: #{transformer_forward.77} parent=0 // pred_fallthru
    _

// kernel: transformer_forward.54
$region0: #{transformer_forward.54}
  #allocation0 [shape = 'u32[]', space=smem, size = 0x4, offset = 0x4, fixed_abs, tag = 'smem constant byte address 0x4 - core index']
  #allocation1 [shape = 'u32[144,128]{1,0:T(1,128)}', space=vmem, size = 0x12000, scoped, tag = 'internal scratch']
  %s0 = inlined_call_operand.vmem [shape: bf16[2,8,32], index: 0, kind: input, shape index: {}]
  %s1 = inlined_call_operand.vmem [shape: bf16[2,8,32], index: 1, kind: input, shape index: {}]
  %s2 = inlined_call_operand.vmem [shape: bf16[2,8,32], index: 2, kind: input, shape index: {}]
  %s3 = inlined_call_operand.vmem [shape: s32[2,8,1], index: 3, kind: input, shape index: {}]
  %s4 = inlined_call_operand.vmem [shape: s32[2,1,8], index: 4, kind: input, shape index: {}]
  %s5 = inlined_call_operand.vmem [shape: bf16[2,8,32], index: 5, kind: output, shape index: {}]
  %s6 = sld [smem:[#allocation0]]
  $region53: #{transformer_forward.54} parent=0
    _
  %s8 = ssub.s32 1, %s6
  %s9 = scalar_select 0, %s8, %s6
  loop: start=0, step=1, limit=4
  $region2: #{transformer_forward.54} parent=0 // loop_pre_header
    _
  $region3: #{transformer_forward.54} parent=0 // loop_header
    %s11 = sphi 0, %s15
    %p12 = scmp.ge.s32.totalorder %s11, 4
    %s21 = sphi 0, %s23
    %s24 = sphi 0, %s21
    %s25 = sphi 0, %s24
    %s41 = sphi 0, %s25
    %s47 = sphi 0, %s49
    %s50 = sphi 0, %s47
    %s51 = sphi 0, %s50
    %s67 = sphi 0, %s51
    %s73 = sphi 0, %s75
    %s76 = sphi 0, %s73
    %s77 = sphi 0, %s76
    %s93 = sphi 0, %s77
    %s99 = sphi 0, %s101
    %s102 = sphi 0, %s99
    %s103 = sphi 0, %s102
    %s119 = sphi 0, %s103
    %s125 = sphi 0, %s127
    %s128 = sphi 0, %s125
    %s129 = sphi 0, %s128
    %s145 = sphi 0, %s129
    %s151 = sphi 0, %s153
    %s154 = sphi 0, %s151
    %s155 = sphi 0, %s154
    %s171 = sphi 0, %s155
  $region4: #{transformer_forward.54} parent=0 // loop_header_branch
    %14 = sbr.rel (%p12) target = $region8
  $region5: #{transformer_forward.54} parent=0 // loop_body
    %s16 = ssub.s32 %s11, 1
    %s17 = ssub.s32 %s11, 2
    %s18 = sadd.s32 %s11, 1
    %s19 = ssub.s32 %s11, %s18
    %p20 = scmp.eq.s32.totalorder %s19, 0
    %s22 = sadd.s32 %s21, 1
    %s23 = scalar_select %p20, %s21, %s22
    %p26 = pneg %p20
    %p27 = scmp.eq.s32.totalorder %s11, 1
    %p28 = por %p26, %p27
    %p29 = scmp.ne.s32.totalorder %s21, %s24
    %p30 = scmp.eq.s32.totalorder %s11, 0
    %p31 = por %p29, %p30
    %p32 = scmp.ne.s32.totalorder %s21, %s24
    %p33 = scmp.eq.s32.totalorder %s16, 1
    %p34 = por %p32, %p33
    %p35 = scmp.ne.s32.totalorder %s24, %s25
    %p36 = scmp.eq.s32.totalorder %s16, 0
    %p37 = por %p35, %p36
    %p38 = scmp.ne.s32.totalorder %s24, %s25
    %p39 = scmp.eq.s32.totalorder %s17, 1
    %p40 = por %p38, %p39
    %p42 = scmp.ne.s32.totalorder %s25, %s41
    %p43 = scmp.eq.s32.totalorder %s17, 0
    %p44 = por %p42, %p43
    %s45 = ssub.s32 %s11, %s18
    %p46 = scmp.eq.s32.totalorder %s45, 0
    %s48 = sadd.s32 %s47, 1
    %s49 = scalar_select %p46, %s47, %s48
    %p52 = pneg %p46
    %p53 = scmp.eq.s32.totalorder %s11, 1
    %p54 = por %p52, %p53
    %p55 = scmp.ne.s32.totalorder %s47, %s50
    %p56 = scmp.eq.s32.totalorder %s11, 0
    %p57 = por %p55, %p56
    %p58 = scmp.ne.s32.totalorder %s47, %s50
    %p59 = scmp.eq.s32.totalorder %s16, 1
    %p60 = por %p58, %p59
    %p61 = scmp.ne.s32.totalorder %s50, %s51
    %p62 = scmp.eq.s32.totalorder %s16, 0
    %p63 = por %p61, %p62
    %p64 = scmp.ne.s32.totalorder %s50, %s51
    %p65 = scmp.eq.s32.totalorder %s17, 1
    %p66 = por %p64, %p65
    %p68 = scmp.ne.s32.totalorder %s51, %s67
    %p69 = scmp.eq.s32.totalorder %s17, 0
    %p70 = por %p68, %p69
    %s71 = ssub.s32 %s11, %s18
    %p72 = scmp.eq.s32.totalorder %s71, 0
    %s74 = sadd.s32 %s73, 1
    %s75 = scalar_select %p72, %s73, %s74
    %p78 = pneg %p72
    %p79 = scmp.eq.s32.totalorder %s11, 1
    %p80 = por %p78, %p79
    %p81 = scmp.ne.s32.totalorder %s73, %s76
    %p82 = scmp.eq.s32.totalorder %s11, 0
    %p83 = por %p81, %p82
    %p84 = scmp.ne.s32.totalorder %s73, %s76
    %p85 = scmp.eq.s32.totalorder %s16, 1
    %p86 = por %p84, %p85
    %p87 = scmp.ne.s32.totalorder %s76, %s77
    %p88 = scmp.eq.s32.totalorder %s16, 0
    %p89 = por %p87, %p88
    %p90 = scmp.ne.s32.totalorder %s76, %s77
    %p91 = scmp.eq.s32.totalorder %s17, 1
    %p92 = por %p90, %p91
    %p94 = scmp.ne.s32.totalorder %s77, %s93
    %p95 = scmp.eq.s32.totalorder %s17, 0
    %p96 = por %p94, %p95
    %s97 = ssub.s32 %s11, %s18
    %p98 = scmp.eq.s32.totalorder %s97, 0
    %s100 = sadd.s32 %s99, 1
    %s101 = scalar_select %p98, %s99, %s100
    %p104 = pneg %p98
    %p105 = scmp.eq.s32.totalorder %s11, 1
    %p106 = por %p104, %p105
    %p107 = scmp.ne.s32.totalorder %s99, %s102
    %p108 = scmp.eq.s32.totalorder %s11, 0
    %p109 = por %p107, %p108
    %p110 = scmp.ne.s32.totalorder %s99, %s102
    %p111 = scmp.eq.s32.totalorder %s16, 1
    %p112 = por %p110, %p111
    %p113 = scmp.ne.s32.totalorder %s102, %s103
    %p114 = scmp.eq.s32.totalorder %s16, 0
    %p115 = por %p113, %p114
    %p116 = scmp.ne.s32.totalorder %s102, %s103
    %p117 = scmp.eq.s32.totalorder %s17, 1
    %p118 = por %p116, %p117
    %p120 = scmp.ne.s32.totalorder %s103, %s119
    %p121 = scmp.eq.s32.totalorder %s17, 0
    %p122 = por %p120, %p121
    %s123 = ssub.s32 %s11, %s18
    %p124 = scmp.eq.s32.totalorder %s123, 0
    %s126 = sadd.s32 %s125, 1
    %s127 = scalar_select %p124, %s125, %s126
    %p130 = pneg %p124
    %p131 = scmp.eq.s32.totalorder %s11, 1
    %p132 = por %p130, %p131
    %p133 = scmp.ne.s32.totalorder %s125, %s128
    %p134 = scmp.eq.s32.totalorder %s11, 0
    %p135 = por %p133, %p134
    %p136 = scmp.ne.s32.totalorder %s125, %s128
    %p137 = scmp.eq.s32.totalorder %s16, 1
    %p138 = por %p136, %p137
    %p139 = scmp.ne.s32.totalorder %s128, %s129
    %p140 = scmp.eq.s32.totalorder %s16, 0
    %p141 = por %p139, %p140
    %p142 = scmp.ne.s32.totalorder %s128, %s129
    %p143 = scmp.eq.s32.totalorder %s17, 1
    %p144 = por %p142, %p143
    %p146 = scmp.ne.s32.totalorder %s129, %s145
    %p147 = scmp.eq.s32.totalorder %s17, 0
    %p148 = por %p146, %p147
    %s149 = ssub.s32 %s11, %s18
    %p150 = scmp.eq.s32.totalorder %s149, 0
    %s152 = sadd.s32 %s151, 1
    %s153 = scalar_select %p150, %s151, %s152
    %p156 = pneg %p150
    %p157 = scmp.eq.s32.totalorder %s11, 1
    %p158 = por %p156, %p157
    %p159 = scmp.ne.s32.totalorder %s151, %s154
    %p160 = scmp.eq.s32.totalorder %s11, 0
    %p161 = por %p159, %p160
    %p162 = scmp.ne.s32.totalorder %s151, %s154
    %p163 = scmp.eq.s32.totalorder %s16, 1
    %p164 = por %p162, %p163
    %p165 = scmp.ne.s32.totalorder %s154, %s155
    %p166 = scmp.eq.s32.totalorder %s16, 0
    %p167 = por %p165, %p166
    %p168 = scmp.ne.s32.totalorder %s154, %s155
    %p169 = scmp.eq.s32.totalorder %s17, 1
    %p170 = por %p168, %p169
    %p172 = scmp.ne.s32.totalorder %s155, %s171
    %p173 = scmp.eq.s32.totalorder %s17, 0
    %p174 = por %p172, %p173
    %p175 = scmp.le.s32.totalorder 1, %s11
    %p176 = scmp.lt.s32.totalorder %s11, 3
    %p177 = pnand %p175, %p176
    %p178 = pneg %p177
    // Predicated region
    $region9: #{transformer_forward.54} parent=5 // pred_check
      _
    $region10: #{transformer_forward.54} parent=5 // pred_check_branch
      %180 = sbr.rel (%p177) target = $region12
    $region11: #{transformer_forward.54} parent=5 // pred_region
      %s181 = ssub.s32 %s11, 1
    $region12: #{transformer_forward.54} parent=5 // pred_fallthru
      _
    %p182 = scmp.lt.s32.totalorder %s11, 2
    // Predicated region
    $region13: #{transformer_forward.54} parent=5 // pred_check
      %p183 = pneg %p182
    $region14: #{transformer_forward.54} parent=5 // pred_check_branch
      %185 = sbr.rel (%p183) target = $region16
    $region15: #{transformer_forward.54} parent=5 // pred_region
      // Predicated region
      $region17: #{transformer_forward.54} parent=15 // pred_check
        %p186 = pneg %p31
      $region18: #{transformer_forward.54} parent=15 // pred_check_branch
        %188 = sbr.rel (%p186) target = $region20
      $region19: #{transformer_forward.54} parent=15 // pred_region
        %p189 = scmp.lt.s32.totalorder %s11, 1
        %s190 = scalar_select %p189, %s11, 1
        %s191 = smul.addr %s190, 4
        %s192 = scalar_lea.vmem %s0, %s191
      $region20: #{transformer_forward.54} parent=15 // pred_fallthru
        _
      // Predicated region
      $region21: #{transformer_forward.54} parent=15 // pred_check
        %p193 = pneg %p57
      $region22: #{transformer_forward.54} parent=15 // pred_check_branch
        %195 = sbr.rel (%p193) target = $region24
      $region23: #{transformer_forward.54} parent=15 // pred_region
        %p196 = scmp.lt.s32.totalorder %s11, 1
        %s197 = scalar_select %p196, %s11, 1
        %s198 = smul.addr %s197, 4
        %s199 = scalar_lea.vmem %s1, %s198
      $region24: #{transformer_forward.54} parent=15 // pred_fallthru
        _
      // Predicated region
      $region25: #{transformer_forward.54} parent=15 // pred_check
        %p200 = pneg %p83
      $region26: #{transformer_forward.54} parent=15 // pred_check_branch
        %202 = sbr.rel (%p200) target = $region28
      $region27: #{transformer_forward.54} parent=15 // pred_region
        %p203 = scmp.lt.s32.totalorder %s11, 1
        %s204 = scalar_select %p203, %s11, 1
        %s205 = smul.addr %s204, 4
        %s206 = scalar_lea.vmem %s2, %s205
      $region28: #{transformer_forward.54} parent=15 // pred_fallthru
        _
      // Predicated region
      $region29: #{transformer_forward.54} parent=15 // pred_check
        %p207 = pneg %p109
      $region30: #{transformer_forward.54} parent=15 // pred_check_branch
        %209 = sbr.rel (%p207) target = $region32
      $region31: #{transformer_forward.54} parent=15 // pred_region
        %p210 = scmp.lt.s32.totalorder %s11, 1
        %s211 = scalar_select %p210, %s11, 1
        %s212 = smul.addr %s211, 8
        %s213 = scalar_lea.vmem %s3, %s212
      $region32: #{transformer_forward.54} parent=15 // pred_fallthru
        _
      // Predicated region
      $region33: #{transformer_forward.54} parent=15 // pred_check
        %p214 = pneg %p135
      $region34: #{transformer_forward.54} parent=15 // pred_check_branch
        %216 = sbr.rel (%p214) target = $region36
      $region35: #{transformer_forward.54} parent=15 // pred_region
        %p217 = scmp.lt.s32.totalorder %s11, 1
        %s218 = scalar_select %p217, %s11, 1
        %s219 = scalar_lea.vmem %s4, %s218
      $region36: #{transformer_forward.54} parent=15 // pred_fallthru
        _
    $region16: #{transformer_forward.54} parent=5 // pred_fallthru
      _
    %p220 = scmp.le.s32.totalorder 1, %s11
    %p221 = scmp.lt.s32.totalorder %s11, 3
    %p222 = pnand %p220, %p221
    %p223 = pneg %p222
    // Predicated region
    $region37: #{transformer_forward.54} parent=5 // pred_check
      _
    $region38: #{transformer_forward.54} parent=5 // pred_check_branch
      %225 = sbr.rel (%p222) target = $region40
    $region39: #{transformer_forward.54} parent=5 // pred_region
      %s226 = ssub.s32 %s11, 1
      %p227 = scmp.lt.s32.totalorder %s16, 1
      %s228 = scalar_select %p227, %s16, 1
      %s229 = smul.addr %s228, 4
      %s230 = scalar_lea.vmem %s0, %s229
      %p231 = pneg %p37
      %p232 = pneg %p34
      %p233 = scmp.lt.s32.totalorder %s16, 1
      %s234 = scalar_select %p233, %s16, 1
      %s235 = smul.addr %s234, 4
      %s236 = scalar_lea.vmem %s1, %s235
      %p237 = pneg %p63
      %p238 = pneg %p60
      %p239 = scmp.lt.s32.totalorder %s16, 1
      %s240 = scalar_select %p239, %s16, 1
      %s241 = smul.addr %s240, 4
      %s242 = scalar_lea.vmem %s2, %s241
      %p243 = pneg %p89
      %p244 = pneg %p86
      %p245 = scmp.lt.s32.totalorder %s16, 1
      %s246 = scalar_select %p245, %s16, 1
      %s247 = smul.addr %s246, 8
      %s248 = scalar_lea.vmem %s3, %s247
      %p249 = pneg %p115
      %p250 = pneg %p112
      %p251 = scmp.lt.s32.totalorder %s16, 1
      %s252 = scalar_select %p251, %s16, 1
      %s253 = scalar_lea.vmem %s4, %s252
      %p254 = pneg %p141
      %p255 = pneg %p138
      %p256 = pneg %p167
      %p257 = pneg %p164
      %p258 = scmp.lt.s32.totalorder %s16, 1
      %s259 = scalar_select %p258, %s16, 1
      %s260 = smul.addr %s259, 4
      %s261 = scalar_lea.vmem %s5, %s260
      %p262 = scmp.lt.s32.totalorder %s16, 1
      %s263 = scalar_select %p262, %s16, 1
      %s264 = smul.addr %s263, 4
      %s265 = scalar_lea.vmem %s0, %s264
      %p266 = scmp.lt.s32.totalorder %s16, 1
      %s267 = scalar_select %p266, %s16, 1
      %s268 = smul.addr %s267, 4
      %s269 = scalar_lea.vmem %s1, %s268
      %p270 = scmp.lt.s32.totalorder %s16, 1
      %s271 = scalar_select %p270, %s16, 1
      %s272 = smul.addr %s271, 4
      %s273 = scalar_lea.vmem %s2, %s272
      %p274 = scmp.lt.s32.totalorder %s16, 1
      %s275 = scalar_select %p274, %s16, 1
      %s276 = smul.addr %s275, 8
      %s277 = scalar_lea.vmem %s3, %s276
      %p278 = scmp.lt.s32.totalorder %s16, 1
      %s279 = scalar_select %p278, %s16, 1
      %s280 = scalar_lea.vmem %s4, %s279
      %p281 = scmp.lt.s32.totalorder %s16, 1
      %s282 = scalar_select %p281, %s16, 1
      %s283 = smul.addr %s282, 4
      %s284 = scalar_lea.vmem %s5, %s283
      %v286 = vld [vmem:[%s265] sm:$0xf]
      %v287 = vld [vmem:[%s269] sm:$0xf]
      %v288 = vld [vmem:[%s273] sm:$0xf]
      %v289 = vld [vmem:[%s277] sm:$0xff]
      %v290 = vld [vmem:[%s280] sm:$0x1]
      %291 = vset.pattern.permute.xlu0 0
      %292 = vperm.xlu0 %291, %v289
      %v293 = vpop.permute.xlu0 %292
      %v294 = vlaneseq
      %v295 = vshrl.u32 %v294, 7
      %v296 = vsub.s32 0, %v295
      %v297 = vrot.slane %v290, %v296
      %v298 = vmul.u32 %v293, %v297
      %vm299 = vcmp.gt.s32.totalorder %v298, 0
      %v300 = vlaneseq
      %v301 = vshrl.u32 %v300, 7
      %v302 = vlaneseq
      %v303 = vand.u32 %v302, 127
      %vm304 = vcmp.ge.s32.totalorder %v301, %v303
      %vm305 = vmand %vm299, %vm304
      %vm306 = vcmask 64512
      %v308 = vsel %vm306, %v286, 0
      %v311 = vsel %vm306, %v287, 0
      %313 = vmatprep.subr.bf16.mxu0 0
      %314 = vmatpush1.bf16.xpose.msra.mxu0 %v311
      %315 = vmatprep.subr.bf16.mxu0 0
      %316 = vmatpush1.bf16.xpose.msra.mxu0 0
      %317 = vmatprep.subr.bf16.mxu0 0
      %318 = vmatpush1.bf16.xpose.msra.mxu0 0
      %319 = vmatprep.subr.bf16.mxu0 0
      %320 = vmatpush1.bf16.xpose.msra.mxu0 0
      %321 = vmatprep.subr.bf16.mxu0 0
      %322 = vmatpush1.bf16.xpose.msra.mxu0 0
      %323 = vmatprep.subr.bf16.mxu0 0
      %324 = vmatpush1.bf16.xpose.msra.mxu0 0
      %325 = vmatprep.subr.bf16.mxu0 0
      %326 = vmatpush1.bf16.xpose.msra.mxu0 0
      %327 = vmatprep.subr.bf16.mxu0 0
      %328 = vmatpush1.bf16.xpose.msra.mxu0 0
      %329 = vmatprep.subr.bf16.mxu0 0
      %330 = vmatpush1.bf16.xpose.msra.mxu0 0
      %331 = vmatprep.subr.bf16.mxu0 0
      %332 = vmatpush1.bf16.xpose.msra.mxu0 0
      %333 = vmatprep.subr.bf16.mxu0 0
      %334 = vmatpush1.bf16.xpose.msra.mxu0 0
      %335 = vmatprep.subr.bf16.mxu0 0
      %336 = vmatpush1.bf16.xpose.msra.mxu0 0
      %337 = vmatprep.subr.bf16.mxu0 0
      %338 = vmatpush1.bf16.xpose.msra.mxu0 0
      %339 = vmatprep.subr.bf16.mxu0 0
      %340 = vmatpush1.bf16.xpose.msra.mxu0 0
      %341 = vmatprep.subr.bf16.mxu0 0
      %342 = vmatpush1.bf16.xpose.msra.mxu0 0
      %343 = vmatprep.subr.bf16.mxu0 0
      %344 = vmatpush1.bf16.xpose.msra.mxu0 0
      %345 = vmatprep.mubr.bf16.mxu0 0
      %346 = vmatmul.mubr.bf16.gmra.mrb[0].mxu0 %v308
      %v347 = vpop.f32.mrb[0].mxu0
      %v348 = vadd.f32 0.0, %v347
      %v349 = vpop.f32.mrb[0].mxu0
      %v350 = vpop.f32.mrb[0].mxu0
      %v351 = vpop.f32.mrb[0].mxu0
      %352 = vdwg.mxu0
      %v353 = vmul.f32 %v348, 0.35355338
      %v354 = vsel %vm305, %v353, -1e+09
      %v355 = vsel %vm306, %v354, -inf
      %356 = vmax.xlane.f32.xlu0 %v355
      %v357 = vpop.xlane.xlu0 %356
      %v358 = vsub.f32 %v354, %v357
      %v359 = vmul.f32 %v358, 1.442695
      %v360 = vpow.pop %v359
      %v361 = vsel %vm306, %v360, 0.0
      %362 = vadd.xlane.f32.xlu0 %v361
      %v363 = vpop.xlane.xlu0 %362
      %v364 = vrcp.pop %v363
      %v365 = vpack.c.bf16 %v360, %v360
      %v367 = vsel %vm306, %v365, 0
      %vm369 = vcmask 1043456
      %v371 = vsel %vm369, %v288, 0
      %373 = vmatprep.subr.bf16.mxu0 0
      %374 = vmatpush1.bf16.msra.mxu0 %v371
      %375 = vmatprep.subr.bf16.mxu0 0
      %376 = vmatpush1.bf16.msra.mxu0 0
      %377 = vmatprep.subr.bf16.mxu0 0
      %378 = vmatpush1.bf16.msra.mxu0 0
      %379 = vmatprep.subr.bf16.mxu0 0
      %380 = vmatpush1.bf16.msra.mxu0 0
      %381 = vmatprep.subr.bf16.mxu0 0
      %382 = vmatpush1.bf16.msra.mxu0 0
      %383 = vmatprep.subr.bf16.mxu0 0
      %384 = vmatpush1.bf16.msra.mxu0 0
      %385 = vmatprep.subr.bf16.mxu0 0
      %386 = vmatpush1.bf16.msra.mxu0 0
      %387 = vmatprep.subr.bf16.mxu0 0
      %388 = vmatpush1.bf16.msra.mxu0 0
      %389 = vmatprep.subr.bf16.mxu0 0
      %390 = vmatpush1.bf16.msra.mxu0 0
      %391 = vmatprep.subr.bf16.mxu0 0
      %392 = vmatpush1.bf16.msra.mxu0 0
      %393 = vmatprep.subr.bf16.mxu0 0
      %394 = vmatpush1.bf16.msra.mxu0 0
      %395 = vmatprep.subr.bf16.mxu0 0
      %396 = vmatpush1.bf16.msra.mxu0 0
      %397 = vmatprep.subr.bf16.mxu0 0
      %398 = vmatpush1.bf16.msra.mxu0 0
      %399 = vmatprep.subr.bf16.mxu0 0
      %400 = vmatpush1.bf16.msra.mxu0 0
      %401 = vmatprep.subr.bf16.mxu0 0
      %402 = vmatpush1.bf16.msra.mxu0 0
      %403 = vmatprep.subr.bf16.mxu0 0
      %404 = vmatpush1.bf16.msra.mxu0 0
      %405 = vmatprep.mubr.bf16.mxu0 0
      %406 = vmatmul.mubr.bf16.gmra.mrb[0].mxu0 %v367
      %v407 = vpop.f32.mrb[0].mxu0
      %v408 = vadd.f32 0.0, %v407
      %v409 = vpop.f32.mrb[0].mxu0
      %v410 = vpop.f32.mrb[0].mxu0
      %v411 = vpop.f32.mrb[0].mxu0
      %412 = vdwg.mxu0
      %v413 = vmul.f32 %v408, %v364
      %v415 = vunpack.c.l.b16 %v286
      %v416 = vpack.c.b16 %v415, %v415
      %417 = vrot.lane.b32.xlu0 %v416, 120
      %v418 = vpop.permute.xlu0 %417
      %v420 = vunpack.c.l.b16 %v287
      %v421 = vpack.c.b16 %v420, %v420
      %422 = vrot.lane.b32.xlu0 %v421, 120
      %v423 = vpop.permute.xlu0 %422
      %v425 = vsel %vm306, %v418, 0
      %v428 = vsel %vm306, %v423, 0
      %430 = vmatprep.subr.bf16.mxu0 0
      %431 = vmatpush1.bf16.xpose.msra.mxu0 %v428
      %432 = vmatprep.subr.bf16.mxu0 0
      %433 = vmatpush1.bf16.xpose.msra.mxu0 0
      %434 = vmatprep.subr.bf16.mxu0 0
      %435 = vmatpush1.bf16.xpose.msra.mxu0 0
      %436 = vmatprep.subr.bf16.mxu0 0
      %437 = vmatpush1.bf16.xpose.msra.mxu0 0
      %438 = vmatprep.subr.bf16.mxu0 0
      %439 = vmatpush1.bf16.xpose.msra.mxu0 0
      %440 = vmatprep.subr.bf16.mxu0 0
      %441 = vmatpush1.bf16.xpose.msra.mxu0 0
      %442 = vmatprep.subr.bf16.mxu0 0
      %443 = vmatpush1.bf16.xpose.msra.mxu0 0
      %444 = vmatprep.subr.bf16.mxu0 0
      %445 = vmatpush1.bf16.xpose.msra.mxu0 0
      %446 = vmatprep.subr.bf16.mxu0 0
      %447 = vmatpush1.bf16.xpose.msra.mxu0 0
      %448 = vmatprep.subr.bf16.mxu0 0
      %449 = vmatpush1.bf16.xpose.msra.mxu0 0
      %450 = vmatprep.subr.bf16.mxu0 0
      %451 = vmatpush1.bf16.xpose.msra.mxu0 0
      %452 = vmatprep.subr.bf16.mxu0 0
      %453 = vmatpush1.bf16.xpose.msra.mxu0 0
      %454 = vmatprep.subr.bf16.mxu0 0
      %455 = vmatpush1.bf16.xpose.msra.mxu0 0
      %456 = vmatprep.subr.bf16.mxu0 0
      %457 = vmatpush1.bf16.xpose.msra.mxu0 0
      %458 = vmatprep.subr.bf16.mxu0 0
      %459 = vmatpush1.bf16.xpose.msra.mxu0 0
      %460 = vmatprep.subr.bf16.mxu0 0
      %461 = vmatpush1.bf16.xpose.msra.mxu0 0
      %462 = vmatprep.mubr.bf16.mxu0 0
      %463 = vmatmul.mubr.bf16.gmra.mrb[0].mxu0 %v425
      %v464 = vpop.f32.mrb[0].mxu0
      %v465 = vadd.f32 0.0, %v464
      %v466 = vpop.f32.mrb[0].mxu0
      %v467 = vpop.f32.mrb[0].mxu0
      %v468 = vpop.f32.mrb[0].mxu0
      %469 = vdwg.mxu0
      %v470 = vmul.f32 %v465, 0.35355338
      %v471 = vsel %vm305, %v470, -1e+09
      %v472 = vsel %vm306, %v471, -inf
      %473 = vmax.xlane.f32.xlu0 %v472
      %v474 = vpop.xlane.xlu0 %473
      %v475 = vsub.f32 %v471, %v474
      %v476 = vmul.f32 %v475, 1.442695
      %v477 = vpow.pop %v476
      %v478 = vsel %vm306, %v477, 0.0
      %479 = vadd.xlane.f32.xlu0 %v478
      %v480 = vpop.xlane.xlu0 %479
      %v481 = vrcp.pop %v480
      %v482 = vpack.c.bf16 %v477, %v477
      %v484 = vunpack.c.l.b16 %v288
      %v485 = vpack.c.b16 %v484, %v484
      %486 = vrot.lane.b32.xlu0 %v485, 120
      %v487 = vpop.permute.xlu0 %486
      %v489 = vsel %vm306, %v482, 0
      %v492 = vsel %vm369, %v487, 0
      %494 = vmatprep.subr.bf16.mxu0 0
      %495 = vmatpush1.bf16.msra.mxu0 %v492
      %496 = vmatprep.subr.bf16.mxu0 0
      %497 = vmatpush1.bf16.msra.mxu0 0
      %498 = vmatprep.subr.bf16.mxu0 0
      %499 = vmatpush1.bf16.msra.mxu0 0
      %500 = vmatprep.subr.bf16.mxu0 0
      %501 = vmatpush1.bf16.msra.mxu0 0
      %502 = vmatprep.subr.bf16.mxu0 0
      %503 = vmatpush1.bf16.msra.mxu0 0
      %504 = vmatprep.subr.bf16.mxu0 0
      %505 = vmatpush1.bf16.msra.mxu0 0
      %506 = vmatprep.subr.bf16.mxu0 0
      %507 = vmatpush1.bf16.msra.mxu0 0
      %508 = vmatprep.subr.bf16.mxu0 0
      %509 = vmatpush1.bf16.msra.mxu0 0
      %510 = vmatprep.subr.bf16.mxu0 0
      %511 = vmatpush1.bf16.msra.mxu0 0
      %512 = vmatprep.subr.bf16.mxu0 0
      %513 = vmatpush1.bf16.msra.mxu0 0
      %514 = vmatprep.subr.bf16.mxu0 0
      %515 = vmatpush1.bf16.msra.mxu0 0
      %516 = vmatprep.subr.bf16.mxu0 0
      %517 = vmatpush1.bf16.msra.mxu0 0
      %518 = vmatprep.subr.bf16.mxu0 0
      %519 = vmatpush1.bf16.msra.mxu0 0
      %520 = vmatprep.subr.bf16.mxu0 0
      %521 = vmatpush1.bf16.msra.mxu0 0
      %522 = vmatprep.subr.bf16.mxu0 0
      %523 = vmatpush1.bf16.msra.mxu0 0
      %524 = vmatprep.subr.bf16.mxu0 0
      %525 = vmatpush1.bf16.msra.mxu0 0
      %526 = vmatprep.mubr.bf16.mxu0 0
      %527 = vmatmul.mubr.bf16.gmra.mrb[0].mxu0 %v489
      %v528 = vpop.f32.mrb[0].mxu0
      %v529 = vadd.f32 0.0, %v528
      %v530 = vpop.f32.mrb[0].mxu0
      %v531 = vpop.f32.mrb[0].mxu0
      %v532 = vpop.f32.mrb[0].mxu0
      %533 = vdwg.mxu0
      %v534 = vmul.f32 %v529, %v481
      %535 = vrot.lane.b32.xlu0 %v416, 112
      %v536 = vpop.permute.xlu0 %535
      %537 = vrot.lane.b32.xlu0 %v421, 112
      %v538 = vpop.permute.xlu0 %537
      %v540 = vsel %vm306, %v536, 0
      %v543 = vsel %vm306, %v538, 0
      %545 = vmatprep.subr.bf16.mxu0 0
      %546 = vmatpush1.bf16.xpose.msra.mxu0 %v543
      %547 = vmatprep.subr.bf16.mxu0 0
      %548 = vmatpush1.bf16.xpose.msra.mxu0 0
      %549 = vmatprep.subr.bf16.mxu0 0
      %550 = vmatpush1.bf16.xpose.msra.mxu0 0
      %551 = vmatprep.subr.bf16.mxu0 0
      %552 = vmatpush1.bf16.xpose.msra.mxu0 0
      %553 = vmatprep.subr.bf16.mxu0 0
      %554 = vmatpush1.bf16.xpose.msra.mxu0 0
      %555 = vmatprep.subr.bf16.mxu0 0
      %556 = vmatpush1.bf16.xpose.msra.mxu0 0
      %557 = vmatprep.subr.bf16.mxu0 0
      %558 = vmatpush1.bf16.xpose.msra.mxu0 0
      %559 = vmatprep.subr.bf16.mxu0 0
      %560 = vmatpush1.bf16.xpose.msra.mxu0 0
      %561 = vmatprep.subr.bf16.mxu0 0
      %562 = vmatpush1.bf16.xpose.msra.mxu0 0
      %563 = vmatprep.subr.bf16.mxu0 0
      %564 = vmatpush1.bf16.xpose.msra.mxu0 0
      %565 = vmatprep.subr.bf16.mxu0 0
      %566 = vmatpush1.bf16.xpose.msra.mxu0 0
      %567 = vmatprep.subr.bf16.mxu0 0
      %568 = vmatpush1.bf16.xpose.msra.mxu0 0
      %569 = vmatprep.subr.bf16.mxu0 0
      %570 = vmatpush1.bf16.xpose.msra.mxu0 0
      %571 = vmatprep.subr.bf16.mxu0 0
      %572 = vmatpush1.bf16.xpose.msra.mxu0 0
      %573 = vmatprep.subr.bf16.mxu0 0
      %574 = vmatpush1.bf16.xpose.msra.mxu0 0
      %575 = vmatprep.subr.bf16.mxu0 0
      %576 = vmatpush1.bf16.xpose.msra.mxu0 0
      %577 = vmatprep.mubr.bf16.mxu0 0
      %578 = vmatmul.mubr.bf16.gmra.mrb[0].mxu0 %v540
      %v579 = vpop.f32.mrb[0].mxu0
      %v580 = vadd.f32 0.0, %v579
      %v581 = vpop.f32.mrb[0].mxu0
      %v582 = vpop.f32.mrb[0].mxu0
      %v583 = vpop.f32.mrb[0].mxu0
      %584 = vdwg.mxu0
      %v585 = vmul.f32 %v580, 0.35355338
      %v586 = vsel %vm305, %v585, -1e+09
      %v587 = vsel %vm306, %v586, -inf
      %588 = vmax.xlane.f32.xlu0 %v587
      %v589 = vpop.xlane.xlu0 %588
      %v590 = vsub.f32 %v586, %v589
      %v591 = vmul.f32 %v590, 1.442695
      %v592 = vpow.pop %v591
      %v593 = vsel %vm306, %v592, 0.0
      %594 = vadd.xlane.f32.xlu0 %v593
      %v595 = vpop.xlane.xlu0 %594
      %v596 = vrcp.pop %v595
      %v597 = vpack.c.bf16 %v592, %v592
      %598 = vrot.lane.b32.xlu0 %v485, 112
      %v599 = vpop.permute.xlu0 %598
      %v601 = vsel %vm306, %v597, 0
      %v604 = vsel %vm369, %v599, 0
      %606 = vmatprep.subr.bf16.mxu0 0
      %607 = vmatpush1.bf16.msra.mxu0 %v604
      %608 = vmatprep.subr.bf16.mxu0 0
      %609 = vmatpush1.bf16.msra.mxu0 0
      %610 = vmatprep.subr.bf16.mxu0 0
      %611 = vmatpush1.bf16.msra.mxu0 0
      %612 = vmatprep.subr.bf16.mxu0 0
      %613 = vmatpush1.bf16.msra.mxu0 0
      %614 = vmatprep.subr.bf16.mxu0 0
      %615 = vmatpush1.bf16.msra.mxu0 0
      %616 = vmatprep.subr.bf16.mxu0 0
      %617 = vmatpush1.bf16.msra.mxu0 0
      %618 = vmatprep.subr.bf16.mxu0 0
      %619 = vmatpush1.bf16.msra.mxu0 0
      %620 = vmatprep.subr.bf16.mxu0 0
      %621 = vmatpush1.bf16.msra.mxu0 0
      %622 = vmatprep.subr.bf16.mxu0 0
      %623 = vmatpush1.bf16.msra.mxu0 0
      %624 = vmatprep.subr.bf16.mxu0 0
      %625 = vmatpush1.bf16.msra.mxu0 0
      %626 = vmatprep.subr.bf16.mxu0 0
      %627 = vmatpush1.bf16.msra.mxu0 0
      %628 = vmatprep.subr.bf16.mxu0 0
      %629 = vmatpush1.bf16.msra.mxu0 0
      %630 = vmatprep.subr.bf16.mxu0 0
      %631 = vmatpush1.bf16.msra.mxu0 0
      %632 = vmatprep.subr.bf16.mxu0 0
      %633 = vmatpush1.bf16.msra.mxu0 0
      %634 = vmatprep.subr.bf16.mxu0 0
      %635 = vmatpush1.bf16.msra.mxu0 0
      %636 = vmatprep.subr.bf16.mxu0 0
      %637 = vmatpush1.bf16.msra.mxu0 0
      %638 = vmatprep.mubr.bf16.mxu0 0
      %639 = vmatmul.mubr.bf16.gmra.mrb[0].mxu0 %v601
      %v640 = vpop.f32.mrb[0].mxu0
      %v641 = vadd.f32 0.0, %v640
      %v642 = vpop.f32.mrb[0].mxu0
      %v643 = vpop.f32.mrb[0].mxu0
      %v644 = vpop.f32.mrb[0].mxu0
      %645 = vdwg.mxu0
      %v646 = vmul.f32 %v641, %v596
      %647 = vrot.lane.b32.xlu0 %v416, 104
      %v648 = vpop.permute.xlu0 %647
      %649 = vrot.lane.b32.xlu0 %v421, 104
      %v650 = vpop.permute.xlu0 %649
      %v652 = vsel %vm306, %v648, 0
      %v655 = vsel %vm306, %v650, 0
      %657 = vmatprep.subr.bf16.mxu0 0
      %658 = vmatpush1.bf16.xpose.msra.mxu0 %v655
      %659 = vmatprep.subr.bf16.mxu0 0
      %660 = vmatpush1.bf16.xpose.msra.mxu0 0
      %661 = vmatprep.subr.bf16.mxu0 0
      %662 = vmatpush1.bf16.xpose.msra.mxu0 0
      %663 = vmatprep.subr.bf16.mxu0 0
      %664 = vmatpush1.bf16.xpose.msra.mxu0 0
      %665 = vmatprep.subr.bf16.mxu0 0
      %666 = vmatpush1.bf16.xpose.msra.mxu0 0
      %667 = vmatprep.subr.bf16.mxu0 0
      %668 = vmatpush1.bf16.xpose.msra.mxu0 0
      %669 = vmatprep.subr.bf16.mxu0 0
      %670 = vmatpush1.bf16.xpose.msra.mxu0 0
      %671 = vmatprep.subr.bf16.mxu0 0
      %672 = vmatpush1.bf16.xpose.msra.mxu0 0
      %673 = vmatprep.subr.bf16.mxu0 0
      %674 = vmatpush1.bf16.xpose.msra.mxu0 0
      %675 = vmatprep.subr.bf16.mxu0 0
      %676 = vmatpush1.bf16.xpose.msra.mxu0 0
      %677 = vmatprep.subr.bf16.mxu0 0
      %678 = vmatpush1.bf16.xpose.msra.mxu0 0
      %679 = vmatprep.subr.bf16.mxu0 0
      %680 = vmatpush1.bf16.xpose.msra.mxu0 0
      %681 = vmatprep.subr.bf16.mxu0 0
      %682 = vmatpush1.bf16.xpose.msra.mxu0 0
      %683 = vmatprep.subr.bf16.mxu0 0
      %684 = vmatpush1.bf16.xpose.msra.mxu0 0
      %685 = vmatprep.subr.bf16.mxu0 0
      %686 = vmatpush1.bf16.xpose.msra.mxu0 0
      %687 = vmatprep.subr.bf16.mxu0 0
      %688 = vmatpush1.bf16.xpose.msra.mxu0 0
      %689 = vmatprep.mubr.bf16.mxu0 0
      %690 = vmatmul.mubr.bf16.gmra.mrb[0].mxu0 %v652
      %v691 = vpop.f32.mrb[0].mxu0
      %v692 = vadd.f32 0.0, %v691
      %v693 = vpop.f32.mrb[0].mxu0
      %v694 = vpop.f32.mrb[0].mxu0
      %v695 = vpop.f32.mrb[0].mxu0
      %696 = vdwg.mxu0
      %v697 = vmul.f32 %v692, 0.35355338
      %v698 = vsel %vm305, %v697, -1e+09
      %v699 = vsel %vm306, %v698, -inf
      %700 = vmax.xlane.f32.xlu0 %v699
      %v701 = vpop.xlane.xlu0 %700
      %v702 = vsub.f32 %v698, %v701
      %v703 = vmul.f32 %v702, 1.442695
      %v704 = vpow.pop %v703
      %v705 = vsel %vm306, %v704, 0.0
      %706 = vadd.xlane.f32.xlu0 %v705
      %v707 = vpop.xlane.xlu0 %706
      %v708 = vrcp.pop %v707
      %v709 = vpack.c.bf16 %v704, %v704
      %710 = vrot.lane.b32.xlu0 %v485, 104
      %v711 = vpop.permute.xlu0 %710
      %v713 = vsel %vm306, %v709, 0
      %v716 = vsel %vm369, %v711, 0
      %718 = vmatprep.subr.bf16.mxu0 0
      %719 = vmatpush1.bf16.msra.mxu0 %v716
      %720 = vmatprep.subr.bf16.mxu0 0
      %721 = vmatpush1.bf16.msra.mxu0 0
      %722 = vmatprep.subr.bf16.mxu0 0
      %723 = vmatpush1.bf16.msra.mxu0 0
      %724 = vmatprep.subr.bf16.mxu0 0
      %725 = vmatpush1.bf16.msra.mxu0 0
      %726 = vmatprep.subr.bf16.mxu0 0
      %727 = vmatpush1.bf16.msra.mxu0 0
      %728 = vmatprep.subr.bf16.mxu0 0
      %729 = vmatpush1.bf16.msra.mxu0 0
      %730 = vmatprep.subr.bf16.mxu0 0
      %731 = vmatpush1.bf16.msra.mxu0 0
      %732 = vmatprep.subr.bf16.mxu0 0
      %733 = vmatpush1.bf16.msra.mxu0 0
      %734 = vmatprep.subr.bf16.mxu0 0
      %735 = vmatpush1.bf16.msra.mxu0 0
      %736 = vmatprep.subr.bf16.mxu0 0
      %737 = vmatpush1.bf16.msra.mxu0 0
      %738 = vmatprep.subr.bf16.mxu0 0
      %739 = vmatpush1.bf16.msra.mxu0 0
      %740 = vmatprep.subr.bf16.mxu0 0
      %741 = vmatpush1.bf16.msra.mxu0 0
      %742 = vmatprep.subr.bf16.mxu0 0
      %743 = vmatpush1.bf16.msra.mxu0 0
      %744 = vmatprep.subr.bf16.mxu0 0
      %745 = vmatpush1.bf16.msra.mxu0 0
      %746 = vmatprep.subr.bf16.mxu0 0
      %747 = vmatpush1.bf16.msra.mxu0 0
      %748 = vmatprep.subr.bf16.mxu0 0
      %749 = vmatpush1.bf16.msra.mxu0 0
      %750 = vmatprep.mubr.bf16.mxu0 0
      %751 = vmatmul.mubr.bf16.gmra.mrb[0].mxu0 %v713
      %v752 = vpop.f32.mrb[0].mxu0
      %v753 = vadd.f32 0.0, %v752
      %v754 = vpop.f32.mrb[0].mxu0
      %v755 = vpop.f32.mrb[0].mxu0
      %v756 = vpop.f32.mrb[0].mxu0
      %757 = vdwg.mxu0
      %v758 = vmul.f32 %v753, %v708
      %760 = vrot.lane.b32.xlu0 %v534, 8
      %v761 = vpop.permute.xlu0 %760
      %764 = vrot.lane.b32.xlu0 %v646, 16
      %v765 = vpop.permute.xlu0 %764
      %768 = vrot.lane.b32.xlu0 %v758, 24
      %v769 = vpop.permute.xlu0 %768
      %v771 = vsel %vm306, %v413, %v761
      %vm772 = vcmask 130048
      %v773 = vsel %vm772, %v771, %v765
      %vm774 = vcmask 195584
      %v775 = vsel %vm774, %v773, %v769
      %v776 = vpack.c.bf16 %v775, %v775
      %vm777 = vcmask 257024
      %778 = vst.msk [vmem:[%s284] sm:$0xf] %vm777, %v776
      %p779 = scmp.lt.s32.totalorder %s16, 1
      %s780 = scalar_select %p779, %s16, 1
      %s781 = smul.addr %s780, 4
      %s782 = scalar_lea.vmem %s5, %s781
      // Predicated region
      $region41: #{transformer_forward.54} parent=39 // pred_check
        %p783 = pneg %p164
      $region42: #{transformer_forward.54} parent=39 // pred_check_branch
        %785 = sbr.rel (%p783) target = $region44
      $region43: #{transformer_forward.54} parent=39 // pred_region
        _
      $region44: #{transformer_forward.54} parent=39 // pred_fallthru
        _
    $region40: #{transformer_forward.54} parent=5 // pred_fallthru
      _
    %p786 = scmp.le.s32.totalorder 2, %s11
    // Predicated region
    $region45: #{transformer_forward.54} parent=5 // pred_check
      %p787 = pneg %p786
    $region46: #{transformer_forward.54} parent=5 // pred_check_branch
      %789 = sbr.rel (%p787) target = $region48
    $region47: #{transformer_forward.54} parent=5 // pred_region
      %s790 = ssub.s32 %s11, 2
      // Predicated region
      $region49: #{transformer_forward.54} parent=47 // pred_check
        %p791 = pneg %p170
      $region50: #{transformer_forward.54} parent=47 // pred_check_branch
        %793 = sbr.rel (%p791) target = $region52
      $region51: #{transformer_forward.54} parent=47 // pred_region
        %p794 = scmp.lt.s32.totalorder %s17, 1
        %s795 = scalar_select %p794, %s17, 1
        %s796 = smul.addr %s795, 4
        %s797 = scalar_lea.vmem %s5, %s796
      $region52: #{transformer_forward.54} parent=47 // pred_fallthru
        _
    $region48: #{transformer_forward.54} parent=5 // pred_fallthru
      _
  $region6: #{transformer_forward.54} parent=0 // loop_footer
    %s15 = sadd.s32 1, %s11
  $region7: #{transformer_forward.54} parent=0 // loop_footer_branch
    %10 = sbr.rel target = $region3
  $region8: #{transformer_forward.54} parent=0 // loop_exit
    _

</llo_original>
